<compile_context>
chip_gen: v5e
topology: v5e:2x2
jax: 0.10.0
libtpu: 0.0.40
codegen_flags: <defaults>
</compile_context>

<pallas_src>
import math
import functools
import numpy as np

import jax
import jax.numpy as jnp
from jax.experimental import pallas as pl
from jax.experimental.pallas import tpu as pltpu


# ---------------------------------------------------------------------------
# helpers
# ---------------------------------------------------------------------------
def _sinusoidal_table(n, d):
    """Sinusoidal table used by PositionalEmbedding / FixedEmbedding."""
    tab = np.zeros((n, d), dtype=np.float32)
    pos = np.arange(n, dtype=np.float32)[:, None]
    div = np.exp(np.arange(0, d, 2, dtype=np.float32) * -(math.log(10000.0) / d))
    tab[:, 0::2] = np.sin(pos * div)
    tab[:, 1::2] = np.cos(pos * div)
    return jnp.asarray(tab)


def _gelu(x):
    # TODO(synk): PyTorch F.gelu defaults to the exact erf form; tanh approx is
    # used for robust Mosaic lowering (max deviation ~1e-3).
    return jax.nn.gelu(x, approximate=True)


def pick_mxu_dtype(d_model, d_ff=None):
    """bf16 MXU operands only when the contraction K is large enough to
    amortize the f32<->bf16 VPU converts (v5e has no bf16 VPU path).
    Callers on v6e/v7x may force mxu_dtype=jnp.bfloat16 for smaller K."""
    k_min = min(d_model, d_ff or d_model)
    return jnp.bfloat16 if k_min >= 256 else jnp.float32


def _vmem_limit_bytes():
    """Per-generation scoped-VMEM budget with ~25% headroom
    (v7x: 48 MiB of 64 MiB/TC; v5e/v6e: 96 MiB of 128 MiB)."""
    try:
        cap = int(pltpu.get_tpu_info().vmem_capacity_bytes)
    except Exception:
        cap = 64 * 1024 * 1024
    return (cap * 3) // 4


def _pick_block_batch(B, rows_per_batch):
    """Batch elements per grid step: target >= 256 matmul rows (feeds the
    256-wide v6e/v7x MXU; v5e needs 128) while dividing B evenly.
    (v7x note: if B//Bt ends up odd, halving Bt keeps the 2-TC split even.)"""
    bt = min(B, max(1, pl.cdiv(256, rows_per_batch)))
    while B % bt:
        bt -= 1
    return bt


# ---------------------------------------------------------------------------
# Pallas kernel: Bt batches per grid step, all channels batched.
# ---------------------------------------------------------------------------
def _encoder_embed_kernel(x_ref, m_ref, *refs,
                          c_in, n_heads, block_b, has_te, mxu_dtype):
    te_ref = refs[0] if has_te else None
    (pe_ref, pos_ref, wfe_ref,
     wq_ref, bq_ref, wk_ref, bk_ref, wv_ref, bv_ref, wo_ref, bo_ref,
     w1_ref, b1_ref, w2_ref, b2_ref,
     g1_ref, be1_ref, g2_ref, be2_ref,
     o_ref) = refs[1:] if has_te else refs

    f32 = jnp.float32
    eps = 1e-5
    D, H, Bt = c_in, n_heads, block_b
    DT, dm = pos_ref.shape
    T = DT // D
    dk = dm // H
    R = Bt * DT                                    # matmul rows this grid step
    scale = 1.0 / math.sqrt(dk)
    cast = lambda a: a.astype(mxu_dtype)           # activations only; weights
                                                   # arrive already in mxu_dtype

    # TokenEmbeddingWithMask: Linear(1, d_model) + learned pos_embedding
    # (the feature-embedding bias b_fe is pre-folded into pos_ref).
    # Row order is (b, d, t).
    e = (x_ref[...] * wfe_ref[...] + pos_ref[...][None]).reshape(R, dm)    # f32

    # Q/K/V projections: single full-width matmuls with M = Bt*D*T rows.
    ec = cast(e)
    q = jnp.dot(ec, wq_ref[...], preferred_element_type=f32) + bq_ref[...]
    k = jnp.dot(ec, wk_ref[...], preferred_element_type=f32) + bk_ref[...]
    v = jnp.dot(ec, wv_ref[...], preferred_element_type=f32) + bv_ref[...]

    # Channel-batched [Bt*D, T, dm] views: T is a sublane multiple, so these
    # reshapes are layout no-ops (no scratch buffers, no copy loops).
    q3 = q.reshape(Bt * D, T, dm)
    k3 = k.reshape(Bt * D, T, dm)
    v3 = v.reshape(Bt * D, T, dm)

    # FullAttentionWithMask: keys at missing timesteps (mask == 0) are excluded
    # from the softmax via an additive -1e9 bias on the key axis (f32).
    bias = jnp.where(m_ref[...].reshape(Bt * D, 1, T) > 0.0, 0.0, -1e9)

    # Multi-head attention: static loop over heads, every matmul batched over
    # all Bt*D sequences; head outputs are lane-concatenated once so the
    # output projection is a single K = d_model matmul.
    # TODO(synk): fuse the head loop into one [Bt*D*H, T, dk] batched einsum
    # (needs a lane-splitting reshape whose Mosaic relayout cost is unprofiled).
    heads = []
    for h in range(H):
        lanes = slice(h * dk, (h + 1) * dk)
        s = jnp.einsum('nqc,nkc->nqk',
                       cast(q3[:, :, lanes]), cast(k3[:, :, lanes]),
                       preferred_element_type=f32) * scale + bias      # [N,T,T]
        s = s - jnp.max(s, axis=-1, keepdims=True)
        pexp = jnp.exp(s)
        probs = pexp * pl.reciprocal(jnp.sum(pexp, axis=-1, keepdims=True),
                                     approx=True)
        heads.append(jnp.einsum('nqk,nkc->nqc',
                                cast(probs), cast(v3[:, :, lanes]),
                                preferred_element_type=f32))           # [N,T,dk]
    attn = jnp.concatenate(heads, axis=-1).reshape(R, dm)
    attn = jnp.dot(cast(attn), wo_ref[...],
                   preferred_element_type=f32) + bo_ref[...]           # [R, dm]

    # EncoderLayer: residual + LayerNorm1
    x1 = e + attn
    mu1 = jnp.mean(x1, axis=-1, keepdims=True)
    var1 = jnp.mean(jnp.square(x1 - mu1), axis=-1, keepdims=True)
    xn1 = (x1 - mu1) * jax.lax.rsqrt(var1 + eps) * g1_ref[...] + be1_ref[...]

    # FFN (kernel_size=1 convs == linears), gelu
    y = jnp.dot(cast(xn1), w1_ref[...], preferred_element_type=f32) + b1_ref[...]
    y = _gelu(y)
    y = jnp.dot(cast(y), w2_ref[...], preferred_element_type=f32) + b2_ref[...]

    # residual + LayerNorm2
    x2 = xn1 + y
    mu2 = jnp.mean(x2, axis=-1, keepdims=True)
    var2 = jnp.mean(jnp.square(x2 - mu2), axis=-1, keepdims=True)
    xn2 = (x2 - mu2) * jax.lax.rsqrt(var2 + eps) * g2_ref[...] + be2_ref[...]

    # '(b d) t m -> b t (d m)' assembly via lane concatenation, plus the
    # grid-invariant sinusoidal PE and the per-batch temporal embedding.
    # One full-width, lane-dense store of the whole [Bt, T, D*dm] block.
    slabs = []
    for b in range(Bt):
        base = b * D * T
        slabs.append(jnp.concatenate(
            [xn2[base + d * T: base + (d + 1) * T, :] for d in range(D)],
            axis=-1))                                            # [T, D*dm]
    out = jnp.stack(slabs, axis=0) + pe_ref[...][None]           # [Bt, T, D*dm]
    if has_te:
        out = out + te_ref[...]
    o_ref[...] = out.astype(o_ref.dtype)


# ---------------------------------------------------------------------------
# parameter init (deterministic, synthetic)
# ---------------------------------------------------------------------------
def init_params(key, seq_len, c_in, d_model, n_heads, d_ff=None):
    d_ff = d_ff or 4 * d_model
    d_full = d_model * c_in
    keys = jax.random.split(key, 16)
    s = 0.05

    def rnd(k, shape):
        return jax.random.normal(k, shape, jnp.float32) * s

    return dict(
        seq_len=seq_len, c_in=c_in, d_model=d_model, n_heads=n_heads, d_ff=d_ff,
        # TokenEmbeddingWithMask
        w_fe=rnd(keys[0], (1, d_model)),            # Linear(1, d_model) weight (row)
        b_fe=rnd(keys[1], (1, d_model)),
        pos_embedding=rnd(keys[2], (1, seq_len, c_in, d_model)),
        # AttentionLayer projections
        wq=rnd(keys[3], (d_model, d_model)), bq=rnd(keys[4], (1, d_model)),
        wk=rnd(keys[5], (d_model, d_model)), bk=rnd(keys[6], (1, d_model)),
        wv=rnd(keys[7], (d_model, d_model)), bv=rnd(keys[8], (1, d_model)),
        wo=rnd(keys[9], (d_model, d_model)), bo=rnd(keys[10], (1, d_model)),
        # EncoderLayer FFN (conv1/conv2 with kernel_size=1)
        w1=rnd(keys[11], (d_model, d_ff)), b1=rnd(keys[12], (1, d_ff)),
        w2=rnd(keys[13], (d_ff, d_model)), b2=rnd(keys[14], (1, d_model)),
        # LayerNorms
        g1=jnp.ones((1, d_model), jnp.float32), be1=jnp.zeros((1, d_model), jnp.float32),
        g2=jnp.ones((1, d_model), jnp.float32), be2=jnp.zeros((1, d_model), jnp.float32),
        # PositionalEmbedding(d_model * c_in)
        pe=_sinusoidal_table(seq_len, d_full),
        # TemporalEmbedding (embed_type='fixed', freq='h') tables
        month_tab=_sinusoidal_table(13, d_full),
        day_tab=_sinusoidal_table(32, d_full),
        weekday_tab=_sinusoidal_table(7, d_full),
        hour_tab=_sinusoidal_table(24, d_full),
    )


def temporal_embedding(x_mark, p):
    # x_mark[..., 0]=month, 1=day, 2=weekday, 3=hour (freq='h' -> no minutes)
    return (p['month_tab'][x_mark[..., 0]] + p['day_tab'][x_mark[..., 1]] +
            p['weekday_tab'][x_mark[..., 2]] + p['hour_tab'][x_mark[..., 3]])


# ---------------------------------------------------------------------------
# wrapper
# ---------------------------------------------------------------------------
def data_embedding_with_mask(x, x_mark, x_mask, p, *, mxu_dtype=None):
    B, T, D = x.shape
    dm, H, d_ff = p['d_model'], p['n_heads'], p['d_ff']
    d_full = D * dm
    if mxu_dtype is None:
        mxu_dtype = pick_mxu_dtype(dm, d_ff)
    has_te = x_mark is not None

    # NOTE: T should be a multiple of 8 so the in-kernel row-slab reshapes are
    # layout no-ops.  TODO(synk): pad T (masking pad keys via the -1e9 bias)
    # for ragged sequence lengths.
    Bt = _pick_block_batch(B, D * T)

    # Tiny input relayouts (B*T*D scalars — negligible).
    # TODO(synk): a (B, D, T) lane-dense x layout would avoid the 128x
    # lane-padded width-1 block; negligible at D*T this small.
    x_in = jnp.transpose(x, (0, 2, 1)).reshape(B, D * T, 1)       # rows = (d, t)
    m_in = jnp.transpose(x_mask, (0, 2, 1))[:, :, None, :]        # [B, D, 1, T]

    # Grid-invariant constants (DMA'd once, single-buffered):
    #  * learned pos_embedding with the feature-embedding bias folded in
    #  * sinusoidal PositionalEmbedding (no [B,...] broadcast in HBM anymore)
    pos2 = (jnp.transpose(p['pos_embedding'][0], (1, 0, 2)) + p['b_fe']
            ).reshape(D * T, dm)
    pe2 = p['pe'][:T, :]                                          # [T, D*dm]

    # bf16 weight pre-cast: halves weight DMA/VMEM and removes per-grid-step
    # f32->bf16 converts of grid-invariant data.  No-op when mxu_dtype=f32.
    wq, wk, wv, wo = (p[n].astype(mxu_dtype) for n in ('wq', 'wk', 'wv', 'wo'))
    w1, w2 = p['w1'].astype(mxu_dtype), p['w2'].astype(mxu_dtype)

    bmap3 = lambda i: (i, 0, 0)
    bmap4 = lambda i: (i, 0, 0, 0)

    def inv_spec(shape):
        # Grid-invariant input: constant index_map + single-buffered residency
        # (halves invariant VMEM footprint; matters most on v7x's 64 MiB/TC).
        return pl.BlockSpec(shape, lambda i: (0,) * len(shape),
                            pipeline_mode=pl.Buffered(1))

    in_specs = [pl.BlockSpec((Bt, D * T, 1), bmap3),      # x (channel-major rows)
                pl.BlockSpec((Bt, D, 1, T), bmap4)]       # mask
    args = [x_in, m_in]
    if has_te:
        # Only the data-dependent temporal embedding is streamed per batch.
        # TODO(synk): gather the 4 small sinusoidal tables in-kernel from
        # SMEM-resident x_mark indices to drop this stream entirely.
        in_specs.append(pl.BlockSpec((Bt, T, d_full), bmap3))
        args.append(temporal_embedding(x_mark, p))

    invariants = [
        (pe2, (T, d_full)), (pos2, (D * T, dm)), (p['w_fe'], (1, dm)),
        (wq, (dm, dm)), (p['bq'], (1, dm)),
        (wk, (dm, dm)), (p['bk'], (1, dm)),
        (wv, (dm, dm)), (p['bv'], (1, dm)),
        (wo, (dm, dm)), (p['bo'], (1, dm)),
        (w1, (dm, d_ff)), (p['b1'], (1, d_ff)),
        (w2, (d_ff, dm)), (p['b2'], (1, dm)),
        (p['g1'], (1, dm)), (p['be1'], (1, dm)),
        (p['g2'], (1, dm)), (p['be2'], (1, dm)),
    ]
    for arr, shape in invariants:
        in_specs.append(inv_spec(shape))
        args.append(arr)

    kernel = functools.partial(_encoder_embed_kernel, c_in=D, n_heads=H,
                               block_b=Bt, has_te=has_te, mxu_dtype=mxu_dtype)
    out = pl.pallas_call(
        kernel,
        out_shape=jax.ShapeDtypeStruct((B, T, d_full), jnp.float32),
        grid=(B // Bt,),
        in_specs=in_specs,
        out_specs=pl.BlockSpec((Bt, T, d_full), bmap3),
        compiler_params=pltpu.CompilerParams(
            dimension_semantics=("parallel",),
            vmem_limit_bytes=_vmem_limit_bytes(),
        ),
    )(*args)

    # nn.Dropout(p=0.1): identity in eval mode.
    return out


# ---------------------------------------------------------------------------
# pure-JAX reference (same math, same cast points) for correctness check
# ---------------------------------------------------------------------------
def reference_forward(x, x_mark, x_mask, p, *, mxu_dtype=jnp.float32):
    B, T, D = x.shape
    dm, H = p['d_model'], p['n_heads']
    dk = dm // H
    eps = 1e-5
    f32 = jnp.float32
    cast = lambda a: a.astype(mxu_dtype)

    e = x[..., None] * p['w_fe'][0] + p['b_fe'][0] + p['pos_embedding'][0]   # [B,T,D,dm]
    e = jnp.transpose(e, (0, 2, 1, 3)).reshape(B * D, T, dm)
    m = jnp.transpose(x_mask, (0, 2, 1)).reshape(B * D, T)

    proj = lambda a, w, b: jnp.einsum('ntm,mk->ntk', cast(a), cast(w),
                                      preferred_element_type=f32) + b[0]
    q = proj(e, p['wq'], p['bq'])
    k = proj(e, p['wk'], p['bk'])
    v = proj(e, p['wv'], p['bv'])

    split = lambda t: t.reshape(B * D, T, H, dk).transpose(0, 2, 1, 3)
    qh, kh, vh = split(q), split(k), split(v)
    bias = jnp.where(m > 0.0, 0.0, -1e9)[:, None, None, :]
    s = jnp.einsum('nhqc,nhkc->nhqk', cast(qh), cast(kh),
                   preferred_element_type=f32) * (1.0 / math.sqrt(dk)) + bias
    s = s - jnp.max(s, axis=-1, keepdims=True)
    pexp = jnp.exp(s)
    probs = pexp / jnp.sum(pexp, axis=-1, keepdims=True)
    o = jnp.einsum('nhqk,nhkc->nhqc', cast(probs), cast(vh),
                   preferred_element_type=f32)
    o = o.transpose(0, 2, 1, 3).reshape(B * D, T, dm)
    o = proj(o, p['wo'], p['bo'])

    def ln(z, g, b):
        mu = jnp.mean(z, -1, keepdims=True)
        var = jnp.mean(jnp.square(z - mu), -1, keepdims=True)
        return (z - mu) * jax.lax.rsqrt(var + eps) * g[0] + b[0]

    xn1 = ln(e + o, p['g1'], p['be1'])
    y = _gelu(proj(xn1, p['w1'], p['b1']))
    y = proj(y, p['w2'], p['b2'])
    xn2 = ln(xn1 + y, p['g2'], p['be2'])

    out = xn2.reshape(B, D, T, dm).transpose(0, 2, 1, 3).reshape(B, T, D * dm)
    out = out + p['pe'][None, :T, :]
    if x_mark is not None:
        out = out + temporal_embedding(x_mark, p)
    return out


# ---------------------------------------------------------------------------
if __name__ == "__main__":
    B, T, D = 2, 8, 4            # batch, seq_len, c_in
    d_model, n_heads = 32, 4

    key = jax.random.PRNGKey(0)
    k_x, k_mask, k_mark, k_param = jax.random.split(key, 4)

    x = jax.random.normal(k_x, (B, T, D), jnp.float32)
    x_mask = jax.random.bernoulli(k_mask, 0.7, (B, T, D)).astype(jnp.float32)
    km = jax.random.split(k_mark, 4)
    x_mark = jnp.stack([
        jax.random.randint(km[0], (B, T), 0, 13),   # month
        jax.random.randint(km[1], (B, T), 0, 32),   # day
        jax.random.randint(km[2], (B, T), 0, 7),    # weekday
        jax.random.randint(km[3], (B, T), 0, 24),   # hour
    ], axis=-1)

    params = init_params(k_param, seq_len=T, c_in=D, d_model=d_model, n_heads=n_heads)

    # Default: K=d_model=32 -> auto-gated to float32 MXU operands (v5e-safe);
    # tolerance covers the approximate EUP reciprocal in the softmax.
    out = jax.block_until_ready(data_embedding_with_mask(x, x_mark, x_mask, params))
    ref = reference_forward(x, x_mark, x_mask, params)
    assert out.shape == (B, T, D * d_model)
    np.testing.assert_allclose(np.asarray(out), np.asarray(ref), rtol=2e-3, atol=2e-3)

    # x_mark = None branch (positional embedding only, no per-batch stream).
    out_nm = jax.block_until_ready(data_embedding_with_mask(x, None, x_mask, params))
    ref_nm = reference_forward(x, None, x_mask, params)
    np.testing.assert_allclose(np.asarray(out_nm), np.asarray(ref_nm), rtol=2e-3, atol=2e-3)

    # Forced bf16 MXU operands (v6e / v7x fast path): weights are pre-cast in
    # the wrapper; softmax / LayerNorm statistics stay float32.
    out_bf = jax.block_until_ready(
        data_embedding_with_mask(x, x_mark, x_mask, params, mxu_dtype=jnp.bfloat16))
    ref_bf = reference_forward(x, x_mark, x_mask, params, mxu_dtype=jnp.bfloat16)
    np.testing.assert_allclose(np.asarray(out_bf), np.asarray(ref_bf), rtol=2e-2, atol=2e-2)

    print("KERNEL_OK")
</pallas_src>

<mosaic_0001>
module attributes {stable_mosaic.version = 11 : i64} {
  func.func @_encoder_embed_kernel(%arg0: i32, %arg1: memref<2x32x1xf32, #tpu.memory_space<vmem>>, %arg2: memref<2x4x1x8xf32, #tpu.memory_space<vmem>>, %arg3: memref<2x8x128xf32, #tpu.memory_space<vmem>>, %arg4: memref<8x128xf32, #tpu.memory_space<vmem>>, %arg5: memref<32x32xf32, #tpu.memory_space<vmem>>, %arg6: memref<1x32xf32, #tpu.memory_space<vmem>>, %arg7: memref<32x32xf32, #tpu.memory_space<vmem>>, %arg8: memref<1x32xf32, #tpu.memory_space<vmem>>, %arg9: memref<32x32xf32, #tpu.memory_space<vmem>>, %arg10: memref<1x32xf32, #tpu.memory_space<vmem>>, %arg11: memref<32x32xf32, #tpu.memory_space<vmem>>, %arg12: memref<1x32xf32, #tpu.memory_space<vmem>>, %arg13: memref<32x32xf32, #tpu.memory_space<vmem>>, %arg14: memref<1x32xf32, #tpu.memory_space<vmem>>, %arg15: memref<32x128xf32, #tpu.memory_space<vmem>>, %arg16: memref<1x128xf32, #tpu.memory_space<vmem>>, %arg17: memref<128x32xf32, #tpu.memory_space<vmem>>, %arg18: memref<1x32xf32, #tpu.memory_space<vmem>>, %arg19: memref<1x32xf32, #tpu.memory_space<vmem>>, %arg20: memref<1x32xf32, #tpu.memory_space<vmem>>, %arg21: memref<1x32xf32, #tpu.memory_space<vmem>>, %arg22: memref<1x32xf32, #tpu.memory_space<vmem>>, %arg23: memref<2x8x128xf32, #tpu.memory_space<vmem>>) attributes {dimension_semantics = [#tpu.dimension_semantics<parallel>], iteration_bounds = array<i64: 1>, scalar_prefetch = 0 : i64, scratch_operands = 0 : i64, tpu.core_type = #tpu.core_type<tc>, window_params = [{transform_indices = @transform_0, window_bounds = array<i64: 2, 32, 1>}, {transform_indices = @transform_1, window_bounds = array<i64: 2, 4, 1, 8>}, {transform_indices = @transform_2, window_bounds = array<i64: 2, 8, 128>}, {pipeline_mode = #tpu.pipeline_mode<synchronous>, transform_indices = @transform_3, window_bounds = array<i64: 8, 128>}, {pipeline_mode = #tpu.pipeline_mode<synchronous>, transform_indices = @transform_4, window_bounds = array<i64: 32, 32>}, {pipeline_mode = #tpu.pipeline_mode<synchronous>, transform_indices = @transform_5, window_bounds = array<i64: 1, 32>}, {pipeline_mode = #tpu.pipeline_mode<synchronous>, transform_indices = @transform_6, window_bounds = array<i64: 32, 32>}, {pipeline_mode = #tpu.pipeline_mode<synchronous>, transform_indices = @transform_7, window_bounds = array<i64: 1, 32>}, {pipeline_mode = #tpu.pipeline_mode<synchronous>, transform_indices = @transform_8, window_bounds = array<i64: 32, 32>}, {pipeline_mode = #tpu.pipeline_mode<synchronous>, transform_indices = @transform_9, window_bounds = array<i64: 1, 32>}, {pipeline_mode = #tpu.pipeline_mode<synchronous>, transform_indices = @transform_10, window_bounds = array<i64: 32, 32>}, {pipeline_mode = #tpu.pipeline_mode<synchronous>, transform_indices = @transform_11, window_bounds = array<i64: 1, 32>}, {pipeline_mode = #tpu.pipeline_mode<synchronous>, transform_indices = @transform_12, window_bounds = array<i64: 32, 32>}, {pipeline_mode = #tpu.pipeline_mode<synchronous>, transform_indices = @transform_13, window_bounds = array<i64: 1, 32>}, {pipeline_mode = #tpu.pipeline_mode<synchronous>, transform_indices = @transform_14, window_bounds = array<i64: 32, 128>}, {pipeline_mode = #tpu.pipeline_mode<synchronous>, transform_indices = @transform_15, window_bounds = array<i64: 1, 128>}, {pipeline_mode = #tpu.pipeline_mode<synchronous>, transform_indices = @transform_16, window_bounds = array<i64: 128, 32>}, {pipeline_mode = #tpu.pipeline_mode<synchronous>, transform_indices = @transform_17, window_bounds = array<i64: 1, 32>}, {pipeline_mode = #tpu.pipeline_mode<synchronous>, transform_indices = @transform_18, window_bounds = array<i64: 1, 32>}, {pipeline_mode = #tpu.pipeline_mode<synchronous>, transform_indices = @transform_19, window_bounds = array<i64: 1, 32>}, {pipeline_mode = #tpu.pipeline_mode<synchronous>, transform_indices = @transform_20, window_bounds = array<i64: 1, 32>}, {pipeline_mode = #tpu.pipeline_mode<synchronous>, transform_indices = @transform_21, window_bounds = array<i64: 1, 32>}, {transform_indices = @transform_22, window_bounds = array<i64: 2, 8, 128>}]} {
    %c0 = arith.constant 0 : index
    %c0_0 = arith.constant 0 : index
    %c0_1 = arith.constant 0 : index
    %0 = vector.load %arg1[%c0, %c0_0, %c0_1] : memref<2x32x1xf32, #tpu.memory_space<vmem>>, vector<2x32x1xf32>
    %c0_2 = arith.constant 0 : index
    %c0_3 = arith.constant 0 : index
    %1 = vector.load %arg6[%c0_2, %c0_3] : memref<1x32xf32, #tpu.memory_space<vmem>>, vector<1x32xf32>
    %2 = vector.shape_cast %1 : vector<1x32xf32> to vector<1x1x32xf32>
    %3 = vector.broadcast %0 : vector<2x32x1xf32> to vector<2x32x32xf32>
    %4 = vector.broadcast %2 : vector<1x1x32xf32> to vector<2x32x32xf32>
    %5 = arith.mulf %3, %4 : vector<2x32x32xf32>
    %c0_4 = arith.constant 0 : index
    %c0_5 = arith.constant 0 : index
    %6 = vector.load %arg5[%c0_4, %c0_5] : memref<32x32xf32, #tpu.memory_space<vmem>>, vector<32x32xf32>
    %7 = vector.shape_cast %6 : vector<32x32xf32> to vector<1x32x32xf32>
    %8 = vector.broadcast %7 : vector<1x32x32xf32> to vector<2x32x32xf32>
    %9 = arith.addf %5, %8 : vector<2x32x32xf32>
    %10 = vector.shape_cast %9 : vector<2x32x32xf32> to vector<64x32xf32>
    %c0_6 = arith.constant 0 : index
    %c0_7 = arith.constant 0 : index
    %11 = vector.load %arg7[%c0_6, %c0_7] : memref<32x32xf32, #tpu.memory_space<vmem>>, vector<32x32xf32>
    %cst = arith.constant dense<0.000000e+00> : vector<64x32xf32>
    %12 = tpu.matmul %10, %11, %cst {dimension_numbers = #tpu.dot_dimension_numbers<[1], [0], [0], [1], [0, 0, 1, 1], [], []>} : vector<64x32xf32>, vector<32x32xf32>, vector<64x32xf32> -> vector<64x32xf32>
    %c0_8 = arith.constant 0 : index
    %c0_9 = arith.constant 0 : index
    %13 = vector.load %arg8[%c0_8, %c0_9] : memref<1x32xf32, #tpu.memory_space<vmem>>, vector<1x32xf32>
    %14 = vector.broadcast %13 : vector<1x32xf32> to vector<64x32xf32>
    %15 = arith.addf %12, %14 : vector<64x32xf32>
    %c0_10 = arith.constant 0 : index
    %c0_11 = arith.constant 0 : index
    %16 = vector.load %arg9[%c0_10, %c0_11] : memref<32x32xf32, #tpu.memory_space<vmem>>, vector<32x32xf32>
    %cst_12 = arith.constant dense<0.000000e+00> : vector<64x32xf32>
    %17 = tpu.matmul %10, %16, %cst_12 {dimension_numbers = #tpu.dot_dimension_numbers<[1], [0], [0], [1], [0, 0, 1, 1], [], []>} : vector<64x32xf32>, vector<32x32xf32>, vector<64x32xf32> -> vector<64x32xf32>
    %c0_13 = arith.constant 0 : index
    %c0_14 = arith.constant 0 : index
    %18 = vector.load %arg10[%c0_13, %c0_14] : memref<1x32xf32, #tpu.memory_space<vmem>>, vector<1x32xf32>
    %19 = vector.broadcast %18 : vector<1x32xf32> to vector<64x32xf32>
    %20 = arith.addf %17, %19 : vector<64x32xf32>
    %c0_15 = arith.constant 0 : index
    %c0_16 = arith.constant 0 : index
    %21 = vector.load %arg11[%c0_15, %c0_16] : memref<32x32xf32, #tpu.memory_space<vmem>>, vector<32x32xf32>
    %cst_17 = arith.constant dense<0.000000e+00> : vector<64x32xf32>
    %22 = tpu.matmul %10, %21, %cst_17 {dimension_numbers = #tpu.dot_dimension_numbers<[1], [0], [0], [1], [0, 0, 1, 1], [], []>} : vector<64x32xf32>, vector<32x32xf32>, vector<64x32xf32> -> vector<64x32xf32>
    %c0_18 = arith.constant 0 : index
    %c0_19 = arith.constant 0 : index
    %23 = vector.load %arg12[%c0_18, %c0_19] : memref<1x32xf32, #tpu.memory_space<vmem>>, vector<1x32xf32>
    %24 = vector.broadcast %23 : vector<1x32xf32> to vector<64x32xf32>
    %25 = arith.addf %22, %24 : vector<64x32xf32>
    %26 = vector.shape_cast %15 : vector<64x32xf32> to vector<8x8x32xf32>
    %27 = vector.shape_cast %20 : vector<64x32xf32> to vector<8x8x32xf32>
    %28 = vector.shape_cast %25 : vector<64x32xf32> to vector<8x8x32xf32>
    %c0_20 = arith.constant 0 : index
    %c0_21 = arith.constant 0 : index
    %c0_22 = arith.constant 0 : index
    %c0_23 = arith.constant 0 : index
    %29 = vector.load %arg2[%c0_20, %c0_21, %c0_22, %c0_23] : memref<2x4x1x8xf32, #tpu.memory_space<vmem>>, vector<2x4x1x8xf32>
    %30 = vector.shape_cast %29 : vector<2x4x1x8xf32> to vector<8x1x8xf32>
    %cst_24 = arith.constant 0.000000e+00 : f32
    %31 = vector.broadcast %cst_24 : f32 to vector<8x1x8xf32>
    %32 = arith.cmpf ogt, %30, %31 : vector<8x1x8xf32>
    %cst_25 = arith.constant 0.000000e+00 : f32
    %cst_26 = arith.constant -1.000000e+09 : f32
    %33 = vector.broadcast %cst_25 : f32 to vector<8x1x8xf32>
    %34 = vector.broadcast %cst_26 : f32 to vector<8x1x8xf32>
    %35 = arith.select %32, %33, %34 : vector<8x1x8xi1>, vector<8x1x8xf32>
    %36 = vector.extract_strided_slice %26 {offsets = [0, 0, 0], sizes = [8, 8, 8], strides = [1, 1, 1]} : vector<8x8x32xf32> to vector<8x8x8xf32>
    %37 = vector.extract_strided_slice %27 {offsets = [0, 0, 0], sizes = [8, 8, 8], strides = [1, 1, 1]} : vector<8x8x32xf32> to vector<8x8x8xf32>
    "tpu.trace_start"() <{level = 10 : i32, message = "nqc,nkc->nqk"}> : () -> ()
    %cst_27 = arith.constant dense<0.000000e+00> : vector<8x8x8xf32>
    %38 = tpu.matmul %36, %37, %cst_27 {dimension_numbers = #tpu.dot_dimension_numbers<[2], [2], [1], [1], [0, 0, 0, 1, 1, 1], [0], [0]>} : vector<8x8x8xf32>, vector<8x8x8xf32>, vector<8x8x8xf32> -> vector<8x8x8xf32>
    "tpu.trace_stop"() : () -> ()
    %cst_28 = arith.constant 0.353553385 : f32
    %39 = vector.broadcast %cst_28 : f32 to vector<8x8x8xf32>
    %40 = arith.mulf %38, %39 : vector<8x8x8xf32>
    %41 = vector.broadcast %35 : vector<8x1x8xf32> to vector<8x8x8xf32>
    %42 = arith.addf %40, %41 : vector<8x8x8xf32>
    %cst_29 = arith.constant dense<0xFF800000> : vector<8x8xf32>
    %43 = vector.multi_reduction <maximumf>, %42, %cst_29 [2] : vector<8x8x8xf32> to vector<8x8xf32>
    %44 = vector.shape_cast %43 : vector<8x8xf32> to vector<8x8x1xf32>
    %45 = vector.broadcast %44 : vector<8x8x1xf32> to vector<8x8x8xf32>
    %46 = arith.subf %42, %45 : vector<8x8x8xf32>
    %47 = math.exp %46 : vector<8x8x8xf32>
    %cst_30 = arith.constant dense<0.000000e+00> : vector<8x8xf32>
    %48 = vector.multi_reduction <add>, %47, %cst_30 [2] : vector<8x8x8xf32> to vector<8x8xf32>
    %49 = vector.shape_cast %48 : vector<8x8xf32> to vector<8x8x1xf32>
    %50 = tpu.reciprocal %49 {approx = true} : vector<8x8x1xf32> -> vector<8x8x1xf32>
    %51 = vector.broadcast %50 : vector<8x8x1xf32> to vector<8x8x8xf32>
    %52 = arith.mulf %47, %51 : vector<8x8x8xf32>
    %53 = vector.extract_strided_slice %28 {offsets = [0, 0, 0], sizes = [8, 8, 8], strides = [1, 1, 1]} : vector<8x8x32xf32> to vector<8x8x8xf32>
    "tpu.trace_start"() <{level = 10 : i32, message = "nqk,nkc->nqc"}> : () -> ()
    %cst_31 = arith.constant dense<0.000000e+00> : vector<8x8x8xf32>
    %54 = tpu.matmul %52, %53, %cst_31 {dimension_numbers = #tpu.dot_dimension_numbers<[2], [1], [1], [2], [0, 0, 0, 1, 1, 2], [0], [0]>} : vector<8x8x8xf32>, vector<8x8x8xf32>, vector<8x8x8xf32> -> vector<8x8x8xf32>
    "tpu.trace_stop"() : () -> ()
    %55 = vector.extract_strided_slice %26 {offsets = [0, 0, 8], sizes = [8, 8, 8], strides = [1, 1, 1]} : vector<8x8x32xf32> to vector<8x8x8xf32>
    %56 = vector.extract_strided_slice %27 {offsets = [0, 0, 8], sizes = [8, 8, 8], strides = [1, 1, 1]} : vector<8x8x32xf32> to vector<8x8x8xf32>
    "tpu.trace_start"() <{level = 10 : i32, message = "nqc,nkc->nqk"}> : () -> ()
    %cst_32 = arith.constant dense<0.000000e+00> : vector<8x8x8xf32>
    %57 = tpu.matmul %55, %56, %cst_32 {dimension_numbers = #tpu.dot_dimension_numbers<[2], [2], [1], [1], [0, 0, 0, 1, 1, 1], [0], [0]>} : vector<8x8x8xf32>, vector<8x8x8xf32>, vector<8x8x8xf32> -> vector<8x8x8xf32>
    "tpu.trace_stop"() : () -> ()
    %cst_33 = arith.constant 0.353553385 : f32
    %58 = vector.broadcast %cst_33 : f32 to vector<8x8x8xf32>
    %59 = arith.mulf %57, %58 : vector<8x8x8xf32>
    %60 = vector.broadcast %35 : vector<8x1x8xf32> to vector<8x8x8xf32>
    %61 = arith.addf %59, %60 : vector<8x8x8xf32>
    %cst_34 = arith.constant dense<0xFF800000> : vector<8x8xf32>
    %62 = vector.multi_reduction <maximumf>, %61, %cst_34 [2] : vector<8x8x8xf32> to vector<8x8xf32>
    %63 = vector.shape_cast %62 : vector<8x8xf32> to vector<8x8x1xf32>
    %64 = vector.broadcast %63 : vector<8x8x1xf32> to vector<8x8x8xf32>
    %65 = arith.subf %61, %64 : vector<8x8x8xf32>
    %66 = math.exp %65 : vector<8x8x8xf32>
    %cst_35 = arith.constant dense<0.000000e+00> : vector<8x8xf32>
    %67 = vector.multi_reduction <add>, %66, %cst_35 [2] : vector<8x8x8xf32> to vector<8x8xf32>
    %68 = vector.shape_cast %67 : vector<8x8xf32> to vector<8x8x1xf32>
    %69 = tpu.reciprocal %68 {approx = true} : vector<8x8x1xf32> -> vector<8x8x1xf32>
    %70 = vector.broadcast %69 : vector<8x8x1xf32> to vector<8x8x8xf32>
    %71 = arith.mulf %66, %70 : vector<8x8x8xf32>
    %72 = vector.extract_strided_slice %28 {offsets = [0, 0, 8], sizes = [8, 8, 8], strides = [1, 1, 1]} : vector<8x8x32xf32> to vector<8x8x8xf32>
    "tpu.trace_start"() <{level = 10 : i32, message = "nqk,nkc->nqc"}> : () -> ()
    %cst_36 = arith.constant dense<0.000000e+00> : vector<8x8x8xf32>
    %73 = tpu.matmul %71, %72, %cst_36 {dimension_numbers = #tpu.dot_dimension_numbers<[2], [1], [1], [2], [0, 0, 0, 1, 1, 2], [0], [0]>} : vector<8x8x8xf32>, vector<8x8x8xf32>, vector<8x8x8xf32> -> vector<8x8x8xf32>
    "tpu.trace_stop"() : () -> ()
    %74 = vector.extract_strided_slice %26 {offsets = [0, 0, 16], sizes = [8, 8, 8], strides = [1, 1, 1]} : vector<8x8x32xf32> to vector<8x8x8xf32>
    %75 = vector.extract_strided_slice %27 {offsets = [0, 0, 16], sizes = [8, 8, 8], strides = [1, 1, 1]} : vector<8x8x32xf32> to vector<8x8x8xf32>
    "tpu.trace_start"() <{level = 10 : i32, message = "nqc,nkc->nqk"}> : () -> ()
    %cst_37 = arith.constant dense<0.000000e+00> : vector<8x8x8xf32>
    %76 = tpu.matmul %74, %75, %cst_37 {dimension_numbers = #tpu.dot_dimension_numbers<[2], [2], [1], [1], [0, 0, 0, 1, 1, 1], [0], [0]>} : vector<8x8x8xf32>, vector<8x8x8xf32>, vector<8x8x8xf32> -> vector<8x8x8xf32>
    "tpu.trace_stop"() : () -> ()
    %cst_38 = arith.constant 0.353553385 : f32
    %77 = vector.broadcast %cst_38 : f32 to vector<8x8x8xf32>
    %78 = arith.mulf %76, %77 : vector<8x8x8xf32>
    %79 = vector.broadcast %35 : vector<8x1x8xf32> to vector<8x8x8xf32>
    %80 = arith.addf %78, %79 : vector<8x8x8xf32>
    %cst_39 = arith.constant dense<0xFF800000> : vector<8x8xf32>
    %81 = vector.multi_reduction <maximumf>, %80, %cst_39 [2] : vector<8x8x8xf32> to vector<8x8xf32>
    %82 = vector.shape_cast %81 : vector<8x8xf32> to vector<8x8x1xf32>
    %83 = vector.broadcast %82 : vector<8x8x1xf32> to vector<8x8x8xf32>
    %84 = arith.subf %80, %83 : vector<8x8x8xf32>
    %85 = math.exp %84 : vector<8x8x8xf32>
    %cst_40 = arith.constant dense<0.000000e+00> : vector<8x8xf32>
    %86 = vector.multi_reduction <add>, %85, %cst_40 [2] : vector<8x8x8xf32> to vector<8x8xf32>
    %87 = vector.shape_cast %86 : vector<8x8xf32> to vector<8x8x1xf32>
    %88 = tpu.reciprocal %87 {approx = true} : vector<8x8x1xf32> -> vector<8x8x1xf32>
    %89 = vector.broadcast %88 : vector<8x8x1xf32> to vector<8x8x8xf32>
    %90 = arith.mulf %85, %89 : vector<8x8x8xf32>
    %91 = vector.extract_strided_slice %28 {offsets = [0, 0, 16], sizes = [8, 8, 8], strides = [1, 1, 1]} : vector<8x8x32xf32> to vector<8x8x8xf32>
    "tpu.trace_start"() <{level = 10 : i32, message = "nqk,nkc->nqc"}> : () -> ()
    %cst_41 = arith.constant dense<0.000000e+00> : vector<8x8x8xf32>
    %92 = tpu.matmul %90, %91, %cst_41 {dimension_numbers = #tpu.dot_dimension_numbers<[2], [1], [1], [2], [0, 0, 0, 1, 1, 2], [0], [0]>} : vector<8x8x8xf32>, vector<8x8x8xf32>, vector<8x8x8xf32> -> vector<8x8x8xf32>
    "tpu.trace_stop"() : () -> ()
    %93 = vector.extract_strided_slice %26 {offsets = [0, 0, 24], sizes = [8, 8, 8], strides = [1, 1, 1]} : vector<8x8x32xf32> to vector<8x8x8xf32>
    %94 = vector.extract_strided_slice %27 {offsets = [0, 0, 24], sizes = [8, 8, 8], strides = [1, 1, 1]} : vector<8x8x32xf32> to vector<8x8x8xf32>
    "tpu.trace_start"() <{level = 10 : i32, message = "nqc,nkc->nqk"}> : () -> ()
    %cst_42 = arith.constant dense<0.000000e+00> : vector<8x8x8xf32>
    %95 = tpu.matmul %93, %94, %cst_42 {dimension_numbers = #tpu.dot_dimension_numbers<[2], [2], [1], [1], [0, 0, 0, 1, 1, 1], [0], [0]>} : vector<8x8x8xf32>, vector<8x8x8xf32>, vector<8x8x8xf32> -> vector<8x8x8xf32>
    "tpu.trace_stop"() : () -> ()
    %cst_43 = arith.constant 0.353553385 : f32
    %96 = vector.broadcast %cst_43 : f32 to vector<8x8x8xf32>
    %97 = arith.mulf %95, %96 : vector<8x8x8xf32>
    %98 = vector.broadcast %35 : vector<8x1x8xf32> to vector<8x8x8xf32>
    %99 = arith.addf %97, %98 : vector<8x8x8xf32>
    %cst_44 = arith.constant dense<0xFF800000> : vector<8x8xf32>
    %100 = vector.multi_reduction <maximumf>, %99, %cst_44 [2] : vector<8x8x8xf32> to vector<8x8xf32>
    %101 = vector.shape_cast %100 : vector<8x8xf32> to vector<8x8x1xf32>
    %102 = vector.broadcast %101 : vector<8x8x1xf32> to vector<8x8x8xf32>
    %103 = arith.subf %99, %102 : vector<8x8x8xf32>
    %104 = math.exp %103 : vector<8x8x8xf32>
    %cst_45 = arith.constant dense<0.000000e+00> : vector<8x8xf32>
    %105 = vector.multi_reduction <add>, %104, %cst_45 [2] : vector<8x8x8xf32> to vector<8x8xf32>
    %106 = vector.shape_cast %105 : vector<8x8xf32> to vector<8x8x1xf32>
    %107 = tpu.reciprocal %106 {approx = true} : vector<8x8x1xf32> -> vector<8x8x1xf32>
    %108 = vector.broadcast %107 : vector<8x8x1xf32> to vector<8x8x8xf32>
    %109 = arith.mulf %104, %108 : vector<8x8x8xf32>
    %110 = vector.extract_strided_slice %28 {offsets = [0, 0, 24], sizes = [8, 8, 8], strides = [1, 1, 1]} : vector<8x8x32xf32> to vector<8x8x8xf32>
    "tpu.trace_start"() <{level = 10 : i32, message = "nqk,nkc->nqc"}> : () -> ()
    %cst_46 = arith.constant dense<0.000000e+00> : vector<8x8x8xf32>
    %111 = tpu.matmul %109, %110, %cst_46 {dimension_numbers = #tpu.dot_dimension_numbers<[2], [1], [1], [2], [0, 0, 0, 1, 1, 2], [0], [0]>} : vector<8x8x8xf32>, vector<8x8x8xf32>, vector<8x8x8xf32> -> vector<8x8x8xf32>
    "tpu.trace_stop"() : () -> ()
    %112 = tpu.concatenate %54, %73, %92, %111 in 2 : vector<8x8x8xf32>, vector<8x8x8xf32>, vector<8x8x8xf32>, vector<8x8x8xf32> -> vector<8x8x32xf32>
    %113 = vector.shape_cast %112 : vector<8x8x32xf32> to vector<64x32xf32>
    %c0_47 = arith.constant 0 : index
    %c0_48 = arith.constant 0 : index
    %114 = vector.load %arg13[%c0_47, %c0_48] : memref<32x32xf32, #tpu.memory_space<vmem>>, vector<32x32xf32>
    %cst_49 = arith.constant dense<0.000000e+00> : vector<64x32xf32>
    %115 = tpu.matmul %113, %114, %cst_49 {dimension_numbers = #tpu.dot_dimension_numbers<[1], [0], [0], [1], [0, 0, 1, 1], [], []>} : vector<64x32xf32>, vector<32x32xf32>, vector<64x32xf32> -> vector<64x32xf32>
    %c0_50 = arith.constant 0 : index
    %c0_51 = arith.constant 0 : index
    %116 = vector.load %arg14[%c0_50, %c0_51] : memref<1x32xf32, #tpu.memory_space<vmem>>, vector<1x32xf32>
    %117 = vector.broadcast %116 : vector<1x32xf32> to vector<64x32xf32>
    %118 = arith.addf %115, %117 : vector<64x32xf32>
    %119 = arith.addf %10, %118 : vector<64x32xf32>
    %cst_52 = arith.constant dense<0.000000e+00> : vector<64xf32>
    %120 = vector.multi_reduction <add>, %119, %cst_52 [1] : vector<64x32xf32> to vector<64xf32>
    %121 = vector.shape_cast %120 : vector<64xf32> to vector<64x1xf32>
    %cst_53 = arith.constant 3.200000e+01 : f32
    %122 = vector.broadcast %cst_53 : f32 to vector<64x1xf32>
    %123 = arith.divf %121, %122 : vector<64x1xf32>
    %124 = vector.broadcast %123 : vector<64x1xf32> to vector<64x32xf32>
    %125 = arith.subf %119, %124 : vector<64x32xf32>
    %126 = arith.mulf %125, %125 : vector<64x32xf32>
    %cst_54 = arith.constant dense<0.000000e+00> : vector<64xf32>
    %127 = vector.multi_reduction <add>, %126, %cst_54 [1] : vector<64x32xf32> to vector<64xf32>
    %128 = vector.shape_cast %127 : vector<64xf32> to vector<64x1xf32>
    %cst_55 = arith.constant 3.200000e+01 : f32
    %129 = vector.broadcast %cst_55 : f32 to vector<64x1xf32>
    %130 = arith.divf %128, %129 : vector<64x1xf32>
    %131 = vector.broadcast %123 : vector<64x1xf32> to vector<64x32xf32>
    %132 = arith.subf %119, %131 : vector<64x32xf32>
    %cst_56 = arith.constant 9.99999974E-6 : f32
    %133 = vector.broadcast %cst_56 : f32 to vector<64x1xf32>
    %134 = arith.addf %130, %133 : vector<64x1xf32>
    %135 = math.rsqrt %134 : vector<64x1xf32>
    %136 = vector.broadcast %135 : vector<64x1xf32> to vector<64x32xf32>
    %137 = arith.mulf %132, %136 : vector<64x32xf32>
    %c0_57 = arith.constant 0 : index
    %c0_58 = arith.constant 0 : index
    %138 = vector.load %arg19[%c0_57, %c0_58] : memref<1x32xf32, #tpu.memory_space<vmem>>, vector<1x32xf32>
    %139 = vector.broadcast %138 : vector<1x32xf32> to vector<64x32xf32>
    %140 = arith.mulf %137, %139 : vector<64x32xf32>
    %c0_59 = arith.constant 0 : index
    %c0_60 = arith.constant 0 : index
    %141 = vector.load %arg20[%c0_59, %c0_60] : memref<1x32xf32, #tpu.memory_space<vmem>>, vector<1x32xf32>
    %142 = vector.broadcast %141 : vector<1x32xf32> to vector<64x32xf32>
    %143 = arith.addf %140, %142 : vector<64x32xf32>
    %c0_61 = arith.constant 0 : index
    %c0_62 = arith.constant 0 : index
    %144 = vector.load %arg15[%c0_61, %c0_62] : memref<32x128xf32, #tpu.memory_space<vmem>>, vector<32x128xf32>
    %cst_63 = arith.constant dense<0.000000e+00> : vector<64x128xf32>
    %145 = tpu.matmul %143, %144, %cst_63 {dimension_numbers = #tpu.dot_dimension_numbers<[1], [0], [0], [1], [0, 0, 1, 1], [], []>} : vector<64x32xf32>, vector<32x128xf32>, vector<64x128xf32> -> vector<64x128xf32>
    %c0_64 = arith.constant 0 : index
    %c0_65 = arith.constant 0 : index
    %146 = vector.load %arg16[%c0_64, %c0_65] : memref<1x128xf32, #tpu.memory_space<vmem>>, vector<1x128xf32>
    %147 = vector.broadcast %146 : vector<1x128xf32> to vector<64x128xf32>
    %148 = arith.addf %145, %147 : vector<64x128xf32>
    %149 = arith.mulf %148, %148 : vector<64x128xf32>
    %150 = arith.mulf %148, %149 : vector<64x128xf32>
    %cst_66 = arith.constant 4.471500e-02 : f32
    %151 = vector.broadcast %cst_66 : f32 to vector<64x128xf32>
    %152 = arith.mulf %151, %150 : vector<64x128xf32>
    %153 = arith.addf %148, %152 : vector<64x128xf32>
    %cst_67 = arith.constant 0.797884583 : f32
    %154 = vector.broadcast %cst_67 : f32 to vector<64x128xf32>
    %155 = arith.mulf %154, %153 : vector<64x128xf32>
    %156 = math.tanh %155 : vector<64x128xf32>
    %cst_68 = arith.constant 1.000000e+00 : f32
    %157 = vector.broadcast %cst_68 : f32 to vector<64x128xf32>
    %158 = arith.addf %157, %156 : vector<64x128xf32>
    %cst_69 = arith.constant 5.000000e-01 : f32
    %159 = vector.broadcast %cst_69 : f32 to vector<64x128xf32>
    %160 = arith.mulf %159, %158 : vector<64x128xf32>
    %161 = arith.mulf %148, %160 : vector<64x128xf32>
    %c0_70 = arith.constant 0 : index
    %c0_71 = arith.constant 0 : index
    %162 = vector.load %arg17[%c0_70, %c0_71] : memref<128x32xf32, #tpu.memory_space<vmem>>, vector<128x32xf32>
    %cst_72 = arith.constant dense<0.000000e+00> : vector<64x32xf32>
    %163 = tpu.matmul %161, %162, %cst_72 {dimension_numbers = #tpu.dot_dimension_numbers<[1], [0], [0], [1], [0, 0, 1, 1], [], []>} : vector<64x128xf32>, vector<128x32xf32>, vector<64x32xf32> -> vector<64x32xf32>
    %c0_73 = arith.constant 0 : index
    %c0_74 = arith.constant 0 : index
    %164 = vector.load %arg18[%c0_73, %c0_74] : memref<1x32xf32, #tpu.memory_space<vmem>>, vector<1x32xf32>
    %165 = vector.broadcast %164 : vector<1x32xf32> to vector<64x32xf32>
    %166 = arith.addf %163, %165 : vector<64x32xf32>
    %167 = arith.addf %143, %166 : vector<64x32xf32>
    %cst_75 = arith.constant dense<0.000000e+00> : vector<64xf32>
    %168 = vector.multi_reduction <add>, %167, %cst_75 [1] : vector<64x32xf32> to vector<64xf32>
    %169 = vector.shape_cast %168 : vector<64xf32> to vector<64x1xf32>
    %cst_76 = arith.constant 3.200000e+01 : f32
    %170 = vector.broadcast %cst_76 : f32 to vector<64x1xf32>
    %171 = arith.divf %169, %170 : vector<64x1xf32>
    %172 = vector.broadcast %171 : vector<64x1xf32> to vector<64x32xf32>
    %173 = arith.subf %167, %172 : vector<64x32xf32>
    %174 = arith.mulf %173, %173 : vector<64x32xf32>
    %cst_77 = arith.constant dense<0.000000e+00> : vector<64xf32>
    %175 = vector.multi_reduction <add>, %174, %cst_77 [1] : vector<64x32xf32> to vector<64xf32>
    %176 = vector.shape_cast %175 : vector<64xf32> to vector<64x1xf32>
    %cst_78 = arith.constant 3.200000e+01 : f32
    %177 = vector.broadcast %cst_78 : f32 to vector<64x1xf32>
    %178 = arith.divf %176, %177 : vector<64x1xf32>
    %179 = vector.broadcast %171 : vector<64x1xf32> to vector<64x32xf32>
    %180 = arith.subf %167, %179 : vector<64x32xf32>
    %cst_79 = arith.constant 9.99999974E-6 : f32
    %181 = vector.broadcast %cst_79 : f32 to vector<64x1xf32>
    %182 = arith.addf %178, %181 : vector<64x1xf32>
    %183 = math.rsqrt %182 : vector<64x1xf32>
    %184 = vector.broadcast %183 : vector<64x1xf32> to vector<64x32xf32>
    %185 = arith.mulf %180, %184 : vector<64x32xf32>
    %c0_80 = arith.constant 0 : index
    %c0_81 = arith.constant 0 : index
    %186 = vector.load %arg21[%c0_80, %c0_81] : memref<1x32xf32, #tpu.memory_space<vmem>>, vector<1x32xf32>
    %187 = vector.broadcast %186 : vector<1x32xf32> to vector<64x32xf32>
    %188 = arith.mulf %185, %187 : vector<64x32xf32>
    %c0_82 = arith.constant 0 : index
    %c0_83 = arith.constant 0 : index
    %189 = vector.load %arg22[%c0_82, %c0_83] : memref<1x32xf32, #tpu.memory_space<vmem>>, vector<1x32xf32>
    %190 = vector.broadcast %189 : vector<1x32xf32> to vector<64x32xf32>
    %191 = arith.addf %188, %190 : vector<64x32xf32>
    %192 = vector.extract_strided_slice %191 {offsets = [0, 0], sizes = [8, 32], strides = [1, 1]} : vector<64x32xf32> to vector<8x32xf32>
    %193 = vector.extract_strided_slice %191 {offsets = [8, 0], sizes = [8, 32], strides = [1, 1]} : vector<64x32xf32> to vector<8x32xf32>
    %194 = vector.extract_strided_slice %191 {offsets = [16, 0], sizes = [8, 32], strides = [1, 1]} : vector<64x32xf32> to vector<8x32xf32>
    %195 = vector.extract_strided_slice %191 {offsets = [24, 0], sizes = [8, 32], strides = [1, 1]} : vector<64x32xf32> to vector<8x32xf32>
    %196 = tpu.concatenate %192, %193, %194, %195 in 1 : vector<8x32xf32>, vector<8x32xf32>, vector<8x32xf32>, vector<8x32xf32> -> vector<8x128xf32>
    %197 = vector.extract_strided_slice %191 {offsets = [32, 0], sizes = [8, 32], strides = [1, 1]} : vector<64x32xf32> to vector<8x32xf32>
    %198 = vector.extract_strided_slice %191 {offsets = [40, 0], sizes = [8, 32], strides = [1, 1]} : vector<64x32xf32> to vector<8x32xf32>
    %199 = vector.extract_strided_slice %191 {offsets = [48, 0], sizes = [8, 32], strides = [1, 1]} : vector<64x32xf32> to vector<8x32xf32>
    %200 = vector.extract_strided_slice %191 {offsets = [56, 0], sizes = [8, 32], strides = [1, 1]} : vector<64x32xf32> to vector<8x32xf32>
    %201 = tpu.concatenate %197, %198, %199, %200 in 1 : vector<8x32xf32>, vector<8x32xf32>, vector<8x32xf32>, vector<8x32xf32> -> vector<8x128xf32>
    %202 = vector.shape_cast %196 : vector<8x128xf32> to vector<1x8x128xf32>
    %203 = vector.shape_cast %201 : vector<8x128xf32> to vector<1x8x128xf32>
    %204 = tpu.concatenate %202, %203 in 0 : vector<1x8x128xf32>, vector<1x8x128xf32> -> vector<2x8x128xf32>
    %c0_84 = arith.constant 0 : index
    %c0_85 = arith.constant 0 : index
    %205 = vector.load %arg4[%c0_84, %c0_85] : memref<8x128xf32, #tpu.memory_space<vmem>>, vector<8x128xf32>
    %206 = vector.shape_cast %205 : vector<8x128xf32> to vector<1x8x128xf32>
    %207 = vector.broadcast %206 : vector<1x8x128xf32> to vector<2x8x128xf32>
    %208 = arith.addf %204, %207 : vector<2x8x128xf32>
    %c0_86 = arith.constant 0 : index
    %c0_87 = arith.constant 0 : index
    %c0_88 = arith.constant 0 : index
    %209 = vector.load %arg3[%c0_86, %c0_87, %c0_88] : memref<2x8x128xf32, #tpu.memory_space<vmem>>, vector<2x8x128xf32>
    %210 = arith.addf %208, %209 : vector<2x8x128xf32>
    %c0_89 = arith.constant 0 : index
    %c0_90 = arith.constant 0 : index
    %c0_91 = arith.constant 0 : index
    %211 = vector.load %arg23[%c0_89, %c0_90, %c0_91] : memref<2x8x128xf32, #tpu.memory_space<vmem>>, vector<2x8x128xf32>
    tpu.vector_store %arg23[%c0_89, %c0_90, %c0_91], %210 {strides = array<i32>} : memref<2x8x128xf32, #tpu.memory_space<vmem>>, vector<2x8x128xf32>,
    return
  }
  func.func @transform_0(%arg0: i32) -> (i32, i32, i32) {
    %c0_i32 = arith.constant 0 : i32
    %c0_i32_0 = arith.constant 0 : i32
    %c0_i32_1 = arith.constant 0 : i32
    return %arg0, %c0_i32, %c0_i32_0 : i32, i32, i32
  }
  func.func @transform_1(%arg0: i32) -> (i32, i32, i32, i32) {
    %c0_i32 = arith.constant 0 : i32
    %c0_i32_0 = arith.constant 0 : i32
    %c0_i32_1 = arith.constant 0 : i32
    %c0_i32_2 = arith.constant 0 : i32
    return %arg0, %c0_i32, %c0_i32_0, %c0_i32_1 : i32, i32, i32, i32
  }
  func.func @transform_2(%arg0: i32) -> (i32, i32, i32) {
    %c0_i32 = arith.constant 0 : i32
    %c0_i32_0 = arith.constant 0 : i32
    %c0_i32_1 = arith.constant 0 : i32
    return %arg0, %c0_i32, %c0_i32_0 : i32, i32, i32
  }
  func.func @transform_3(%arg0: i32) -> (i32, i32) {
    %c0_i32 = arith.constant 0 : i32
    %c0_i32_0 = arith.constant 0 : i32
    %c0_i32_1 = arith.constant 0 : i32
    return %c0_i32, %c0_i32_0 : i32, i32
  }
  func.func @transform_4(%arg0: i32) -> (i32, i32) {
    %c0_i32 = arith.constant 0 : i32
    %c0_i32_0 = arith.constant 0 : i32
    %c0_i32_1 = arith.constant 0 : i32
    return %c0_i32, %c0_i32_0 : i32, i32
  }
  func.func @transform_5(%arg0: i32) -> (i32, i32) {
    %c0_i32 = arith.constant 0 : i32
    %c0_i32_0 = arith.constant 0 : i32
    %c0_i32_1 = arith.constant 0 : i32
    return %c0_i32, %c0_i32_0 : i32, i32
  }
  func.func @transform_6(%arg0: i32) -> (i32, i32) {
    %c0_i32 = arith.constant 0 : i32
    %c0_i32_0 = arith.constant 0 : i32
    %c0_i32_1 = arith.constant 0 : i32
    return %c0_i32, %c0_i32_0 : i32, i32
  }
  func.func @transform_7(%arg0: i32) -> (i32, i32) {
    %c0_i32 = arith.constant 0 : i32
    %c0_i32_0 = arith.constant 0 : i32
    %c0_i32_1 = arith.constant 0 : i32
    return %c0_i32, %c0_i32_0 : i32, i32
  }
  func.func @transform_8(%arg0: i32) -> (i32, i32) {
    %c0_i32 = arith.constant 0 : i32
    %c0_i32_0 = arith.constant 0 : i32
    %c0_i32_1 = arith.constant 0 : i32
    return %c0_i32, %c0_i32_0 : i32, i32
  }
  func.func @transform_9(%arg0: i32) -> (i32, i32) {
    %c0_i32 = arith.constant 0 : i32
    %c0_i32_0 = arith.constant 0 : i32
    %c0_i32_1 = arith.constant 0 : i32
    return %c0_i32, %c0_i32_0 : i32, i32
  }
  func.func @transform_10(%arg0: i32) -> (i32, i32) {
    %c0_i32 = arith.constant 0 : i32
    %c0_i32_0 = arith.constant 0 : i32
    %c0_i32_1 = arith.constant 0 : i32
    return %c0_i32, %c0_i32_0 : i32, i32
  }
  func.func @transform_11(%arg0: i32) -> (i32, i32) {
    %c0_i32 = arith.constant 0 : i32
    %c0_i32_0 = arith.constant 0 : i32
    %c0_i32_1 = arith.constant 0 : i32
    return %c0_i32, %c0_i32_0 : i32, i32
  }
  func.func @transform_12(%arg0: i32) -> (i32, i32) {
    %c0_i32 = arith.constant 0 : i32
    %c0_i32_0 = arith.constant 0 : i32
    %c0_i32_1 = arith.constant 0 : i32
    return %c0_i32, %c0_i32_0 : i32, i32
  }
  func.func @transform_13(%arg0: i32) -> (i32, i32) {
    %c0_i32 = arith.constant 0 : i32
    %c0_i32_0 = arith.constant 0 : i32
    %c0_i32_1 = arith.constant 0 : i32
    return %c0_i32, %c0_i32_0 : i32, i32
  }
  func.func @transform_14(%arg0: i32) -> (i32, i32) {
    %c0_i32 = arith.constant 0 : i32
    %c0_i32_0 = arith.constant 0 : i32
    %c0_i32_1 = arith.constant 0 : i32
    return %c0_i32, %c0_i32_0 : i32, i32
  }
  func.func @transform_15(%arg0: i32) -> (i32, i32) {
    %c0_i32 = arith.constant 0 : i32
    %c0_i32_0 = arith.constant 0 : i32
    %c0_i32_1 = arith.constant 0 : i32
    return %c0_i32, %c0_i32_0 : i32, i32
  }
  func.func @transform_16(%arg0: i32) -> (i32, i32) {
    %c0_i32 = arith.constant 0 : i32
    %c0_i32_0 = arith.constant 0 : i32
    %c0_i32_1 = arith.constant 0 : i32
    return %c0_i32, %c0_i32_0 : i32, i32
  }
  func.func @transform_17(%arg0: i32) -> (i32, i32) {
    %c0_i32 = arith.constant 0 : i32
    %c0_i32_0 = arith.constant 0 : i32
    %c0_i32_1 = arith.constant 0 : i32
    return %c0_i32, %c0_i32_0 : i32, i32
  }
  func.func @transform_18(%arg0: i32) -> (i32, i32) {
    %c0_i32 = arith.constant 0 : i32
    %c0_i32_0 = arith.constant 0 : i32
    %c0_i32_1 = arith.constant 0 : i32
    return %c0_i32, %c0_i32_0 : i32, i32
  }
  func.func @transform_19(%arg0: i32) -> (i32, i32) {
    %c0_i32 = arith.constant 0 : i32
    %c0_i32_0 = arith.constant 0 : i32
    %c0_i32_1 = arith.constant 0 : i32
    return %c0_i32, %c0_i32_0 : i32, i32
  }
  func.func @transform_20(%arg0: i32) -> (i32, i32) {
    %c0_i32 = arith.constant 0 : i32
    %c0_i32_0 = arith.constant 0 : i32
    %c0_i32_1 = arith.constant 0 : i32
    return %c0_i32, %c0_i32_0 : i32, i32
  }
  func.func @transform_21(%arg0: i32) -> (i32, i32) {
    %c0_i32 = arith.constant 0 : i32
    %c0_i32_0 = arith.constant 0 : i32
    %c0_i32_1 = arith.constant 0 : i32
    return %c0_i32, %c0_i32_0 : i32, i32
  }
  func.func @transform_22(%arg0: i32) -> (i32, i32, i32) {
    %c0_i32 = arith.constant 0 : i32
    %c0_i32_0 = arith.constant 0 : i32
    %c0_i32_1 = arith.constant 0 : i32
    return %arg0, %c0_i32, %c0_i32_0 : i32, i32, i32
  }
}

</mosaic_0001>

<llo_original>
// kernel: tpu_custom_call.1
$region0: #{tpu_custom_call.1}
  #allocation0 [shape = 'u32[]', space=smem, size = 0x4, offset = 0x4, fixed_abs, tag = 'smem constant byte address 0x4 - core index']
  #allocation1 [shape = 'u32[72,128]{1,0:T(1,128)}', space=vmem, size = 0x9000, scoped, tag = 'internal scratch']
  %s0 = inlined_call_operand.vmem [shape: f32[2,32,1], index: 0, kind: input, shape index: {}]
  %s1 = inlined_call_operand.hbm [shape: f32[2,4,1,8], index: 1, kind: input, shape index: {}]
  %s2 = inlined_call_operand.hbm [shape: f32[2,8,128], index: 2, kind: input, shape index: {}]
  %s3 = inlined_call_operand.hbm [shape: f32[8,128], index: 3, kind: input, shape index: {}]
  %s4 = inlined_call_operand.vmem [shape: f32[32,32], index: 4, kind: input, shape index: {}]
  %s5 = inlined_call_operand.vmem [shape: f32[1,32], index: 5, kind: input, shape index: {}]
  %s6 = inlined_call_operand.vmem [shape: f32[32,32], index: 6, kind: input, shape index: {}]
  %s7 = inlined_call_operand.vmem [shape: f32[1,32], index: 7, kind: input, shape index: {}]
  %s8 = inlined_call_operand.vmem [shape: f32[32,32], index: 8, kind: input, shape index: {}]
  %s9 = inlined_call_operand.vmem [shape: f32[1,32], index: 9, kind: input, shape index: {}]
  %s10 = inlined_call_operand.vmem [shape: f32[32,32], index: 10, kind: input, shape index: {}]
  %s11 = inlined_call_operand.vmem [shape: f32[1,32], index: 11, kind: input, shape index: {}]
  %s12 = inlined_call_operand.vmem [shape: f32[32,32], index: 12, kind: input, shape index: {}]
  %s13 = inlined_call_operand.vmem [shape: f32[1,32], index: 13, kind: input, shape index: {}]
  %s14 = inlined_call_operand.vmem [shape: f32[32,128], index: 14, kind: input, shape index: {}]
  %s15 = inlined_call_operand.vmem [shape: f32[1,128], index: 15, kind: input, shape index: {}]
  %s16 = inlined_call_operand.vmem [shape: f32[128,32], index: 16, kind: input, shape index: {}]
  %s17 = inlined_call_operand.vmem [shape: f32[1,32], index: 17, kind: input, shape index: {}]
  %s18 = inlined_call_operand.vmem [shape: f32[1,32], index: 18, kind: input, shape index: {}]
  %s19 = inlined_call_operand.vmem [shape: f32[1,32], index: 19, kind: input, shape index: {}]
  %s20 = inlined_call_operand.vmem [shape: f32[1,32], index: 20, kind: input, shape index: {}]
  %s21 = inlined_call_operand.vmem [shape: f32[1,32], index: 21, kind: input, shape index: {}]
  %s22 = inlined_call_operand.hbm [shape: f32[2,8,128], index: 22, kind: output, shape index: {}]
  %s23 = sld [smem:[#allocation0]]
  $region110: #{tpu_custom_call.1} parent=0
    _
  %s25 = ssub.s32 1, %s23
  %s26 = scalar_select 0, %s25, %s23
  $region1: #{tpu_custom_call.1} parent=0
    #allocation2 [shape = 'u8[4096]{0}', space=vmem, size = 0x1000, scoped, tag = 'input window, operand 1, single buffered']
    #allocation3 [shape = 's32[1]{0}', space=sflag, size = 0x4, scoped, tag = 'scoped memory for tpu_custom_call.1']
    #allocation4 [shape = 's32[1]{0}', space=sflag, size = 0x4, scoped, tag = 'scoped memory for tpu_custom_call.1']
    #allocation5 [shape = 'u8[8192]{0}', space=vmem, size = 0x2000, scoped, tag = 'input window, operand 2, single buffered']
    #allocation6 [shape = 's32[1]{0}', space=sflag, size = 0x4, scoped, tag = 'scoped memory for tpu_custom_call.1']
    #allocation7 [shape = 'u8[4096]{0}', space=vmem, size = 0x1000, scoped, tag = 'input window, operand 3, single buffered']
    #allocation8 [shape = 'u8[8192]{0}', space=vmem, size = 0x2000, scoped, tag = 'output window, operand 0, single buffered']
    %27 = vsyncpa [#allocation3], 0
    %28 = vsyncpa [#allocation6], 0
    %29 = vsyncpa [#allocation4], 0
    // Predicated region
    $region2: #{tpu_custom_call.1} parent=1 // pred_check
      _
    $region3: #{tpu_custom_call.1} parent=1 // pred_check_branch
      %31 = sbr.rel (0) target = $region5
    $region4: #{tpu_custom_call.1} parent=1 // pred_region
      _
    $region5: #{tpu_custom_call.1} parent=1 // pred_fallthru
      _
    // Predicated region
    $region6: #{tpu_custom_call.1} parent=1 // pred_check
      _
    $region7: #{tpu_custom_call.1} parent=1 // pred_check_branch
      %33 = sbr.rel (0) target = $region9
    $region8: #{tpu_custom_call.1} parent=1 // pred_region
      %35 = vsyncadd [#allocation3], 0
      %s36 = sshll.u32 %s1, 4
      %s37 = int_to_ptr.hbm [resolvable:$true] %s36
      %s38 = sshll.u32 [#allocation2], 4
      %s39 = int_to_ptr.vmem [resolvable:$true] %s38
      %44 = dma.hbm_to_vmem [thread:$0]  %s37, 128, %s39, [#allocation3], 16, 16, 1
    $region9: #{tpu_custom_call.1} parent=1 // pred_fallthru
      _
    // Predicated region
    $region10: #{tpu_custom_call.1} parent=1 // pred_check
      _
    $region11: #{tpu_custom_call.1} parent=1 // pred_check_branch
      %46 = sbr.rel (0) target = $region13
    $region12: #{tpu_custom_call.1} parent=1 // pred_region
      %48 = vsyncadd [#allocation6], 0
      %s49 = sshll.u32 %s2, 4
      %s50 = int_to_ptr.hbm [resolvable:$true] %s49
      %s51 = sshll.u32 [#allocation5], 4
      %s52 = int_to_ptr.vmem [resolvable:$true] %s51
      %57 = dma.hbm_to_vmem [thread:$0]  %s50, 256, %s52, [#allocation6], 128, 128, 8
    $region13: #{tpu_custom_call.1} parent=1 // pred_fallthru
      _
    // Predicated region
    $region14: #{tpu_custom_call.1} parent=1 // pred_check
      _
    $region15: #{tpu_custom_call.1} parent=1 // pred_check_branch
      %59 = sbr.rel (0) target = $region17
    $region16: #{tpu_custom_call.1} parent=1 // pred_region
      %61 = vsyncadd [#allocation6], 0
      %s63 = sshll.u32 %s3, 4
      %s64 = int_to_ptr.hbm [resolvable:$true] %s63
      %s65 = sshll.u32 [#allocation7], 4
      %s66 = int_to_ptr.vmem [resolvable:$true] %s65
      %68 = dma.hbm_to_vmem [thread:$0]  %s64, 128, %s66, [#allocation6]
    $region17: #{tpu_custom_call.1} parent=1 // pred_fallthru
      _
    // Predicated region
    $region18: #{tpu_custom_call.1} parent=1 // pred_check
      _
    $region19: #{tpu_custom_call.1} parent=1 // pred_check_branch
      %70 = sbr.rel (0) target = $region21
    $region20: #{tpu_custom_call.1} parent=1 // pred_region
      _
    $region21: #{tpu_custom_call.1} parent=1 // pred_fallthru
      _
    // Predicated region
    $region22: #{tpu_custom_call.1} parent=1 // pred_check
      _
    $region23: #{tpu_custom_call.1} parent=1 // pred_check_branch
      %72 = sbr.rel (0) target = $region25
    $region24: #{tpu_custom_call.1} parent=1 // pred_region
      _
    $region25: #{tpu_custom_call.1} parent=1 // pred_fallthru
      _
    // Predicated region
    $region26: #{tpu_custom_call.1} parent=1 // pred_check
      _
    $region27: #{tpu_custom_call.1} parent=1 // pred_check_branch
      %74 = sbr.rel (0) target = $region29
    $region28: #{tpu_custom_call.1} parent=1 // pred_region
      _
    $region29: #{tpu_custom_call.1} parent=1 // pred_fallthru
      _
    // Predicated region
    $region30: #{tpu_custom_call.1} parent=1 // pred_check
      _
    $region31: #{tpu_custom_call.1} parent=1 // pred_check_branch
      %76 = sbr.rel (0) target = $region33
    $region32: #{tpu_custom_call.1} parent=1 // pred_region
      _
    $region33: #{tpu_custom_call.1} parent=1 // pred_fallthru
      _
    // Predicated region
    $region34: #{tpu_custom_call.1} parent=1 // pred_check
      _
    $region35: #{tpu_custom_call.1} parent=1 // pred_check_branch
      %78 = sbr.rel (0) target = $region37
    $region36: #{tpu_custom_call.1} parent=1 // pred_region
      _
    $region37: #{tpu_custom_call.1} parent=1 // pred_fallthru
      _
    // Predicated region
    $region38: #{tpu_custom_call.1} parent=1 // pred_check
      _
    $region39: #{tpu_custom_call.1} parent=1 // pred_check_branch
      %80 = sbr.rel (0) target = $region41
    $region40: #{tpu_custom_call.1} parent=1 // pred_region
      _
    $region41: #{tpu_custom_call.1} parent=1 // pred_fallthru
      _
    // Predicated region
    $region42: #{tpu_custom_call.1} parent=1 // pred_check
      _
    $region43: #{tpu_custom_call.1} parent=1 // pred_check_branch
      %82 = sbr.rel (0) target = $region45
    $region44: #{tpu_custom_call.1} parent=1 // pred_region
      _
    $region45: #{tpu_custom_call.1} parent=1 // pred_fallthru
      _
    // Predicated region
    $region46: #{tpu_custom_call.1} parent=1 // pred_check
      _
    $region47: #{tpu_custom_call.1} parent=1 // pred_check_branch
      %84 = sbr.rel (0) target = $region49
    $region48: #{tpu_custom_call.1} parent=1 // pred_region
      _
    $region49: #{tpu_custom_call.1} parent=1 // pred_fallthru
      _
    // Predicated region
    $region50: #{tpu_custom_call.1} parent=1 // pred_check
      _
    $region51: #{tpu_custom_call.1} parent=1 // pred_check_branch
      %86 = sbr.rel (0) target = $region53
    $region52: #{tpu_custom_call.1} parent=1 // pred_region
      _
    $region53: #{tpu_custom_call.1} parent=1 // pred_fallthru
      _
    // Predicated region
    $region54: #{tpu_custom_call.1} parent=1 // pred_check
      _
    $region55: #{tpu_custom_call.1} parent=1 // pred_check_branch
      %88 = sbr.rel (0) target = $region57
    $region56: #{tpu_custom_call.1} parent=1 // pred_region
      _
    $region57: #{tpu_custom_call.1} parent=1 // pred_fallthru
      _
    // Predicated region
    $region58: #{tpu_custom_call.1} parent=1 // pred_check
      _
    $region59: #{tpu_custom_call.1} parent=1 // pred_check_branch
      %90 = sbr.rel (0) target = $region61
    $region60: #{tpu_custom_call.1} parent=1 // pred_region
      _
    $region61: #{tpu_custom_call.1} parent=1 // pred_fallthru
      _
    // Predicated region
    $region62: #{tpu_custom_call.1} parent=1 // pred_check
      _
    $region63: #{tpu_custom_call.1} parent=1 // pred_check_branch
      %92 = sbr.rel (0) target = $region65
    $region64: #{tpu_custom_call.1} parent=1 // pred_region
      _
    $region65: #{tpu_custom_call.1} parent=1 // pred_fallthru
      _
    // Predicated region
    $region66: #{tpu_custom_call.1} parent=1 // pred_check
      _
    $region67: #{tpu_custom_call.1} parent=1 // pred_check_branch
      %94 = sbr.rel (0) target = $region69
    $region68: #{tpu_custom_call.1} parent=1 // pred_region
      _
    $region69: #{tpu_custom_call.1} parent=1 // pred_fallthru
      _
    // Predicated region
    $region70: #{tpu_custom_call.1} parent=1 // pred_check
      _
    $region71: #{tpu_custom_call.1} parent=1 // pred_check_branch
      %96 = sbr.rel (0) target = $region73
    $region72: #{tpu_custom_call.1} parent=1 // pred_region
      _
    $region73: #{tpu_custom_call.1} parent=1 // pred_fallthru
      _
    // Predicated region
    $region74: #{tpu_custom_call.1} parent=1 // pred_check
      _
    $region75: #{tpu_custom_call.1} parent=1 // pred_check_branch
      %98 = sbr.rel (0) target = $region77
    $region76: #{tpu_custom_call.1} parent=1 // pred_region
      _
    $region77: #{tpu_custom_call.1} parent=1 // pred_fallthru
      _
    // Predicated region
    $region78: #{tpu_custom_call.1} parent=1 // pred_check
      _
    $region79: #{tpu_custom_call.1} parent=1 // pred_check_branch
      %100 = sbr.rel (0) target = $region81
    $region80: #{tpu_custom_call.1} parent=1 // pred_region
      _
    $region81: #{tpu_custom_call.1} parent=1 // pred_fallthru
      _
    // Predicated region
    $region82: #{tpu_custom_call.1} parent=1 // pred_check
      _
    $region83: #{tpu_custom_call.1} parent=1 // pred_check_branch
      %102 = sbr.rel (0) target = $region85
    $region84: #{tpu_custom_call.1} parent=1 // pred_region
      _
    $region85: #{tpu_custom_call.1} parent=1 // pred_fallthru
      _
    // Predicated region
    $region86: #{tpu_custom_call.1} parent=1 // pred_check
      _
    $region87: #{tpu_custom_call.1} parent=1 // pred_check_branch
      %104 = sbr.rel (0) target = $region89
    $region88: #{tpu_custom_call.1} parent=1 // pred_region
      _
    $region89: #{tpu_custom_call.1} parent=1 // pred_fallthru
      _
    // Predicated region
    $region90: #{tpu_custom_call.1} parent=1 // pred_check
      _
    $region91: #{tpu_custom_call.1} parent=1 // pred_check_branch
      %106 = sbr.rel (0) target = $region93
    $region92: #{tpu_custom_call.1} parent=1 // pred_region
      %108 = dma.done [#allocation3], 128
    $region93: #{tpu_custom_call.1} parent=1 // pred_fallthru
      _
    // Predicated region
    $region94: #{tpu_custom_call.1} parent=1 // pred_check
      _
    $region95: #{tpu_custom_call.1} parent=1 // pred_check_branch
      %110 = sbr.rel (0) target = $region97
    $region96: #{tpu_custom_call.1} parent=1 // pred_region
      %112 = dma.done [#allocation6], 256
    $region97: #{tpu_custom_call.1} parent=1 // pred_fallthru
      _
    // Predicated region
    $region98: #{tpu_custom_call.1} parent=1 // pred_check
      _
    $region99: #{tpu_custom_call.1} parent=1 // pred_check_branch
      %114 = sbr.rel (0) target = $region101
    $region100: #{tpu_custom_call.1} parent=1 // pred_region
      %116 = dma.done [#allocation6], 128
    $region101: #{tpu_custom_call.1} parent=1 // pred_fallthru
      _
    %v117 = vld [vmem:[%s0] sm:$0xff]
    %v118 = vld [vmem:[%s0 + $0x8] sm:$0xff]
    %v119 = vld [vmem:[%s0 + $0x10] sm:$0xff]
    %v120 = vld [vmem:[%s0 + $0x18] sm:$0xff]
    %v121 = vld [vmem:[%s0 + $0x20] sm:$0xff]
    %v122 = vld [vmem:[%s0 + $0x28] sm:$0xff]
    %v123 = vld [vmem:[%s0 + $0x30] sm:$0xff]
    %v124 = vld [vmem:[%s0 + $0x38] sm:$0xff]
    %v125 = vld [vmem:[%s5] sm:$0x1]
    %127 = vset.pattern.permute.xlu0 0
    %128 = vperm.xlu0 %127, %v117
    %v129 = vpop.permute.xlu0 %128
    %132 = vset.pattern.permute.xlu0 0
    %133 = vperm.xlu0 %132, %v118
    %v134 = vpop.permute.xlu0 %133
    %137 = vset.pattern.permute.xlu0 0
    %138 = vperm.xlu0 %137, %v119
    %v139 = vpop.permute.xlu0 %138
    %142 = vset.pattern.permute.xlu0 0
    %143 = vperm.xlu0 %142, %v120
    %v144 = vpop.permute.xlu0 %143
    %147 = vset.pattern.permute.xlu0 0
    %148 = vperm.xlu0 %147, %v121
    %v149 = vpop.permute.xlu0 %148
    %152 = vset.pattern.permute.xlu0 0
    %153 = vperm.xlu0 %152, %v122
    %v154 = vpop.permute.xlu0 %153
    %157 = vset.pattern.permute.xlu0 0
    %158 = vperm.xlu0 %157, %v123
    %v159 = vpop.permute.xlu0 %158
    %162 = vset.pattern.permute.xlu0 0
    %163 = vperm.xlu0 %162, %v124
    %v164 = vpop.permute.xlu0 %163
    %v167 = vperm.slane %v125, 0
    %v169 = vmul.f32 %v129, %v167
    %v170 = vmul.f32 %v134, %v167
    %v171 = vmul.f32 %v139, %v167
    %v172 = vmul.f32 %v144, %v167
    %v173 = vmul.f32 %v149, %v167
    %v174 = vmul.f32 %v154, %v167
    %v175 = vmul.f32 %v159, %v167
    %v176 = vmul.f32 %v164, %v167
    %v177 = vld [vmem:[%s4] sm:$0xff]
    %v178 = vld [vmem:[%s4 + $0x8] sm:$0xff]
    %v179 = vld [vmem:[%s4 + $0x10] sm:$0xff]
    %v180 = vld [vmem:[%s4 + $0x18] sm:$0xff]
    %v181 = vadd.f32 %v169, %v177
    %v182 = vadd.f32 %v170, %v178
    %v183 = vadd.f32 %v171, %v179
    %v184 = vadd.f32 %v172, %v180
    %v185 = vadd.f32 %v173, %v177
    %v186 = vadd.f32 %v174, %v178
    %v187 = vadd.f32 %v175, %v179
    %v188 = vadd.f32 %v176, %v180
    %v189 = vld [vmem:[%s6] sm:$0xff]
    %v190 = vld [vmem:[%s6 + $0x8] sm:$0xff]
    %v191 = vld [vmem:[%s6 + $0x10] sm:$0xff]
    %v192 = vld [vmem:[%s6 + $0x18] sm:$0xff]
    %v193 = vld [vmem:[%s7] sm:$0x1]
    %v195 = vperm.slane %v193, 0
    %vm197 = vcmask 261120
    %v199 = vsel %vm197, %v181, 0
    %v202 = vsel %vm197, %v182, 0
    %v205 = vsel %vm197, %v183, 0
    %v208 = vsel %vm197, %v184, 0
    %v211 = vsel %vm197, %v185, 0
    %v214 = vsel %vm197, %v186, 0
    %v217 = vsel %vm197, %v187, 0
    %v220 = vsel %vm197, %v188, 0
    %222 = vmatpush.msra.mxu0 0.0
    %223 = vmatpush.msra.mxu0 0.0
    %224 = vmatpush.msra.mxu0 0.0
    %225 = vmatpush.msra.mxu0 0.0
    %226 = vmatpush.msra.mxu0 0.0
    %227 = vmatpush.msra.mxu0 0.0
    %228 = vmatpush.msra.mxu0 0.0
    %229 = vmatpush.msra.mxu0 0.0
    %230 = vmatpush.msra.mxu0 0.0
    %231 = vmatpush.msra.mxu0 0.0
    %232 = vmatpush.msra.mxu0 0.0
    %233 = vmatpush.msra.mxu0 0.0
    %234 = vmatpush.msra.mxu0 %v192
    %235 = vmatpush.msra.mxu0 %v191
    %236 = vmatpush.msra.mxu0 %v190
    %237 = vmatpush.msra.mxu0 %v189
    %238 = vmatmul.f32.gmra.mxu0 %v199
    %v239 = vpop.f32.mrf.mxu0
    %v240 = vadd.f32 %v195, %v239
    %241 = vmatmul.f32.gmra.mxu0 %v202
    %v242 = vpop.f32.mrf.mxu0
    %v243 = vadd.f32 %v195, %v242
    %244 = vmatmul.f32.gmra.mxu0 %v205
    %v245 = vpop.f32.mrf.mxu0
    %v246 = vadd.f32 %v195, %v245
    %247 = vmatmul.f32.gmra.mxu0 %v208
    %v248 = vpop.f32.mrf.mxu0
    %v249 = vadd.f32 %v195, %v248
    %250 = vmatmul.f32.gmra.mxu0 %v211
    %v251 = vpop.f32.mrf.mxu0
    %v252 = vadd.f32 %v195, %v251
    %253 = vmatmul.f32.gmra.mxu0 %v214
    %v254 = vpop.f32.mrf.mxu0
    %v255 = vadd.f32 %v195, %v254
    %256 = vmatmul.f32.gmra.mxu0 %v217
    %v257 = vpop.f32.mrf.mxu0
    %v258 = vadd.f32 %v195, %v257
    %259 = vmatmul.f32.gmra.mxu0 %v220
    %v260 = vpop.f32.mrf.mxu0
    %v261 = vadd.f32 %v195, %v260
    %262 = vdwg.mxu0
    %v263 = vld [vmem:[%s8] sm:$0xff]
    %v264 = vld [vmem:[%s8 + $0x8] sm:$0xff]
    %v265 = vld [vmem:[%s8 + $0x10] sm:$0xff]
    %v266 = vld [vmem:[%s8 + $0x18] sm:$0xff]
    %v267 = vld [vmem:[%s9] sm:$0x1]
    %v269 = vperm.slane %v267, 0
    %271 = vmatpush.msra.mxu0 0.0
    %272 = vmatpush.msra.mxu0 0.0
    %273 = vmatpush.msra.mxu0 0.0
    %274 = vmatpush.msra.mxu0 0.0
    %275 = vmatpush.msra.mxu0 0.0
    %276 = vmatpush.msra.mxu0 0.0
    %277 = vmatpush.msra.mxu0 0.0
    %278 = vmatpush.msra.mxu0 0.0
    %279 = vmatpush.msra.mxu0 0.0
    %280 = vmatpush.msra.mxu0 0.0
    %281 = vmatpush.msra.mxu0 0.0
    %282 = vmatpush.msra.mxu0 0.0
    %283 = vmatpush.msra.mxu0 %v266
    %284 = vmatpush.msra.mxu0 %v265
    %285 = vmatpush.msra.mxu0 %v264
    %286 = vmatpush.msra.mxu0 %v263
    %287 = vmatmul.f32.gmra.mxu0 %v199
    %v288 = vpop.f32.mrf.mxu0
    %v289 = vadd.f32 %v269, %v288
    %290 = vmatmul.f32.gmra.mxu0 %v202
    %v291 = vpop.f32.mrf.mxu0
    %v292 = vadd.f32 %v269, %v291
    %293 = vmatmul.f32.gmra.mxu0 %v205
    %v294 = vpop.f32.mrf.mxu0
    %v295 = vadd.f32 %v269, %v294
    %296 = vmatmul.f32.gmra.mxu0 %v208
    %v297 = vpop.f32.mrf.mxu0
    %v298 = vadd.f32 %v269, %v297
    %299 = vmatmul.f32.gmra.mxu0 %v211
    %v300 = vpop.f32.mrf.mxu0
    %v301 = vadd.f32 %v269, %v300
    %302 = vmatmul.f32.gmra.mxu0 %v214
    %v303 = vpop.f32.mrf.mxu0
    %v304 = vadd.f32 %v269, %v303
    %305 = vmatmul.f32.gmra.mxu0 %v217
    %v306 = vpop.f32.mrf.mxu0
    %v307 = vadd.f32 %v269, %v306
    %308 = vmatmul.f32.gmra.mxu0 %v220
    %v309 = vpop.f32.mrf.mxu0
    %v310 = vadd.f32 %v269, %v309
    %311 = vdwg.mxu0
    %v312 = vld [vmem:[%s10] sm:$0xff]
    %v313 = vld [vmem:[%s10 + $0x8] sm:$0xff]
    %v314 = vld [vmem:[%s10 + $0x10] sm:$0xff]
    %v315 = vld [vmem:[%s10 + $0x18] sm:$0xff]
    %v316 = vld [vmem:[%s11] sm:$0x1]
    %v318 = vperm.slane %v316, 0
    %320 = vmatpush.msra.mxu0 0.0
    %321 = vmatpush.msra.mxu0 0.0
    %322 = vmatpush.msra.mxu0 0.0
    %323 = vmatpush.msra.mxu0 0.0
    %324 = vmatpush.msra.mxu0 0.0
    %325 = vmatpush.msra.mxu0 0.0
    %326 = vmatpush.msra.mxu0 0.0
    %327 = vmatpush.msra.mxu0 0.0
    %328 = vmatpush.msra.mxu0 0.0
    %329 = vmatpush.msra.mxu0 0.0
    %330 = vmatpush.msra.mxu0 0.0
    %331 = vmatpush.msra.mxu0 0.0
    %332 = vmatpush.msra.mxu0 %v315
    %333 = vmatpush.msra.mxu0 %v314
    %334 = vmatpush.msra.mxu0 %v313
    %335 = vmatpush.msra.mxu0 %v312
    %336 = vmatmul.f32.gmra.mxu0 %v199
    %v337 = vpop.f32.mrf.mxu0
    %v338 = vadd.f32 %v318, %v337
    %339 = vmatmul.f32.gmra.mxu0 %v202
    %v340 = vpop.f32.mrf.mxu0
    %v341 = vadd.f32 %v318, %v340
    %342 = vmatmul.f32.gmra.mxu0 %v205
    %v343 = vpop.f32.mrf.mxu0
    %v344 = vadd.f32 %v318, %v343
    %345 = vmatmul.f32.gmra.mxu0 %v208
    %v346 = vpop.f32.mrf.mxu0
    %v347 = vadd.f32 %v318, %v346
    %348 = vmatmul.f32.gmra.mxu0 %v211
    %v349 = vpop.f32.mrf.mxu0
    %v350 = vadd.f32 %v318, %v349
    %351 = vmatmul.f32.gmra.mxu0 %v214
    %v352 = vpop.f32.mrf.mxu0
    %v353 = vadd.f32 %v318, %v352
    %354 = vmatmul.f32.gmra.mxu0 %v217
    %v355 = vpop.f32.mrf.mxu0
    %v356 = vadd.f32 %v318, %v355
    %357 = vmatmul.f32.gmra.mxu0 %v220
    %v358 = vpop.f32.mrf.mxu0
    %v359 = vadd.f32 %v318, %v358
    %360 = vdwg.mxu0
    %v361 = vld [vmem:[#allocation2] sm:$0x1]
    %v362 = vld [vmem:[#allocation2 + $0x1] sm:$0x1]
    %v363 = vld [vmem:[#allocation2 + $0x2] sm:$0x1]
    %v364 = vld [vmem:[#allocation2 + $0x3] sm:$0x1]
    %v365 = vld [vmem:[#allocation2 + $0x4] sm:$0x1]
    %v366 = vld [vmem:[#allocation2 + $0x5] sm:$0x1]
    %v367 = vld [vmem:[#allocation2 + $0x6] sm:$0x1]
    %v368 = vld [vmem:[#allocation2 + $0x7] sm:$0x1]
    %vm369 = vcmp.gt.f32.partialorder %v361, 0.0
    %vm370 = vcmp.gt.f32.partialorder %v362, 0.0
    %vm371 = vcmp.gt.f32.partialorder %v363, 0.0
    %vm372 = vcmp.gt.f32.partialorder %v364, 0.0
    %vm373 = vcmp.gt.f32.partialorder %v365, 0.0
    %vm374 = vcmp.gt.f32.partialorder %v366, 0.0
    %vm375 = vcmp.gt.f32.partialorder %v367, 0.0
    %vm376 = vcmp.gt.f32.partialorder %v368, 0.0
    %v377 = vsel %vm369, 0.0, -1e+09
    %v378 = vsel %vm370, 0.0, -1e+09
    %v379 = vsel %vm371, 0.0, -1e+09
    %v380 = vsel %vm372, 0.0, -1e+09
    %v381 = vsel %vm373, 0.0, -1e+09
    %v382 = vsel %vm374, 0.0, -1e+09
    %v383 = vsel %vm375, 0.0, -1e+09
    %v384 = vsel %vm376, 0.0, -1e+09
    %vm385 = vcmask 64512
    %v387 = vsel %vm385, %v240, 0
    %v390 = vsel %vm385, %v289, 0
    %392 = vmatpush.xpose.msra.mxu0 0.0
    %393 = vmatpush.xpose.msra.mxu0 0.0
    %394 = vmatpush.xpose.msra.mxu0 0.0
    %395 = vmatpush.xpose.msra.mxu0 0.0
    %396 = vmatpush.xpose.msra.mxu0 0.0
    %397 = vmatpush.xpose.msra.mxu0 0.0
    %398 = vmatpush.xpose.msra.mxu0 0.0
    %399 = vmatpush.xpose.msra.mxu0 0.0
    %400 = vmatpush.xpose.msra.mxu0 0.0
    %401 = vmatpush.xpose.msra.mxu0 0.0
    %402 = vmatpush.xpose.msra.mxu0 0.0
    %403 = vmatpush.xpose.msra.mxu0 0.0
    %404 = vmatpush.xpose.msra.mxu0 0.0
    %405 = vmatpush.xpose.msra.mxu0 0.0
    %406 = vmatpush.xpose.msra.mxu0 0.0
    %407 = vmatpush.xpose.msra.mxu0 %v390
    %408 = vmatmul.f32.gmra.mxu0 %v387
    %v409 = vpop.f32.mrf.mxu0
    %v410 = vadd.f32 0.0, %v409
    %411 = vdwg.mxu0
    %v413 = vsel %vm385, %v243, 0
    %v416 = vsel %vm385, %v292, 0
    %418 = vmatpush.xpose.msra.mxu0 0.0
    %419 = vmatpush.xpose.msra.mxu0 0.0
    %420 = vmatpush.xpose.msra.mxu0 0.0
    %421 = vmatpush.xpose.msra.mxu0 0.0
    %422 = vmatpush.xpose.msra.mxu0 0.0
    %423 = vmatpush.xpose.msra.mxu0 0.0
    %424 = vmatpush.xpose.msra.mxu0 0.0
    %425 = vmatpush.xpose.msra.mxu0 0.0
    %426 = vmatpush.xpose.msra.mxu0 0.0
    %427 = vmatpush.xpose.msra.mxu0 0.0
    %428 = vmatpush.xpose.msra.mxu0 0.0
    %429 = vmatpush.xpose.msra.mxu0 0.0
    %430 = vmatpush.xpose.msra.mxu0 0.0
    %431 = vmatpush.xpose.msra.mxu0 0.0
    %432 = vmatpush.xpose.msra.mxu0 0.0
    %433 = vmatpush.xpose.msra.mxu0 %v416
    %434 = vmatmul.f32.gmra.mxu0 %v413
    %v435 = vpop.f32.mrf.mxu0
    %v436 = vadd.f32 0.0, %v435
    %437 = vdwg.mxu0
    %v439 = vsel %vm385, %v246, 0
    %v442 = vsel %vm385, %v295, 0
    %444 = vmatpush.xpose.msra.mxu0 0.0
    %445 = vmatpush.xpose.msra.mxu0 0.0
    %446 = vmatpush.xpose.msra.mxu0 0.0
    %447 = vmatpush.xpose.msra.mxu0 0.0
    %448 = vmatpush.xpose.msra.mxu0 0.0
    %449 = vmatpush.xpose.msra.mxu0 0.0
    %450 = vmatpush.xpose.msra.mxu0 0.0
    %451 = vmatpush.xpose.msra.mxu0 0.0
    %452 = vmatpush.xpose.msra.mxu0 0.0
    %453 = vmatpush.xpose.msra.mxu0 0.0
    %454 = vmatpush.xpose.msra.mxu0 0.0
    %455 = vmatpush.xpose.msra.mxu0 0.0
    %456 = vmatpush.xpose.msra.mxu0 0.0
    %457 = vmatpush.xpose.msra.mxu0 0.0
    %458 = vmatpush.xpose.msra.mxu0 0.0
    %459 = vmatpush.xpose.msra.mxu0 %v442
    %460 = vmatmul.f32.gmra.mxu0 %v439
    %v461 = vpop.f32.mrf.mxu0
    %v462 = vadd.f32 0.0, %v461
    %463 = vdwg.mxu0
    %v465 = vsel %vm385, %v249, 0
    %v468 = vsel %vm385, %v298, 0
    %470 = vmatpush.xpose.msra.mxu0 0.0
    %471 = vmatpush.xpose.msra.mxu0 0.0
    %472 = vmatpush.xpose.msra.mxu0 0.0
    %473 = vmatpush.xpose.msra.mxu0 0.0
    %474 = vmatpush.xpose.msra.mxu0 0.0
    %475 = vmatpush.xpose.msra.mxu0 0.0
    %476 = vmatpush.xpose.msra.mxu0 0.0
    %477 = vmatpush.xpose.msra.mxu0 0.0
    %478 = vmatpush.xpose.msra.mxu0 0.0
    %479 = vmatpush.xpose.msra.mxu0 0.0
    %480 = vmatpush.xpose.msra.mxu0 0.0
    %481 = vmatpush.xpose.msra.mxu0 0.0
    %482 = vmatpush.xpose.msra.mxu0 0.0
    %483 = vmatpush.xpose.msra.mxu0 0.0
    %484 = vmatpush.xpose.msra.mxu0 0.0
    %485 = vmatpush.xpose.msra.mxu0 %v468
    %486 = vmatmul.f32.gmra.mxu0 %v465
    %v487 = vpop.f32.mrf.mxu0
    %v488 = vadd.f32 0.0, %v487
    %489 = vdwg.mxu0
    %v491 = vsel %vm385, %v252, 0
    %v494 = vsel %vm385, %v301, 0
    %496 = vmatpush.xpose.msra.mxu0 0.0
    %497 = vmatpush.xpose.msra.mxu0 0.0
    %498 = vmatpush.xpose.msra.mxu0 0.0
    %499 = vmatpush.xpose.msra.mxu0 0.0
    %500 = vmatpush.xpose.msra.mxu0 0.0
    %501 = vmatpush.xpose.msra.mxu0 0.0
    %502 = vmatpush.xpose.msra.mxu0 0.0
    %503 = vmatpush.xpose.msra.mxu0 0.0
    %504 = vmatpush.xpose.msra.mxu0 0.0
    %505 = vmatpush.xpose.msra.mxu0 0.0
    %506 = vmatpush.xpose.msra.mxu0 0.0
    %507 = vmatpush.xpose.msra.mxu0 0.0
    %508 = vmatpush.xpose.msra.mxu0 0.0
    %509 = vmatpush.xpose.msra.mxu0 0.0
    %510 = vmatpush.xpose.msra.mxu0 0.0
    %511 = vmatpush.xpose.msra.mxu0 %v494
    %512 = vmatmul.f32.gmra.mxu0 %v491
    %v513 = vpop.f32.mrf.mxu0
    %v514 = vadd.f32 0.0, %v513
    %515 = vdwg.mxu0
    %v517 = vsel %vm385, %v255, 0
    %v520 = vsel %vm385, %v304, 0
    %522 = vmatpush.xpose.msra.mxu0 0.0
    %523 = vmatpush.xpose.msra.mxu0 0.0
    %524 = vmatpush.xpose.msra.mxu0 0.0
    %525 = vmatpush.xpose.msra.mxu0 0.0
    %526 = vmatpush.xpose.msra.mxu0 0.0
    %527 = vmatpush.xpose.msra.mxu0 0.0
    %528 = vmatpush.xpose.msra.mxu0 0.0
    %529 = vmatpush.xpose.msra.mxu0 0.0
    %530 = vmatpush.xpose.msra.mxu0 0.0
    %531 = vmatpush.xpose.msra.mxu0 0.0
    %532 = vmatpush.xpose.msra.mxu0 0.0
    %533 = vmatpush.xpose.msra.mxu0 0.0
    %534 = vmatpush.xpose.msra.mxu0 0.0
    %535 = vmatpush.xpose.msra.mxu0 0.0
    %536 = vmatpush.xpose.msra.mxu0 0.0
    %537 = vmatpush.xpose.msra.mxu0 %v520
    %538 = vmatmul.f32.gmra.mxu0 %v517
    %v539 = vpop.f32.mrf.mxu0
    %v540 = vadd.f32 0.0, %v539
    %541 = vdwg.mxu0
    %v543 = vsel %vm385, %v258, 0
    %v546 = vsel %vm385, %v307, 0
    %548 = vmatpush.xpose.msra.mxu0 0.0
    %549 = vmatpush.xpose.msra.mxu0 0.0
    %550 = vmatpush.xpose.msra.mxu0 0.0
    %551 = vmatpush.xpose.msra.mxu0 0.0
    %552 = vmatpush.xpose.msra.mxu0 0.0
    %553 = vmatpush.xpose.msra.mxu0 0.0
    %554 = vmatpush.xpose.msra.mxu0 0.0
    %555 = vmatpush.xpose.msra.mxu0 0.0
    %556 = vmatpush.xpose.msra.mxu0 0.0
    %557 = vmatpush.xpose.msra.mxu0 0.0
    %558 = vmatpush.xpose.msra.mxu0 0.0
    %559 = vmatpush.xpose.msra.mxu0 0.0
    %560 = vmatpush.xpose.msra.mxu0 0.0
    %561 = vmatpush.xpose.msra.mxu0 0.0
    %562 = vmatpush.xpose.msra.mxu0 0.0
    %563 = vmatpush.xpose.msra.mxu0 %v546
    %564 = vmatmul.f32.gmra.mxu0 %v543
    %v565 = vpop.f32.mrf.mxu0
    %v566 = vadd.f32 0.0, %v565
    %567 = vdwg.mxu0
    %v569 = vsel %vm385, %v261, 0
    %v572 = vsel %vm385, %v310, 0
    %574 = vmatpush.xpose.msra.mxu0 0.0
    %575 = vmatpush.xpose.msra.mxu0 0.0
    %576 = vmatpush.xpose.msra.mxu0 0.0
    %577 = vmatpush.xpose.msra.mxu0 0.0
    %578 = vmatpush.xpose.msra.mxu0 0.0
    %579 = vmatpush.xpose.msra.mxu0 0.0
    %580 = vmatpush.xpose.msra.mxu0 0.0
    %581 = vmatpush.xpose.msra.mxu0 0.0
    %582 = vmatpush.xpose.msra.mxu0 0.0
    %583 = vmatpush.xpose.msra.mxu0 0.0
    %584 = vmatpush.xpose.msra.mxu0 0.0
    %585 = vmatpush.xpose.msra.mxu0 0.0
    %586 = vmatpush.xpose.msra.mxu0 0.0
    %587 = vmatpush.xpose.msra.mxu0 0.0
    %588 = vmatpush.xpose.msra.mxu0 0.0
    %589 = vmatpush.xpose.msra.mxu0 %v572
    %590 = vmatmul.f32.gmra.mxu0 %v569
    %v591 = vpop.f32.mrf.mxu0
    %v592 = vadd.f32 0.0, %v591
    %593 = vdwg.mxu0
    %v594 = vmul.f32 %v410, 0.35355338
    %v595 = vmul.f32 %v436, 0.35355338
    %v596 = vmul.f32 %v462, 0.35355338
    %v597 = vmul.f32 %v488, 0.35355338
    %v598 = vmul.f32 %v514, 0.35355338
    %v599 = vmul.f32 %v540, 0.35355338
    %v600 = vmul.f32 %v566, 0.35355338
    %v601 = vmul.f32 %v592, 0.35355338
    %v610 = vperm.slane %v377, 0
    %v611 = vperm.slane %v378, 0
    %v612 = vperm.slane %v379, 0
    %v613 = vperm.slane %v380, 0
    %v614 = vperm.slane %v381, 0
    %v615 = vperm.slane %v382, 0
    %v616 = vperm.slane %v383, 0
    %v617 = vperm.slane %v384, 0
    %v626 = vadd.f32 %v594, %v610
    %v627 = vadd.f32 %v595, %v611
    %v628 = vadd.f32 %v596, %v612
    %v629 = vadd.f32 %v597, %v613
    %v630 = vadd.f32 %v598, %v614
    %v631 = vadd.f32 %v599, %v615
    %v632 = vadd.f32 %v600, %v616
    %v633 = vadd.f32 %v601, %v617
    %v634 = vsel %vm385, %v626, -inf
    %635 = vmax.xlane.f32.xlu0 %v634
    %v636 = vpop.xlane.xlu0 %635
    %v637 = vsel %vm385, %v627, -inf
    %638 = vmax.xlane.f32.xlu0 %v637
    %v639 = vpop.xlane.xlu0 %638
    %v640 = vsel %vm385, %v628, -inf
    %641 = vmax.xlane.f32.xlu0 %v640
    %v642 = vpop.xlane.xlu0 %641
    %v643 = vsel %vm385, %v629, -inf
    %644 = vmax.xlane.f32.xlu0 %v643
    %v645 = vpop.xlane.xlu0 %644
    %v646 = vsel %vm385, %v630, -inf
    %647 = vmax.xlane.f32.xlu0 %v646
    %v648 = vpop.xlane.xlu0 %647
    %v649 = vsel %vm385, %v631, -inf
    %650 = vmax.xlane.f32.xlu0 %v649
    %v651 = vpop.xlane.xlu0 %650
    %v652 = vsel %vm385, %v632, -inf
    %653 = vmax.xlane.f32.xlu0 %v652
    %v654 = vpop.xlane.xlu0 %653
    %v655 = vsel %vm385, %v633, -inf
    %656 = vmax.xlane.f32.xlu0 %v655
    %v657 = vpop.xlane.xlu0 %656
    %v658 = vsub.f32 %v626, %v636
    %v659 = vsub.f32 %v627, %v639
    %v660 = vsub.f32 %v628, %v642
    %v661 = vsub.f32 %v629, %v645
    %v662 = vsub.f32 %v630, %v648
    %v663 = vsub.f32 %v631, %v651
    %v664 = vsub.f32 %v632, %v654
    %v665 = vsub.f32 %v633, %v657
    %v666 = vmul.f32 %v658, 1.442695
    %v667 = vpow.pop %v666
    %v668 = vmul.f32 %v659, 1.442695
    %v669 = vpow.pop %v668
    %v670 = vmul.f32 %v660, 1.442695
    %v671 = vpow.pop %v670
    %v672 = vmul.f32 %v661, 1.442695
    %v673 = vpow.pop %v672
    %v674 = vmul.f32 %v662, 1.442695
    %v675 = vpow.pop %v674
    %v676 = vmul.f32 %v663, 1.442695
    %v677 = vpow.pop %v676
    %v678 = vmul.f32 %v664, 1.442695
    %v679 = vpow.pop %v678
    %v680 = vmul.f32 %v665, 1.442695
    %v681 = vpow.pop %v680
    %v682 = vsel %vm385, %v667, 0.0
    %683 = vadd.xlane.f32.xlu0 %v682
    %v684 = vpop.xlane.xlu0 %683
    %v685 = vsel %vm385, %v669, 0.0
    %686 = vadd.xlane.f32.xlu0 %v685
    %v687 = vpop.xlane.xlu0 %686
    %v688 = vsel %vm385, %v671, 0.0
    %689 = vadd.xlane.f32.xlu0 %v688
    %v690 = vpop.xlane.xlu0 %689
    %v691 = vsel %vm385, %v673, 0.0
    %692 = vadd.xlane.f32.xlu0 %v691
    %v693 = vpop.xlane.xlu0 %692
    %v694 = vsel %vm385, %v675, 0.0
    %695 = vadd.xlane.f32.xlu0 %v694
    %v696 = vpop.xlane.xlu0 %695
    %v697 = vsel %vm385, %v677, 0.0
    %698 = vadd.xlane.f32.xlu0 %v697
    %v699 = vpop.xlane.xlu0 %698
    %v700 = vsel %vm385, %v679, 0.0
    %701 = vadd.xlane.f32.xlu0 %v700
    %v702 = vpop.xlane.xlu0 %701
    %v703 = vsel %vm385, %v681, 0.0
    %704 = vadd.xlane.f32.xlu0 %v703
    %v705 = vpop.xlane.xlu0 %704
    %v706 = vrcp.pop %v684
    %v707 = vrcp.pop %v687
    %v708 = vrcp.pop %v690
    %v709 = vrcp.pop %v693
    %v710 = vrcp.pop %v696
    %v711 = vrcp.pop %v699
    %v712 = vrcp.pop %v702
    %v713 = vrcp.pop %v705
    %v714 = vmul.f32 %v667, %v706
    %v715 = vmul.f32 %v669, %v707
    %v716 = vmul.f32 %v671, %v708
    %v717 = vmul.f32 %v673, %v709
    %v718 = vmul.f32 %v675, %v710
    %v719 = vmul.f32 %v677, %v711
    %v720 = vmul.f32 %v679, %v712
    %v721 = vmul.f32 %v681, %v713
    %v723 = vsel %vm385, %v714, 0
    %725 = vmatpush.msra.mxu0 0.0
    %726 = vmatpush.msra.mxu0 0.0
    %727 = vmatpush.msra.mxu0 0.0
    %728 = vmatpush.msra.mxu0 0.0
    %729 = vmatpush.msra.mxu0 0.0
    %730 = vmatpush.msra.mxu0 0.0
    %731 = vmatpush.msra.mxu0 0.0
    %732 = vmatpush.msra.mxu0 0.0
    %733 = vmatpush.msra.mxu0 0.0
    %734 = vmatpush.msra.mxu0 0.0
    %735 = vmatpush.msra.mxu0 0.0
    %736 = vmatpush.msra.mxu0 0.0
    %737 = vmatpush.msra.mxu0 0.0
    %738 = vmatpush.msra.mxu0 0.0
    %739 = vmatpush.msra.mxu0 0.0
    %740 = vmatpush.msra.mxu0 %v338
    %741 = vmatmul.f32.gmra.mxu0 %v723
    %v742 = vpop.f32.mrf.mxu0
    %v743 = vadd.f32 0.0, %v742
    %744 = vdwg.mxu0
    %v746 = vsel %vm385, %v715, 0
    %748 = vmatpush.msra.mxu0 0.0
    %749 = vmatpush.msra.mxu0 0.0
    %750 = vmatpush.msra.mxu0 0.0
    %751 = vmatpush.msra.mxu0 0.0
    %752 = vmatpush.msra.mxu0 0.0
    %753 = vmatpush.msra.mxu0 0.0
    %754 = vmatpush.msra.mxu0 0.0
    %755 = vmatpush.msra.mxu0 0.0
    %756 = vmatpush.msra.mxu0 0.0
    %757 = vmatpush.msra.mxu0 0.0
    %758 = vmatpush.msra.mxu0 0.0
    %759 = vmatpush.msra.mxu0 0.0
    %760 = vmatpush.msra.mxu0 0.0
    %761 = vmatpush.msra.mxu0 0.0
    %762 = vmatpush.msra.mxu0 0.0
    %763 = vmatpush.msra.mxu0 %v341
    %764 = vmatmul.f32.gmra.mxu0 %v746
    %v765 = vpop.f32.mrf.mxu0
    %v766 = vadd.f32 0.0, %v765
    %767 = vdwg.mxu0
    %v769 = vsel %vm385, %v716, 0
    %771 = vmatpush.msra.mxu0 0.0
    %772 = vmatpush.msra.mxu0 0.0
    %773 = vmatpush.msra.mxu0 0.0
    %774 = vmatpush.msra.mxu0 0.0
    %775 = vmatpush.msra.mxu0 0.0
    %776 = vmatpush.msra.mxu0 0.0
    %777 = vmatpush.msra.mxu0 0.0
    %778 = vmatpush.msra.mxu0 0.0
    %779 = vmatpush.msra.mxu0 0.0
    %780 = vmatpush.msra.mxu0 0.0
    %781 = vmatpush.msra.mxu0 0.0
    %782 = vmatpush.msra.mxu0 0.0
    %783 = vmatpush.msra.mxu0 0.0
    %784 = vmatpush.msra.mxu0 0.0
    %785 = vmatpush.msra.mxu0 0.0
    %786 = vmatpush.msra.mxu0 %v344
    %787 = vmatmul.f32.gmra.mxu0 %v769
    %v788 = vpop.f32.mrf.mxu0
    %v789 = vadd.f32 0.0, %v788
    %790 = vdwg.mxu0
    %v792 = vsel %vm385, %v717, 0
    %794 = vmatpush.msra.mxu0 0.0
    %795 = vmatpush.msra.mxu0 0.0
    %796 = vmatpush.msra.mxu0 0.0
    %797 = vmatpush.msra.mxu0 0.0
    %798 = vmatpush.msra.mxu0 0.0
    %799 = vmatpush.msra.mxu0 0.0
    %800 = vmatpush.msra.mxu0 0.0
    %801 = vmatpush.msra.mxu0 0.0
    %802 = vmatpush.msra.mxu0 0.0
    %803 = vmatpush.msra.mxu0 0.0
    %804 = vmatpush.msra.mxu0 0.0
    %805 = vmatpush.msra.mxu0 0.0
    %806 = vmatpush.msra.mxu0 0.0
    %807 = vmatpush.msra.mxu0 0.0
    %808 = vmatpush.msra.mxu0 0.0
    %809 = vmatpush.msra.mxu0 %v347
    %810 = vmatmul.f32.gmra.mxu0 %v792
    %v811 = vpop.f32.mrf.mxu0
    %v812 = vadd.f32 0.0, %v811
    %813 = vdwg.mxu0
    %v815 = vsel %vm385, %v718, 0
    %817 = vmatpush.msra.mxu0 0.0
    %818 = vmatpush.msra.mxu0 0.0
    %819 = vmatpush.msra.mxu0 0.0
    %820 = vmatpush.msra.mxu0 0.0
    %821 = vmatpush.msra.mxu0 0.0
    %822 = vmatpush.msra.mxu0 0.0
    %823 = vmatpush.msra.mxu0 0.0
    %824 = vmatpush.msra.mxu0 0.0
    %825 = vmatpush.msra.mxu0 0.0
    %826 = vmatpush.msra.mxu0 0.0
    %827 = vmatpush.msra.mxu0 0.0
    %828 = vmatpush.msra.mxu0 0.0
    %829 = vmatpush.msra.mxu0 0.0
    %830 = vmatpush.msra.mxu0 0.0
    %831 = vmatpush.msra.mxu0 0.0
    %832 = vmatpush.msra.mxu0 %v350
    %833 = vmatmul.f32.gmra.mxu0 %v815
    %v834 = vpop.f32.mrf.mxu0
    %v835 = vadd.f32 0.0, %v834
    %836 = vdwg.mxu0
    %v838 = vsel %vm385, %v719, 0
    %840 = vmatpush.msra.mxu0 0.0
    %841 = vmatpush.msra.mxu0 0.0
    %842 = vmatpush.msra.mxu0 0.0
    %843 = vmatpush.msra.mxu0 0.0
    %844 = vmatpush.msra.mxu0 0.0
    %845 = vmatpush.msra.mxu0 0.0
    %846 = vmatpush.msra.mxu0 0.0
    %847 = vmatpush.msra.mxu0 0.0
    %848 = vmatpush.msra.mxu0 0.0
    %849 = vmatpush.msra.mxu0 0.0
    %850 = vmatpush.msra.mxu0 0.0
    %851 = vmatpush.msra.mxu0 0.0
    %852 = vmatpush.msra.mxu0 0.0
    %853 = vmatpush.msra.mxu0 0.0
    %854 = vmatpush.msra.mxu0 0.0
    %855 = vmatpush.msra.mxu0 %v353
    %856 = vmatmul.f32.gmra.mxu0 %v838
    %v857 = vpop.f32.mrf.mxu0
    %v858 = vadd.f32 0.0, %v857
    %859 = vdwg.mxu0
    %v861 = vsel %vm385, %v720, 0
    %863 = vmatpush.msra.mxu0 0.0
    %864 = vmatpush.msra.mxu0 0.0
    %865 = vmatpush.msra.mxu0 0.0
    %866 = vmatpush.msra.mxu0 0.0
    %867 = vmatpush.msra.mxu0 0.0
    %868 = vmatpush.msra.mxu0 0.0
    %869 = vmatpush.msra.mxu0 0.0
    %870 = vmatpush.msra.mxu0 0.0
    %871 = vmatpush.msra.mxu0 0.0
    %872 = vmatpush.msra.mxu0 0.0
    %873 = vmatpush.msra.mxu0 0.0
    %874 = vmatpush.msra.mxu0 0.0
    %875 = vmatpush.msra.mxu0 0.0
    %876 = vmatpush.msra.mxu0 0.0
    %877 = vmatpush.msra.mxu0 0.0
    %878 = vmatpush.msra.mxu0 %v356
    %879 = vmatmul.f32.gmra.mxu0 %v861
    %v880 = vpop.f32.mrf.mxu0
    %v881 = vadd.f32 0.0, %v880
    %882 = vdwg.mxu0
    %v884 = vsel %vm385, %v721, 0
    %886 = vmatpush.msra.mxu0 0.0
    %887 = vmatpush.msra.mxu0 0.0
    %888 = vmatpush.msra.mxu0 0.0
    %889 = vmatpush.msra.mxu0 0.0
    %890 = vmatpush.msra.mxu0 0.0
    %891 = vmatpush.msra.mxu0 0.0
    %892 = vmatpush.msra.mxu0 0.0
    %893 = vmatpush.msra.mxu0 0.0
    %894 = vmatpush.msra.mxu0 0.0
    %895 = vmatpush.msra.mxu0 0.0
    %896 = vmatpush.msra.mxu0 0.0
    %897 = vmatpush.msra.mxu0 0.0
    %898 = vmatpush.msra.mxu0 0.0
    %899 = vmatpush.msra.mxu0 0.0
    %900 = vmatpush.msra.mxu0 0.0
    %901 = vmatpush.msra.mxu0 %v359
    %902 = vmatmul.f32.gmra.mxu0 %v884
    %v903 = vpop.f32.mrf.mxu0
    %v904 = vadd.f32 0.0, %v903
    %905 = vdwg.mxu0
    %906 = vrot.lane.b32.xlu0 %v240, 120
    %v907 = vpop.permute.xlu0 %906
    %908 = vrot.lane.b32.xlu0 %v289, 120
    %v909 = vpop.permute.xlu0 %908
    %v910 = vsel %vm385, %v907, 0
    %v912 = vsel %vm385, %v909, 0
    %914 = vmatpush.xpose.msra.mxu0 0.0
    %915 = vmatpush.xpose.msra.mxu0 0.0
    %916 = vmatpush.xpose.msra.mxu0 0.0
    %917 = vmatpush.xpose.msra.mxu0 0.0
    %918 = vmatpush.xpose.msra.mxu0 0.0
    %919 = vmatpush.xpose.msra.mxu0 0.0
    %920 = vmatpush.xpose.msra.mxu0 0.0
    %921 = vmatpush.xpose.msra.mxu0 0.0
    %922 = vmatpush.xpose.msra.mxu0 0.0
    %923 = vmatpush.xpose.msra.mxu0 0.0
    %924 = vmatpush.xpose.msra.mxu0 0.0
    %925 = vmatpush.xpose.msra.mxu0 0.0
    %926 = vmatpush.xpose.msra.mxu0 0.0
    %927 = vmatpush.xpose.msra.mxu0 0.0
    %928 = vmatpush.xpose.msra.mxu0 0.0
    %929 = vmatpush.xpose.msra.mxu0 %v912
    %930 = vmatmul.f32.gmra.mxu0 %v910
    %v931 = vpop.f32.mrf.mxu0
    %v932 = vadd.f32 0.0, %v931
    %933 = vdwg.mxu0
    %934 = vrot.lane.b32.xlu0 %v243, 120
    %v935 = vpop.permute.xlu0 %934
    %936 = vrot.lane.b32.xlu0 %v292, 120
    %v937 = vpop.permute.xlu0 %936
    %v938 = vsel %vm385, %v935, 0
    %v940 = vsel %vm385, %v937, 0
    %942 = vmatpush.xpose.msra.mxu0 0.0
    %943 = vmatpush.xpose.msra.mxu0 0.0
    %944 = vmatpush.xpose.msra.mxu0 0.0
    %945 = vmatpush.xpose.msra.mxu0 0.0
    %946 = vmatpush.xpose.msra.mxu0 0.0
    %947 = vmatpush.xpose.msra.mxu0 0.0
    %948 = vmatpush.xpose.msra.mxu0 0.0
    %949 = vmatpush.xpose.msra.mxu0 0.0
    %950 = vmatpush.xpose.msra.mxu0 0.0
    %951 = vmatpush.xpose.msra.mxu0 0.0
    %952 = vmatpush.xpose.msra.mxu0 0.0
    %953 = vmatpush.xpose.msra.mxu0 0.0
    %954 = vmatpush.xpose.msra.mxu0 0.0
    %955 = vmatpush.xpose.msra.mxu0 0.0
    %956 = vmatpush.xpose.msra.mxu0 0.0
    %957 = vmatpush.xpose.msra.mxu0 %v940
    %958 = vmatmul.f32.gmra.mxu0 %v938
    %v959 = vpop.f32.mrf.mxu0
    %v960 = vadd.f32 0.0, %v959
    %961 = vdwg.mxu0
    %962 = vrot.lane.b32.xlu0 %v246, 120
    %v963 = vpop.permute.xlu0 %962
    %964 = vrot.lane.b32.xlu0 %v295, 120
    %v965 = vpop.permute.xlu0 %964
    %v966 = vsel %vm385, %v963, 0
    %v968 = vsel %vm385, %v965, 0
    %970 = vmatpush.xpose.msra.mxu0 0.0
    %971 = vmatpush.xpose.msra.mxu0 0.0
    %972 = vmatpush.xpose.msra.mxu0 0.0
    %973 = vmatpush.xpose.msra.mxu0 0.0
    %974 = vmatpush.xpose.msra.mxu0 0.0
    %975 = vmatpush.xpose.msra.mxu0 0.0
    %976 = vmatpush.xpose.msra.mxu0 0.0
    %977 = vmatpush.xpose.msra.mxu0 0.0
    %978 = vmatpush.xpose.msra.mxu0 0.0
    %979 = vmatpush.xpose.msra.mxu0 0.0
    %980 = vmatpush.xpose.msra.mxu0 0.0
    %981 = vmatpush.xpose.msra.mxu0 0.0
    %982 = vmatpush.xpose.msra.mxu0 0.0
    %983 = vmatpush.xpose.msra.mxu0 0.0
    %984 = vmatpush.xpose.msra.mxu0 0.0
    %985 = vmatpush.xpose.msra.mxu0 %v968
    %986 = vmatmul.f32.gmra.mxu0 %v966
    %v987 = vpop.f32.mrf.mxu0
    %v988 = vadd.f32 0.0, %v987
    %989 = vdwg.mxu0
    %990 = vrot.lane.b32.xlu0 %v249, 120
    %v991 = vpop.permute.xlu0 %990
    %992 = vrot.lane.b32.xlu0 %v298, 120
    %v993 = vpop.permute.xlu0 %992
    %v994 = vsel %vm385, %v991, 0
    %v996 = vsel %vm385, %v993, 0
    %998 = vmatpush.xpose.msra.mxu0 0.0
    %999 = vmatpush.xpose.msra.mxu0 0.0
    %1000 = vmatpush.xpose.msra.mxu0 0.0
    %1001 = vmatpush.xpose.msra.mxu0 0.0
    %1002 = vmatpush.xpose.msra.mxu0 0.0
    %1003 = vmatpush.xpose.msra.mxu0 0.0
    %1004 = vmatpush.xpose.msra.mxu0 0.0
    %1005 = vmatpush.xpose.msra.mxu0 0.0
    %1006 = vmatpush.xpose.msra.mxu0 0.0
    %1007 = vmatpush.xpose.msra.mxu0 0.0
    %1008 = vmatpush.xpose.msra.mxu0 0.0
    %1009 = vmatpush.xpose.msra.mxu0 0.0
    %1010 = vmatpush.xpose.msra.mxu0 0.0
    %1011 = vmatpush.xpose.msra.mxu0 0.0
    %1012 = vmatpush.xpose.msra.mxu0 0.0
    %1013 = vmatpush.xpose.msra.mxu0 %v996
    %1014 = vmatmul.f32.gmra.mxu0 %v994
    %v1015 = vpop.f32.mrf.mxu0
    %v1016 = vadd.f32 0.0, %v1015
    %1017 = vdwg.mxu0
    %1018 = vrot.lane.b32.xlu0 %v252, 120
    %v1019 = vpop.permute.xlu0 %1018
    %1020 = vrot.lane.b32.xlu0 %v301, 120
    %v1021 = vpop.permute.xlu0 %1020
    %v1022 = vsel %vm385, %v1019, 0
    %v1024 = vsel %vm385, %v1021, 0
    %1026 = vmatpush.xpose.msra.mxu0 0.0
    %1027 = vmatpush.xpose.msra.mxu0 0.0
    %1028 = vmatpush.xpose.msra.mxu0 0.0
    %1029 = vmatpush.xpose.msra.mxu0 0.0
    %1030 = vmatpush.xpose.msra.mxu0 0.0
    %1031 = vmatpush.xpose.msra.mxu0 0.0
    %1032 = vmatpush.xpose.msra.mxu0 0.0
    %1033 = vmatpush.xpose.msra.mxu0 0.0
    %1034 = vmatpush.xpose.msra.mxu0 0.0
    %1035 = vmatpush.xpose.msra.mxu0 0.0
    %1036 = vmatpush.xpose.msra.mxu0 0.0
    %1037 = vmatpush.xpose.msra.mxu0 0.0
    %1038 = vmatpush.xpose.msra.mxu0 0.0
    %1039 = vmatpush.xpose.msra.mxu0 0.0
    %1040 = vmatpush.xpose.msra.mxu0 0.0
    %1041 = vmatpush.xpose.msra.mxu0 %v1024
    %1042 = vmatmul.f32.gmra.mxu0 %v1022
    %v1043 = vpop.f32.mrf.mxu0
    %v1044 = vadd.f32 0.0, %v1043
    %1045 = vdwg.mxu0
    %1046 = vrot.lane.b32.xlu0 %v255, 120
    %v1047 = vpop.permute.xlu0 %1046
    %1048 = vrot.lane.b32.xlu0 %v304, 120
    %v1049 = vpop.permute.xlu0 %1048
    %v1050 = vsel %vm385, %v1047, 0
    %v1052 = vsel %vm385, %v1049, 0
    %1054 = vmatpush.xpose.msra.mxu0 0.0
    %1055 = vmatpush.xpose.msra.mxu0 0.0
    %1056 = vmatpush.xpose.msra.mxu0 0.0
    %1057 = vmatpush.xpose.msra.mxu0 0.0
    %1058 = vmatpush.xpose.msra.mxu0 0.0
    %1059 = vmatpush.xpose.msra.mxu0 0.0
    %1060 = vmatpush.xpose.msra.mxu0 0.0
    %1061 = vmatpush.xpose.msra.mxu0 0.0
    %1062 = vmatpush.xpose.msra.mxu0 0.0
    %1063 = vmatpush.xpose.msra.mxu0 0.0
    %1064 = vmatpush.xpose.msra.mxu0 0.0
    %1065 = vmatpush.xpose.msra.mxu0 0.0
    %1066 = vmatpush.xpose.msra.mxu0 0.0
    %1067 = vmatpush.xpose.msra.mxu0 0.0
    %1068 = vmatpush.xpose.msra.mxu0 0.0
    %1069 = vmatpush.xpose.msra.mxu0 %v1052
    %1070 = vmatmul.f32.gmra.mxu0 %v1050
    %v1071 = vpop.f32.mrf.mxu0
    %v1072 = vadd.f32 0.0, %v1071
    %1073 = vdwg.mxu0
    %1074 = vrot.lane.b32.xlu0 %v258, 120
    %v1075 = vpop.permute.xlu0 %1074
    %1076 = vrot.lane.b32.xlu0 %v307, 120
    %v1077 = vpop.permute.xlu0 %1076
    %v1078 = vsel %vm385, %v1075, 0
    %v1080 = vsel %vm385, %v1077, 0
    %1082 = vmatpush.xpose.msra.mxu0 0.0
    %1083 = vmatpush.xpose.msra.mxu0 0.0
    %1084 = vmatpush.xpose.msra.mxu0 0.0
    %1085 = vmatpush.xpose.msra.mxu0 0.0
    %1086 = vmatpush.xpose.msra.mxu0 0.0
    %1087 = vmatpush.xpose.msra.mxu0 0.0
    %1088 = vmatpush.xpose.msra.mxu0 0.0
    %1089 = vmatpush.xpose.msra.mxu0 0.0
    %1090 = vmatpush.xpose.msra.mxu0 0.0
    %1091 = vmatpush.xpose.msra.mxu0 0.0
    %1092 = vmatpush.xpose.msra.mxu0 0.0
    %1093 = vmatpush.xpose.msra.mxu0 0.0
    %1094 = vmatpush.xpose.msra.mxu0 0.0
    %1095 = vmatpush.xpose.msra.mxu0 0.0
    %1096 = vmatpush.xpose.msra.mxu0 0.0
    %1097 = vmatpush.xpose.msra.mxu0 %v1080
    %1098 = vmatmul.f32.gmra.mxu0 %v1078
    %v1099 = vpop.f32.mrf.mxu0
    %v1100 = vadd.f32 0.0, %v1099
    %1101 = vdwg.mxu0
    %1102 = vrot.lane.b32.xlu0 %v261, 120
    %v1103 = vpop.permute.xlu0 %1102
    %1104 = vrot.lane.b32.xlu0 %v310, 120
    %v1105 = vpop.permute.xlu0 %1104
    %v1106 = vsel %vm385, %v1103, 0
    %v1108 = vsel %vm385, %v1105, 0
    %1110 = vmatpush.xpose.msra.mxu0 0.0
    %1111 = vmatpush.xpose.msra.mxu0 0.0
    %1112 = vmatpush.xpose.msra.mxu0 0.0
    %1113 = vmatpush.xpose.msra.mxu0 0.0
    %1114 = vmatpush.xpose.msra.mxu0 0.0
    %1115 = vmatpush.xpose.msra.mxu0 0.0
    %1116 = vmatpush.xpose.msra.mxu0 0.0
    %1117 = vmatpush.xpose.msra.mxu0 0.0
    %1118 = vmatpush.xpose.msra.mxu0 0.0
    %1119 = vmatpush.xpose.msra.mxu0 0.0
    %1120 = vmatpush.xpose.msra.mxu0 0.0
    %1121 = vmatpush.xpose.msra.mxu0 0.0
    %1122 = vmatpush.xpose.msra.mxu0 0.0
    %1123 = vmatpush.xpose.msra.mxu0 0.0
    %1124 = vmatpush.xpose.msra.mxu0 0.0
    %1125 = vmatpush.xpose.msra.mxu0 %v1108
    %1126 = vmatmul.f32.gmra.mxu0 %v1106
    %v1127 = vpop.f32.mrf.mxu0
    %v1128 = vadd.f32 0.0, %v1127
    %1129 = vdwg.mxu0
    %v1130 = vmul.f32 %v932, 0.35355338
    %v1131 = vmul.f32 %v960, 0.35355338
    %v1132 = vmul.f32 %v988, 0.35355338
    %v1133 = vmul.f32 %v1016, 0.35355338
    %v1134 = vmul.f32 %v1044, 0.35355338
    %v1135 = vmul.f32 %v1072, 0.35355338
    %v1136 = vmul.f32 %v1100, 0.35355338
    %v1137 = vmul.f32 %v1128, 0.35355338
    %v1138 = vadd.f32 %v1130, %v610
    %v1139 = vadd.f32 %v1131, %v611
    %v1140 = vadd.f32 %v1132, %v612
    %v1141 = vadd.f32 %v1133, %v613
    %v1142 = vadd.f32 %v1134, %v614
    %v1143 = vadd.f32 %v1135, %v615
    %v1144 = vadd.f32 %v1136, %v616
    %v1145 = vadd.f32 %v1137, %v617
    %v1146 = vsel %vm385, %v1138, -inf
    %1147 = vmax.xlane.f32.xlu0 %v1146
    %v1148 = vpop.xlane.xlu0 %1147
    %v1149 = vsel %vm385, %v1139, -inf
    %1150 = vmax.xlane.f32.xlu0 %v1149
    %v1151 = vpop.xlane.xlu0 %1150
    %v1152 = vsel %vm385, %v1140, -inf
    %1153 = vmax.xlane.f32.xlu0 %v1152
    %v1154 = vpop.xlane.xlu0 %1153
    %v1155 = vsel %vm385, %v1141, -inf
    %1156 = vmax.xlane.f32.xlu0 %v1155
    %v1157 = vpop.xlane.xlu0 %1156
    %v1158 = vsel %vm385, %v1142, -inf
    %1159 = vmax.xlane.f32.xlu0 %v1158
    %v1160 = vpop.xlane.xlu0 %1159
    %v1161 = vsel %vm385, %v1143, -inf
    %1162 = vmax.xlane.f32.xlu0 %v1161
    %v1163 = vpop.xlane.xlu0 %1162
    %v1164 = vsel %vm385, %v1144, -inf
    %1165 = vmax.xlane.f32.xlu0 %v1164
    %v1166 = vpop.xlane.xlu0 %1165
    %v1167 = vsel %vm385, %v1145, -inf
    %1168 = vmax.xlane.f32.xlu0 %v1167
    %v1169 = vpop.xlane.xlu0 %1168
    %v1170 = vsub.f32 %v1138, %v1148
    %v1171 = vsub.f32 %v1139, %v1151
    %v1172 = vsub.f32 %v1140, %v1154
    %v1173 = vsub.f32 %v1141, %v1157
    %v1174 = vsub.f32 %v1142, %v1160
    %v1175 = vsub.f32 %v1143, %v1163
    %v1176 = vsub.f32 %v1144, %v1166
    %v1177 = vsub.f32 %v1145, %v1169
    %v1178 = vmul.f32 %v1170, 1.442695
    %v1179 = vpow.pop %v1178
    %v1180 = vmul.f32 %v1171, 1.442695
    %v1181 = vpow.pop %v1180
    %v1182 = vmul.f32 %v1172, 1.442695
    %v1183 = vpow.pop %v1182
    %v1184 = vmul.f32 %v1173, 1.442695
    %v1185 = vpow.pop %v1184
    %v1186 = vmul.f32 %v1174, 1.442695
    %v1187 = vpow.pop %v1186
    %v1188 = vmul.f32 %v1175, 1.442695
    %v1189 = vpow.pop %v1188
    %v1190 = vmul.f32 %v1176, 1.442695
    %v1191 = vpow.pop %v1190
    %v1192 = vmul.f32 %v1177, 1.442695
    %v1193 = vpow.pop %v1192
    %v1194 = vsel %vm385, %v1179, 0.0
    %1195 = vadd.xlane.f32.xlu0 %v1194
    %v1196 = vpop.xlane.xlu0 %1195
    %v1197 = vsel %vm385, %v1181, 0.0
    %1198 = vadd.xlane.f32.xlu0 %v1197
    %v1199 = vpop.xlane.xlu0 %1198
    %v1200 = vsel %vm385, %v1183, 0.0
    %1201 = vadd.xlane.f32.xlu0 %v1200
    %v1202 = vpop.xlane.xlu0 %1201
    %v1203 = vsel %vm385, %v1185, 0.0
    %1204 = vadd.xlane.f32.xlu0 %v1203
    %v1205 = vpop.xlane.xlu0 %1204
    %v1206 = vsel %vm385, %v1187, 0.0
    %1207 = vadd.xlane.f32.xlu0 %v1206
    %v1208 = vpop.xlane.xlu0 %1207
    %v1209 = vsel %vm385, %v1189, 0.0
    %1210 = vadd.xlane.f32.xlu0 %v1209
    %v1211 = vpop.xlane.xlu0 %1210
    %v1212 = vsel %vm385, %v1191, 0.0
    %1213 = vadd.xlane.f32.xlu0 %v1212
    %v1214 = vpop.xlane.xlu0 %1213
    %v1215 = vsel %vm385, %v1193, 0.0
    %1216 = vadd.xlane.f32.xlu0 %v1215
    %v1217 = vpop.xlane.xlu0 %1216
    %v1218 = vrcp.pop %v1196
    %v1219 = vrcp.pop %v1199
    %v1220 = vrcp.pop %v1202
    %v1221 = vrcp.pop %v1205
    %v1222 = vrcp.pop %v1208
    %v1223 = vrcp.pop %v1211
    %v1224 = vrcp.pop %v1214
    %v1225 = vrcp.pop %v1217
    %v1226 = vmul.f32 %v1179, %v1218
    %v1227 = vmul.f32 %v1181, %v1219
    %v1228 = vmul.f32 %v1183, %v1220
    %v1229 = vmul.f32 %v1185, %v1221
    %v1230 = vmul.f32 %v1187, %v1222
    %v1231 = vmul.f32 %v1189, %v1223
    %v1232 = vmul.f32 %v1191, %v1224
    %v1233 = vmul.f32 %v1193, %v1225
    %1235 = vrot.lane.b32.xlu0 %v338, 120
    %v1236 = vpop.permute.xlu0 %1235
    %v1239 = vsel %vm385, %v1226, 0
    %1241 = vmatpush.msra.mxu0 0.0
    %1242 = vmatpush.msra.mxu0 0.0
    %1243 = vmatpush.msra.mxu0 0.0
    %1244 = vmatpush.msra.mxu0 0.0
    %1245 = vmatpush.msra.mxu0 0.0
    %1246 = vmatpush.msra.mxu0 0.0
    %1247 = vmatpush.msra.mxu0 0.0
    %1248 = vmatpush.msra.mxu0 0.0
    %1249 = vmatpush.msra.mxu0 0.0
    %1250 = vmatpush.msra.mxu0 0.0
    %1251 = vmatpush.msra.mxu0 0.0
    %1252 = vmatpush.msra.mxu0 0.0
    %1253 = vmatpush.msra.mxu0 0.0
    %1254 = vmatpush.msra.mxu0 0.0
    %1255 = vmatpush.msra.mxu0 0.0
    %1256 = vmatpush.msra.mxu0 %v1236
    %1257 = vmatmul.f32.gmra.mxu0 %v1239
    %v1258 = vpop.f32.mrf.mxu0
    %v1259 = vadd.f32 0.0, %v1258
    %1260 = vdwg.mxu0
    %1262 = vrot.lane.b32.xlu0 %v341, 120
    %v1263 = vpop.permute.xlu0 %1262
    %v1266 = vsel %vm385, %v1227, 0
    %1268 = vmatpush.msra.mxu0 0.0
    %1269 = vmatpush.msra.mxu0 0.0
    %1270 = vmatpush.msra.mxu0 0.0
    %1271 = vmatpush.msra.mxu0 0.0
    %1272 = vmatpush.msra.mxu0 0.0
    %1273 = vmatpush.msra.mxu0 0.0
    %1274 = vmatpush.msra.mxu0 0.0
    %1275 = vmatpush.msra.mxu0 0.0
    %1276 = vmatpush.msra.mxu0 0.0
    %1277 = vmatpush.msra.mxu0 0.0
    %1278 = vmatpush.msra.mxu0 0.0
    %1279 = vmatpush.msra.mxu0 0.0
    %1280 = vmatpush.msra.mxu0 0.0
    %1281 = vmatpush.msra.mxu0 0.0
    %1282 = vmatpush.msra.mxu0 0.0
    %1283 = vmatpush.msra.mxu0 %v1263
    %1284 = vmatmul.f32.gmra.mxu0 %v1266
    %v1285 = vpop.f32.mrf.mxu0
    %v1286 = vadd.f32 0.0, %v1285
    %1287 = vdwg.mxu0
    %1289 = vrot.lane.b32.xlu0 %v344, 120
    %v1290 = vpop.permute.xlu0 %1289
    %v1293 = vsel %vm385, %v1228, 0
    %1295 = vmatpush.msra.mxu0 0.0
    %1296 = vmatpush.msra.mxu0 0.0
    %1297 = vmatpush.msra.mxu0 0.0
    %1298 = vmatpush.msra.mxu0 0.0
    %1299 = vmatpush.msra.mxu0 0.0
    %1300 = vmatpush.msra.mxu0 0.0
    %1301 = vmatpush.msra.mxu0 0.0
    %1302 = vmatpush.msra.mxu0 0.0
    %1303 = vmatpush.msra.mxu0 0.0
    %1304 = vmatpush.msra.mxu0 0.0
    %1305 = vmatpush.msra.mxu0 0.0
    %1306 = vmatpush.msra.mxu0 0.0
    %1307 = vmatpush.msra.mxu0 0.0
    %1308 = vmatpush.msra.mxu0 0.0
    %1309 = vmatpush.msra.mxu0 0.0
    %1310 = vmatpush.msra.mxu0 %v1290
    %1311 = vmatmul.f32.gmra.mxu0 %v1293
    %v1312 = vpop.f32.mrf.mxu0
    %v1313 = vadd.f32 0.0, %v1312
    %1314 = vdwg.mxu0
    %1316 = vrot.lane.b32.xlu0 %v347, 120
    %v1317 = vpop.permute.xlu0 %1316
    %v1320 = vsel %vm385, %v1229, 0
    %1322 = vmatpush.msra.mxu0 0.0
    %1323 = vmatpush.msra.mxu0 0.0
    %1324 = vmatpush.msra.mxu0 0.0
    %1325 = vmatpush.msra.mxu0 0.0
    %1326 = vmatpush.msra.mxu0 0.0
    %1327 = vmatpush.msra.mxu0 0.0
    %1328 = vmatpush.msra.mxu0 0.0
    %1329 = vmatpush.msra.mxu0 0.0
    %1330 = vmatpush.msra.mxu0 0.0
    %1331 = vmatpush.msra.mxu0 0.0
    %1332 = vmatpush.msra.mxu0 0.0
    %1333 = vmatpush.msra.mxu0 0.0
    %1334 = vmatpush.msra.mxu0 0.0
    %1335 = vmatpush.msra.mxu0 0.0
    %1336 = vmatpush.msra.mxu0 0.0
    %1337 = vmatpush.msra.mxu0 %v1317
    %1338 = vmatmul.f32.gmra.mxu0 %v1320
    %v1339 = vpop.f32.mrf.mxu0
    %v1340 = vadd.f32 0.0, %v1339
    %1341 = vdwg.mxu0
    %1343 = vrot.lane.b32.xlu0 %v350, 120
    %v1344 = vpop.permute.xlu0 %1343
    %v1347 = vsel %vm385, %v1230, 0
    %1349 = vmatpush.msra.mxu0 0.0
    %1350 = vmatpush.msra.mxu0 0.0
    %1351 = vmatpush.msra.mxu0 0.0
    %1352 = vmatpush.msra.mxu0 0.0
    %1353 = vmatpush.msra.mxu0 0.0
    %1354 = vmatpush.msra.mxu0 0.0
    %1355 = vmatpush.msra.mxu0 0.0
    %1356 = vmatpush.msra.mxu0 0.0
    %1357 = vmatpush.msra.mxu0 0.0
    %1358 = vmatpush.msra.mxu0 0.0
    %1359 = vmatpush.msra.mxu0 0.0
    %1360 = vmatpush.msra.mxu0 0.0
    %1361 = vmatpush.msra.mxu0 0.0
    %1362 = vmatpush.msra.mxu0 0.0
    %1363 = vmatpush.msra.mxu0 0.0
    %1364 = vmatpush.msra.mxu0 %v1344
    %1365 = vmatmul.f32.gmra.mxu0 %v1347
    %v1366 = vpop.f32.mrf.mxu0
    %v1367 = vadd.f32 0.0, %v1366
    %1368 = vdwg.mxu0
    %1370 = vrot.lane.b32.xlu0 %v353, 120
    %v1371 = vpop.permute.xlu0 %1370
    %v1374 = vsel %vm385, %v1231, 0
    %1376 = vmatpush.msra.mxu0 0.0
    %1377 = vmatpush.msra.mxu0 0.0
    %1378 = vmatpush.msra.mxu0 0.0
    %1379 = vmatpush.msra.mxu0 0.0
    %1380 = vmatpush.msra.mxu0 0.0
    %1381 = vmatpush.msra.mxu0 0.0
    %1382 = vmatpush.msra.mxu0 0.0
    %1383 = vmatpush.msra.mxu0 0.0
    %1384 = vmatpush.msra.mxu0 0.0
    %1385 = vmatpush.msra.mxu0 0.0
    %1386 = vmatpush.msra.mxu0 0.0
    %1387 = vmatpush.msra.mxu0 0.0
    %1388 = vmatpush.msra.mxu0 0.0
    %1389 = vmatpush.msra.mxu0 0.0
    %1390 = vmatpush.msra.mxu0 0.0
    %1391 = vmatpush.msra.mxu0 %v1371
    %1392 = vmatmul.f32.gmra.mxu0 %v1374
    %v1393 = vpop.f32.mrf.mxu0
    %v1394 = vadd.f32 0.0, %v1393
    %1395 = vdwg.mxu0
    %1397 = vrot.lane.b32.xlu0 %v356, 120
    %v1398 = vpop.permute.xlu0 %1397
    %v1401 = vsel %vm385, %v1232, 0
    %1403 = vmatpush.msra.mxu0 0.0
    %1404 = vmatpush.msra.mxu0 0.0
    %1405 = vmatpush.msra.mxu0 0.0
    %1406 = vmatpush.msra.mxu0 0.0
    %1407 = vmatpush.msra.mxu0 0.0
    %1408 = vmatpush.msra.mxu0 0.0
    %1409 = vmatpush.msra.mxu0 0.0
    %1410 = vmatpush.msra.mxu0 0.0
    %1411 = vmatpush.msra.mxu0 0.0
    %1412 = vmatpush.msra.mxu0 0.0
    %1413 = vmatpush.msra.mxu0 0.0
    %1414 = vmatpush.msra.mxu0 0.0
    %1415 = vmatpush.msra.mxu0 0.0
    %1416 = vmatpush.msra.mxu0 0.0
    %1417 = vmatpush.msra.mxu0 0.0
    %1418 = vmatpush.msra.mxu0 %v1398
    %1419 = vmatmul.f32.gmra.mxu0 %v1401
    %v1420 = vpop.f32.mrf.mxu0
    %v1421 = vadd.f32 0.0, %v1420
    %1422 = vdwg.mxu0
    %1424 = vrot.lane.b32.xlu0 %v359, 120
    %v1425 = vpop.permute.xlu0 %1424
    %v1428 = vsel %vm385, %v1233, 0
    %1430 = vmatpush.msra.mxu0 0.0
    %1431 = vmatpush.msra.mxu0 0.0
    %1432 = vmatpush.msra.mxu0 0.0
    %1433 = vmatpush.msra.mxu0 0.0
    %1434 = vmatpush.msra.mxu0 0.0
    %1435 = vmatpush.msra.mxu0 0.0
    %1436 = vmatpush.msra.mxu0 0.0
    %1437 = vmatpush.msra.mxu0 0.0
    %1438 = vmatpush.msra.mxu0 0.0
    %1439 = vmatpush.msra.mxu0 0.0
    %1440 = vmatpush.msra.mxu0 0.0
    %1441 = vmatpush.msra.mxu0 0.0
    %1442 = vmatpush.msra.mxu0 0.0
    %1443 = vmatpush.msra.mxu0 0.0
    %1444 = vmatpush.msra.mxu0 0.0
    %1445 = vmatpush.msra.mxu0 %v1425
    %1446 = vmatmul.f32.gmra.mxu0 %v1428
    %v1447 = vpop.f32.mrf.mxu0
    %v1448 = vadd.f32 0.0, %v1447
    %1449 = vdwg.mxu0
    %1450 = vrot.lane.b32.xlu0 %v240, 112
    %v1451 = vpop.permute.xlu0 %1450
    %1452 = vrot.lane.b32.xlu0 %v289, 112
    %v1453 = vpop.permute.xlu0 %1452
    %v1454 = vsel %vm385, %v1451, 0
    %v1456 = vsel %vm385, %v1453, 0
    %1458 = vmatpush.xpose.msra.mxu0 0.0
    %1459 = vmatpush.xpose.msra.mxu0 0.0
    %1460 = vmatpush.xpose.msra.mxu0 0.0
    %1461 = vmatpush.xpose.msra.mxu0 0.0
    %1462 = vmatpush.xpose.msra.mxu0 0.0
    %1463 = vmatpush.xpose.msra.mxu0 0.0
    %1464 = vmatpush.xpose.msra.mxu0 0.0
    %1465 = vmatpush.xpose.msra.mxu0 0.0
    %1466 = vmatpush.xpose.msra.mxu0 0.0
    %1467 = vmatpush.xpose.msra.mxu0 0.0
    %1468 = vmatpush.xpose.msra.mxu0 0.0
    %1469 = vmatpush.xpose.msra.mxu0 0.0
    %1470 = vmatpush.xpose.msra.mxu0 0.0
    %1471 = vmatpush.xpose.msra.mxu0 0.0
    %1472 = vmatpush.xpose.msra.mxu0 0.0
    %1473 = vmatpush.xpose.msra.mxu0 %v1456
    %1474 = vmatmul.f32.gmra.mxu0 %v1454
    %v1475 = vpop.f32.mrf.mxu0
    %v1476 = vadd.f32 0.0, %v1475
    %1477 = vdwg.mxu0
    %1478 = vrot.lane.b32.xlu0 %v243, 112
    %v1479 = vpop.permute.xlu0 %1478
    %1480 = vrot.lane.b32.xlu0 %v292, 112
    %v1481 = vpop.permute.xlu0 %1480
    %v1482 = vsel %vm385, %v1479, 0
    %v1484 = vsel %vm385, %v1481, 0
    %1486 = vmatpush.xpose.msra.mxu0 0.0
    %1487 = vmatpush.xpose.msra.mxu0 0.0
    %1488 = vmatpush.xpose.msra.mxu0 0.0
    %1489 = vmatpush.xpose.msra.mxu0 0.0
    %1490 = vmatpush.xpose.msra.mxu0 0.0
    %1491 = vmatpush.xpose.msra.mxu0 0.0
    %1492 = vmatpush.xpose.msra.mxu0 0.0
    %1493 = vmatpush.xpose.msra.mxu0 0.0
    %1494 = vmatpush.xpose.msra.mxu0 0.0
    %1495 = vmatpush.xpose.msra.mxu0 0.0
    %1496 = vmatpush.xpose.msra.mxu0 0.0
    %1497 = vmatpush.xpose.msra.mxu0 0.0
    %1498 = vmatpush.xpose.msra.mxu0 0.0
    %1499 = vmatpush.xpose.msra.mxu0 0.0
    %1500 = vmatpush.xpose.msra.mxu0 0.0
    %1501 = vmatpush.xpose.msra.mxu0 %v1484
    %1502 = vmatmul.f32.gmra.mxu0 %v1482
    %v1503 = vpop.f32.mrf.mxu0
    %v1504 = vadd.f32 0.0, %v1503
    %1505 = vdwg.mxu0
    %1506 = vrot.lane.b32.xlu0 %v246, 112
    %v1507 = vpop.permute.xlu0 %1506
    %1508 = vrot.lane.b32.xlu0 %v295, 112
    %v1509 = vpop.permute.xlu0 %1508
    %v1510 = vsel %vm385, %v1507, 0
    %v1512 = vsel %vm385, %v1509, 0
    %1514 = vmatpush.xpose.msra.mxu0 0.0
    %1515 = vmatpush.xpose.msra.mxu0 0.0
    %1516 = vmatpush.xpose.msra.mxu0 0.0
    %1517 = vmatpush.xpose.msra.mxu0 0.0
    %1518 = vmatpush.xpose.msra.mxu0 0.0
    %1519 = vmatpush.xpose.msra.mxu0 0.0
    %1520 = vmatpush.xpose.msra.mxu0 0.0
    %1521 = vmatpush.xpose.msra.mxu0 0.0
    %1522 = vmatpush.xpose.msra.mxu0 0.0
    %1523 = vmatpush.xpose.msra.mxu0 0.0
    %1524 = vmatpush.xpose.msra.mxu0 0.0
    %1525 = vmatpush.xpose.msra.mxu0 0.0
    %1526 = vmatpush.xpose.msra.mxu0 0.0
    %1527 = vmatpush.xpose.msra.mxu0 0.0
    %1528 = vmatpush.xpose.msra.mxu0 0.0
    %1529 = vmatpush.xpose.msra.mxu0 %v1512
    %1530 = vmatmul.f32.gmra.mxu0 %v1510
    %v1531 = vpop.f32.mrf.mxu0
    %v1532 = vadd.f32 0.0, %v1531
    %1533 = vdwg.mxu0
    %1534 = vrot.lane.b32.xlu0 %v249, 112
    %v1535 = vpop.permute.xlu0 %1534
    %1536 = vrot.lane.b32.xlu0 %v298, 112
    %v1537 = vpop.permute.xlu0 %1536
    %v1538 = vsel %vm385, %v1535, 0
    %v1540 = vsel %vm385, %v1537, 0
    %1542 = vmatpush.xpose.msra.mxu0 0.0
    %1543 = vmatpush.xpose.msra.mxu0 0.0
    %1544 = vmatpush.xpose.msra.mxu0 0.0
    %1545 = vmatpush.xpose.msra.mxu0 0.0
    %1546 = vmatpush.xpose.msra.mxu0 0.0
    %1547 = vmatpush.xpose.msra.mxu0 0.0
    %1548 = vmatpush.xpose.msra.mxu0 0.0
    %1549 = vmatpush.xpose.msra.mxu0 0.0
    %1550 = vmatpush.xpose.msra.mxu0 0.0
    %1551 = vmatpush.xpose.msra.mxu0 0.0
    %1552 = vmatpush.xpose.msra.mxu0 0.0
    %1553 = vmatpush.xpose.msra.mxu0 0.0
    %1554 = vmatpush.xpose.msra.mxu0 0.0
    %1555 = vmatpush.xpose.msra.mxu0 0.0
    %1556 = vmatpush.xpose.msra.mxu0 0.0
    %1557 = vmatpush.xpose.msra.mxu0 %v1540
    %1558 = vmatmul.f32.gmra.mxu0 %v1538
    %v1559 = vpop.f32.mrf.mxu0
    %v1560 = vadd.f32 0.0, %v1559
    %1561 = vdwg.mxu0
    %1562 = vrot.lane.b32.xlu0 %v252, 112
    %v1563 = vpop.permute.xlu0 %1562
    %1564 = vrot.lane.b32.xlu0 %v301, 112
    %v1565 = vpop.permute.xlu0 %1564
    %v1566 = vsel %vm385, %v1563, 0
    %v1568 = vsel %vm385, %v1565, 0
    %1570 = vmatpush.xpose.msra.mxu0 0.0
    %1571 = vmatpush.xpose.msra.mxu0 0.0
    %1572 = vmatpush.xpose.msra.mxu0 0.0
    %1573 = vmatpush.xpose.msra.mxu0 0.0
    %1574 = vmatpush.xpose.msra.mxu0 0.0
    %1575 = vmatpush.xpose.msra.mxu0 0.0
    %1576 = vmatpush.xpose.msra.mxu0 0.0
    %1577 = vmatpush.xpose.msra.mxu0 0.0
    %1578 = vmatpush.xpose.msra.mxu0 0.0
    %1579 = vmatpush.xpose.msra.mxu0 0.0
    %1580 = vmatpush.xpose.msra.mxu0 0.0
    %1581 = vmatpush.xpose.msra.mxu0 0.0
    %1582 = vmatpush.xpose.msra.mxu0 0.0
    %1583 = vmatpush.xpose.msra.mxu0 0.0
    %1584 = vmatpush.xpose.msra.mxu0 0.0
    %1585 = vmatpush.xpose.msra.mxu0 %v1568
    %1586 = vmatmul.f32.gmra.mxu0 %v1566
    %v1587 = vpop.f32.mrf.mxu0
    %v1588 = vadd.f32 0.0, %v1587
    %1589 = vdwg.mxu0
    %1590 = vrot.lane.b32.xlu0 %v255, 112
    %v1591 = vpop.permute.xlu0 %1590
    %1592 = vrot.lane.b32.xlu0 %v304, 112
    %v1593 = vpop.permute.xlu0 %1592
    %v1594 = vsel %vm385, %v1591, 0
    %v1596 = vsel %vm385, %v1593, 0
    %1598 = vmatpush.xpose.msra.mxu0 0.0
    %1599 = vmatpush.xpose.msra.mxu0 0.0
    %1600 = vmatpush.xpose.msra.mxu0 0.0
    %1601 = vmatpush.xpose.msra.mxu0 0.0
    %1602 = vmatpush.xpose.msra.mxu0 0.0
    %1603 = vmatpush.xpose.msra.mxu0 0.0
    %1604 = vmatpush.xpose.msra.mxu0 0.0
    %1605 = vmatpush.xpose.msra.mxu0 0.0
    %1606 = vmatpush.xpose.msra.mxu0 0.0
    %1607 = vmatpush.xpose.msra.mxu0 0.0
    %1608 = vmatpush.xpose.msra.mxu0 0.0
    %1609 = vmatpush.xpose.msra.mxu0 0.0
    %1610 = vmatpush.xpose.msra.mxu0 0.0
    %1611 = vmatpush.xpose.msra.mxu0 0.0
    %1612 = vmatpush.xpose.msra.mxu0 0.0
    %1613 = vmatpush.xpose.msra.mxu0 %v1596
    %1614 = vmatmul.f32.gmra.mxu0 %v1594
    %v1615 = vpop.f32.mrf.mxu0
    %v1616 = vadd.f32 0.0, %v1615
    %1617 = vdwg.mxu0
    %1618 = vrot.lane.b32.xlu0 %v258, 112
    %v1619 = vpop.permute.xlu0 %1618
    %1620 = vrot.lane.b32.xlu0 %v307, 112
    %v1621 = vpop.permute.xlu0 %1620
    %v1622 = vsel %vm385, %v1619, 0
    %v1624 = vsel %vm385, %v1621, 0
    %1626 = vmatpush.xpose.msra.mxu0 0.0
    %1627 = vmatpush.xpose.msra.mxu0 0.0
    %1628 = vmatpush.xpose.msra.mxu0 0.0
    %1629 = vmatpush.xpose.msra.mxu0 0.0
    %1630 = vmatpush.xpose.msra.mxu0 0.0
    %1631 = vmatpush.xpose.msra.mxu0 0.0
    %1632 = vmatpush.xpose.msra.mxu0 0.0
    %1633 = vmatpush.xpose.msra.mxu0 0.0
    %1634 = vmatpush.xpose.msra.mxu0 0.0
    %1635 = vmatpush.xpose.msra.mxu0 0.0
    %1636 = vmatpush.xpose.msra.mxu0 0.0
    %1637 = vmatpush.xpose.msra.mxu0 0.0
    %1638 = vmatpush.xpose.msra.mxu0 0.0
    %1639 = vmatpush.xpose.msra.mxu0 0.0
    %1640 = vmatpush.xpose.msra.mxu0 0.0
    %1641 = vmatpush.xpose.msra.mxu0 %v1624
    %1642 = vmatmul.f32.gmra.mxu0 %v1622
    %v1643 = vpop.f32.mrf.mxu0
    %v1644 = vadd.f32 0.0, %v1643
    %1645 = vdwg.mxu0
    %1646 = vrot.lane.b32.xlu0 %v261, 112
    %v1647 = vpop.permute.xlu0 %1646
    %1648 = vrot.lane.b32.xlu0 %v310, 112
    %v1649 = vpop.permute.xlu0 %1648
    %v1650 = vsel %vm385, %v1647, 0
    %v1652 = vsel %vm385, %v1649, 0
    %1654 = vmatpush.xpose.msra.mxu0 0.0
    %1655 = vmatpush.xpose.msra.mxu0 0.0
    %1656 = vmatpush.xpose.msra.mxu0 0.0
    %1657 = vmatpush.xpose.msra.mxu0 0.0
    %1658 = vmatpush.xpose.msra.mxu0 0.0
    %1659 = vmatpush.xpose.msra.mxu0 0.0
    %1660 = vmatpush.xpose.msra.mxu0 0.0
    %1661 = vmatpush.xpose.msra.mxu0 0.0
    %1662 = vmatpush.xpose.msra.mxu0 0.0
    %1663 = vmatpush.xpose.msra.mxu0 0.0
    %1664 = vmatpush.xpose.msra.mxu0 0.0
    %1665 = vmatpush.xpose.msra.mxu0 0.0
    %1666 = vmatpush.xpose.msra.mxu0 0.0
    %1667 = vmatpush.xpose.msra.mxu0 0.0
    %1668 = vmatpush.xpose.msra.mxu0 0.0
    %1669 = vmatpush.xpose.msra.mxu0 %v1652
    %1670 = vmatmul.f32.gmra.mxu0 %v1650
    %v1671 = vpop.f32.mrf.mxu0
    %v1672 = vadd.f32 0.0, %v1671
    %1673 = vdwg.mxu0
    %v1674 = vmul.f32 %v1476, 0.35355338
    %v1675 = vmul.f32 %v1504, 0.35355338
    %v1676 = vmul.f32 %v1532, 0.35355338
    %v1677 = vmul.f32 %v1560, 0.35355338
    %v1678 = vmul.f32 %v1588, 0.35355338
    %v1679 = vmul.f32 %v1616, 0.35355338
    %v1680 = vmul.f32 %v1644, 0.35355338
    %v1681 = vmul.f32 %v1672, 0.35355338
    %v1682 = vadd.f32 %v1674, %v610
    %v1683 = vadd.f32 %v1675, %v611
    %v1684 = vadd.f32 %v1676, %v612
    %v1685 = vadd.f32 %v1677, %v613
    %v1686 = vadd.f32 %v1678, %v614
    %v1687 = vadd.f32 %v1679, %v615
    %v1688 = vadd.f32 %v1680, %v616
    %v1689 = vadd.f32 %v1681, %v617
    %v1690 = vsel %vm385, %v1682, -inf
    %1691 = vmax.xlane.f32.xlu0 %v1690
    %v1692 = vpop.xlane.xlu0 %1691
    %v1693 = vsel %vm385, %v1683, -inf
    %1694 = vmax.xlane.f32.xlu0 %v1693
    %v1695 = vpop.xlane.xlu0 %1694
    %v1696 = vsel %vm385, %v1684, -inf
    %1697 = vmax.xlane.f32.xlu0 %v1696
    %v1698 = vpop.xlane.xlu0 %1697
    %v1699 = vsel %vm385, %v1685, -inf
    %1700 = vmax.xlane.f32.xlu0 %v1699
    %v1701 = vpop.xlane.xlu0 %1700
    %v1702 = vsel %vm385, %v1686, -inf
    %1703 = vmax.xlane.f32.xlu0 %v1702
    %v1704 = vpop.xlane.xlu0 %1703
    %v1705 = vsel %vm385, %v1687, -inf
    %1706 = vmax.xlane.f32.xlu0 %v1705
    %v1707 = vpop.xlane.xlu0 %1706
    %v1708 = vsel %vm385, %v1688, -inf
    %1709 = vmax.xlane.f32.xlu0 %v1708
    %v1710 = vpop.xlane.xlu0 %1709
    %v1711 = vsel %vm385, %v1689, -inf
    %1712 = vmax.xlane.f32.xlu0 %v1711
    %v1713 = vpop.xlane.xlu0 %1712
    %v1714 = vsub.f32 %v1682, %v1692
    %v1715 = vsub.f32 %v1683, %v1695
    %v1716 = vsub.f32 %v1684, %v1698
    %v1717 = vsub.f32 %v1685, %v1701
    %v1718 = vsub.f32 %v1686, %v1704
    %v1719 = vsub.f32 %v1687, %v1707
    %v1720 = vsub.f32 %v1688, %v1710
    %v1721 = vsub.f32 %v1689, %v1713
    %v1722 = vmul.f32 %v1714, 1.442695
    %v1723 = vpow.pop %v1722
    %v1724 = vmul.f32 %v1715, 1.442695
    %v1725 = vpow.pop %v1724
    %v1726 = vmul.f32 %v1716, 1.442695
    %v1727 = vpow.pop %v1726
    %v1728 = vmul.f32 %v1717, 1.442695
    %v1729 = vpow.pop %v1728
    %v1730 = vmul.f32 %v1718, 1.442695
    %v1731 = vpow.pop %v1730
    %v1732 = vmul.f32 %v1719, 1.442695
    %v1733 = vpow.pop %v1732
    %v1734 = vmul.f32 %v1720, 1.442695
    %v1735 = vpow.pop %v1734
    %v1736 = vmul.f32 %v1721, 1.442695
    %v1737 = vpow.pop %v1736
    %v1738 = vsel %vm385, %v1723, 0.0
    %1739 = vadd.xlane.f32.xlu0 %v1738
    %v1740 = vpop.xlane.xlu0 %1739
    %v1741 = vsel %vm385, %v1725, 0.0
    %1742 = vadd.xlane.f32.xlu0 %v1741
    %v1743 = vpop.xlane.xlu0 %1742
    %v1744 = vsel %vm385, %v1727, 0.0
    %1745 = vadd.xlane.f32.xlu0 %v1744
    %v1746 = vpop.xlane.xlu0 %1745
    %v1747 = vsel %vm385, %v1729, 0.0
    %1748 = vadd.xlane.f32.xlu0 %v1747
    %v1749 = vpop.xlane.xlu0 %1748
    %v1750 = vsel %vm385, %v1731, 0.0
    %1751 = vadd.xlane.f32.xlu0 %v1750
    %v1752 = vpop.xlane.xlu0 %1751
    %v1753 = vsel %vm385, %v1733, 0.0
    %1754 = vadd.xlane.f32.xlu0 %v1753
    %v1755 = vpop.xlane.xlu0 %1754
    %v1756 = vsel %vm385, %v1735, 0.0
    %1757 = vadd.xlane.f32.xlu0 %v1756
    %v1758 = vpop.xlane.xlu0 %1757
    %v1759 = vsel %vm385, %v1737, 0.0
    %1760 = vadd.xlane.f32.xlu0 %v1759
    %v1761 = vpop.xlane.xlu0 %1760
    %v1762 = vrcp.pop %v1740
    %v1763 = vrcp.pop %v1743
    %v1764 = vrcp.pop %v1746
    %v1765 = vrcp.pop %v1749
    %v1766 = vrcp.pop %v1752
    %v1767 = vrcp.pop %v1755
    %v1768 = vrcp.pop %v1758
    %v1769 = vrcp.pop %v1761
    %v1770 = vmul.f32 %v1723, %v1762
    %v1771 = vmul.f32 %v1725, %v1763
    %v1772 = vmul.f32 %v1727, %v1764
    %v1773 = vmul.f32 %v1729, %v1765
    %v1774 = vmul.f32 %v1731, %v1766
    %v1775 = vmul.f32 %v1733, %v1767
    %v1776 = vmul.f32 %v1735, %v1768
    %v1777 = vmul.f32 %v1737, %v1769
    %1778 = vrot.lane.b32.xlu0 %v338, 112
    %v1779 = vpop.permute.xlu0 %1778
    %v1782 = vsel %vm385, %v1770, 0
    %1784 = vmatpush.msra.mxu0 0.0
    %1785 = vmatpush.msra.mxu0 0.0
    %1786 = vmatpush.msra.mxu0 0.0
    %1787 = vmatpush.msra.mxu0 0.0
    %1788 = vmatpush.msra.mxu0 0.0
    %1789 = vmatpush.msra.mxu0 0.0
    %1790 = vmatpush.msra.mxu0 0.0
    %1791 = vmatpush.msra.mxu0 0.0
    %1792 = vmatpush.msra.mxu0 0.0
    %1793 = vmatpush.msra.mxu0 0.0
    %1794 = vmatpush.msra.mxu0 0.0
    %1795 = vmatpush.msra.mxu0 0.0
    %1796 = vmatpush.msra.mxu0 0.0
    %1797 = vmatpush.msra.mxu0 0.0
    %1798 = vmatpush.msra.mxu0 0.0
    %1799 = vmatpush.msra.mxu0 %v1779
    %1800 = vmatmul.f32.gmra.mxu0 %v1782
    %v1801 = vpop.f32.mrf.mxu0
    %v1802 = vadd.f32 0.0, %v1801
    %1803 = vdwg.mxu0
    %1804 = vrot.lane.b32.xlu0 %v341, 112
    %v1805 = vpop.permute.xlu0 %1804
    %v1808 = vsel %vm385, %v1771, 0
    %1810 = vmatpush.msra.mxu0 0.0
    %1811 = vmatpush.msra.mxu0 0.0
    %1812 = vmatpush.msra.mxu0 0.0
    %1813 = vmatpush.msra.mxu0 0.0
    %1814 = vmatpush.msra.mxu0 0.0
    %1815 = vmatpush.msra.mxu0 0.0
    %1816 = vmatpush.msra.mxu0 0.0
    %1817 = vmatpush.msra.mxu0 0.0
    %1818 = vmatpush.msra.mxu0 0.0
    %1819 = vmatpush.msra.mxu0 0.0
    %1820 = vmatpush.msra.mxu0 0.0
    %1821 = vmatpush.msra.mxu0 0.0
    %1822 = vmatpush.msra.mxu0 0.0
    %1823 = vmatpush.msra.mxu0 0.0
    %1824 = vmatpush.msra.mxu0 0.0
    %1825 = vmatpush.msra.mxu0 %v1805
    %1826 = vmatmul.f32.gmra.mxu0 %v1808
    %v1827 = vpop.f32.mrf.mxu0
    %v1828 = vadd.f32 0.0, %v1827
    %1829 = vdwg.mxu0
    %1830 = vrot.lane.b32.xlu0 %v344, 112
    %v1831 = vpop.permute.xlu0 %1830
    %v1834 = vsel %vm385, %v1772, 0
    %1836 = vmatpush.msra.mxu0 0.0
    %1837 = vmatpush.msra.mxu0 0.0
    %1838 = vmatpush.msra.mxu0 0.0
    %1839 = vmatpush.msra.mxu0 0.0
    %1840 = vmatpush.msra.mxu0 0.0
    %1841 = vmatpush.msra.mxu0 0.0
    %1842 = vmatpush.msra.mxu0 0.0
    %1843 = vmatpush.msra.mxu0 0.0
    %1844 = vmatpush.msra.mxu0 0.0
    %1845 = vmatpush.msra.mxu0 0.0
    %1846 = vmatpush.msra.mxu0 0.0
    %1847 = vmatpush.msra.mxu0 0.0
    %1848 = vmatpush.msra.mxu0 0.0
    %1849 = vmatpush.msra.mxu0 0.0
    %1850 = vmatpush.msra.mxu0 0.0
    %1851 = vmatpush.msra.mxu0 %v1831
    %1852 = vmatmul.f32.gmra.mxu0 %v1834
    %v1853 = vpop.f32.mrf.mxu0
    %v1854 = vadd.f32 0.0, %v1853
    %1855 = vdwg.mxu0
    %1856 = vrot.lane.b32.xlu0 %v347, 112
    %v1857 = vpop.permute.xlu0 %1856
    %v1860 = vsel %vm385, %v1773, 0
    %1862 = vmatpush.msra.mxu0 0.0
    %1863 = vmatpush.msra.mxu0 0.0
    %1864 = vmatpush.msra.mxu0 0.0
    %1865 = vmatpush.msra.mxu0 0.0
    %1866 = vmatpush.msra.mxu0 0.0
    %1867 = vmatpush.msra.mxu0 0.0
    %1868 = vmatpush.msra.mxu0 0.0
    %1869 = vmatpush.msra.mxu0 0.0
    %1870 = vmatpush.msra.mxu0 0.0
    %1871 = vmatpush.msra.mxu0 0.0
    %1872 = vmatpush.msra.mxu0 0.0
    %1873 = vmatpush.msra.mxu0 0.0
    %1874 = vmatpush.msra.mxu0 0.0
    %1875 = vmatpush.msra.mxu0 0.0
    %1876 = vmatpush.msra.mxu0 0.0
    %1877 = vmatpush.msra.mxu0 %v1857
    %1878 = vmatmul.f32.gmra.mxu0 %v1860
    %v1879 = vpop.f32.mrf.mxu0
    %v1880 = vadd.f32 0.0, %v1879
    %1881 = vdwg.mxu0
    %1882 = vrot.lane.b32.xlu0 %v350, 112
    %v1883 = vpop.permute.xlu0 %1882
    %v1886 = vsel %vm385, %v1774, 0
    %1888 = vmatpush.msra.mxu0 0.0
    %1889 = vmatpush.msra.mxu0 0.0
    %1890 = vmatpush.msra.mxu0 0.0
    %1891 = vmatpush.msra.mxu0 0.0
    %1892 = vmatpush.msra.mxu0 0.0
    %1893 = vmatpush.msra.mxu0 0.0
    %1894 = vmatpush.msra.mxu0 0.0
    %1895 = vmatpush.msra.mxu0 0.0
    %1896 = vmatpush.msra.mxu0 0.0
    %1897 = vmatpush.msra.mxu0 0.0
    %1898 = vmatpush.msra.mxu0 0.0
    %1899 = vmatpush.msra.mxu0 0.0
    %1900 = vmatpush.msra.mxu0 0.0
    %1901 = vmatpush.msra.mxu0 0.0
    %1902 = vmatpush.msra.mxu0 0.0
    %1903 = vmatpush.msra.mxu0 %v1883
    %1904 = vmatmul.f32.gmra.mxu0 %v1886
    %v1905 = vpop.f32.mrf.mxu0
    %v1906 = vadd.f32 0.0, %v1905
    %1907 = vdwg.mxu0
    %1908 = vrot.lane.b32.xlu0 %v353, 112
    %v1909 = vpop.permute.xlu0 %1908
    %v1912 = vsel %vm385, %v1775, 0
    %1914 = vmatpush.msra.mxu0 0.0
    %1915 = vmatpush.msra.mxu0 0.0
    %1916 = vmatpush.msra.mxu0 0.0
    %1917 = vmatpush.msra.mxu0 0.0
    %1918 = vmatpush.msra.mxu0 0.0
    %1919 = vmatpush.msra.mxu0 0.0
    %1920 = vmatpush.msra.mxu0 0.0
    %1921 = vmatpush.msra.mxu0 0.0
    %1922 = vmatpush.msra.mxu0 0.0
    %1923 = vmatpush.msra.mxu0 0.0
    %1924 = vmatpush.msra.mxu0 0.0
    %1925 = vmatpush.msra.mxu0 0.0
    %1926 = vmatpush.msra.mxu0 0.0
    %1927 = vmatpush.msra.mxu0 0.0
    %1928 = vmatpush.msra.mxu0 0.0
    %1929 = vmatpush.msra.mxu0 %v1909
    %1930 = vmatmul.f32.gmra.mxu0 %v1912
    %v1931 = vpop.f32.mrf.mxu0
    %v1932 = vadd.f32 0.0, %v1931
    %1933 = vdwg.mxu0
    %1934 = vrot.lane.b32.xlu0 %v356, 112
    %v1935 = vpop.permute.xlu0 %1934
    %v1938 = vsel %vm385, %v1776, 0
    %1940 = vmatpush.msra.mxu0 0.0
    %1941 = vmatpush.msra.mxu0 0.0
    %1942 = vmatpush.msra.mxu0 0.0
    %1943 = vmatpush.msra.mxu0 0.0
    %1944 = vmatpush.msra.mxu0 0.0
    %1945 = vmatpush.msra.mxu0 0.0
    %1946 = vmatpush.msra.mxu0 0.0
    %1947 = vmatpush.msra.mxu0 0.0
    %1948 = vmatpush.msra.mxu0 0.0
    %1949 = vmatpush.msra.mxu0 0.0
    %1950 = vmatpush.msra.mxu0 0.0
    %1951 = vmatpush.msra.mxu0 0.0
    %1952 = vmatpush.msra.mxu0 0.0
    %1953 = vmatpush.msra.mxu0 0.0
    %1954 = vmatpush.msra.mxu0 0.0
    %1955 = vmatpush.msra.mxu0 %v1935
    %1956 = vmatmul.f32.gmra.mxu0 %v1938
    %v1957 = vpop.f32.mrf.mxu0
    %v1958 = vadd.f32 0.0, %v1957
    %1959 = vdwg.mxu0
    %1960 = vrot.lane.b32.xlu0 %v359, 112
    %v1961 = vpop.permute.xlu0 %1960
    %v1964 = vsel %vm385, %v1777, 0
    %1966 = vmatpush.msra.mxu0 0.0
    %1967 = vmatpush.msra.mxu0 0.0
    %1968 = vmatpush.msra.mxu0 0.0
    %1969 = vmatpush.msra.mxu0 0.0
    %1970 = vmatpush.msra.mxu0 0.0
    %1971 = vmatpush.msra.mxu0 0.0
    %1972 = vmatpush.msra.mxu0 0.0
    %1973 = vmatpush.msra.mxu0 0.0
    %1974 = vmatpush.msra.mxu0 0.0
    %1975 = vmatpush.msra.mxu0 0.0
    %1976 = vmatpush.msra.mxu0 0.0
    %1977 = vmatpush.msra.mxu0 0.0
    %1978 = vmatpush.msra.mxu0 0.0
    %1979 = vmatpush.msra.mxu0 0.0
    %1980 = vmatpush.msra.mxu0 0.0
    %1981 = vmatpush.msra.mxu0 %v1961
    %1982 = vmatmul.f32.gmra.mxu0 %v1964
    %v1983 = vpop.f32.mrf.mxu0
    %v1984 = vadd.f32 0.0, %v1983
    %1985 = vdwg.mxu0
    %1986 = vrot.lane.b32.xlu0 %v240, 104
    %v1987 = vpop.permute.xlu0 %1986
    %1988 = vrot.lane.b32.xlu0 %v289, 104
    %v1989 = vpop.permute.xlu0 %1988
    %v1990 = vsel %vm385, %v1987, 0
    %v1992 = vsel %vm385, %v1989, 0
    %1994 = vmatpush.xpose.msra.mxu0 0.0
    %1995 = vmatpush.xpose.msra.mxu0 0.0
    %1996 = vmatpush.xpose.msra.mxu0 0.0
    %1997 = vmatpush.xpose.msra.mxu0 0.0
    %1998 = vmatpush.xpose.msra.mxu0 0.0
    %1999 = vmatpush.xpose.msra.mxu0 0.0
    %2000 = vmatpush.xpose.msra.mxu0 0.0
    %2001 = vmatpush.xpose.msra.mxu0 0.0
    %2002 = vmatpush.xpose.msra.mxu0 0.0
    %2003 = vmatpush.xpose.msra.mxu0 0.0
    %2004 = vmatpush.xpose.msra.mxu0 0.0
    %2005 = vmatpush.xpose.msra.mxu0 0.0
    %2006 = vmatpush.xpose.msra.mxu0 0.0
    %2007 = vmatpush.xpose.msra.mxu0 0.0
    %2008 = vmatpush.xpose.msra.mxu0 0.0
    %2009 = vmatpush.xpose.msra.mxu0 %v1992
    %2010 = vmatmul.f32.gmra.mxu0 %v1990
    %v2011 = vpop.f32.mrf.mxu0
    %v2012 = vadd.f32 0.0, %v2011
    %2013 = vdwg.mxu0
    %2014 = vrot.lane.b32.xlu0 %v243, 104
    %v2015 = vpop.permute.xlu0 %2014
    %2016 = vrot.lane.b32.xlu0 %v292, 104
    %v2017 = vpop.permute.xlu0 %2016
    %v2018 = vsel %vm385, %v2015, 0
    %v2020 = vsel %vm385, %v2017, 0
    %2022 = vmatpush.xpose.msra.mxu0 0.0
    %2023 = vmatpush.xpose.msra.mxu0 0.0
    %2024 = vmatpush.xpose.msra.mxu0 0.0
    %2025 = vmatpush.xpose.msra.mxu0 0.0
    %2026 = vmatpush.xpose.msra.mxu0 0.0
    %2027 = vmatpush.xpose.msra.mxu0 0.0
    %2028 = vmatpush.xpose.msra.mxu0 0.0
    %2029 = vmatpush.xpose.msra.mxu0 0.0
    %2030 = vmatpush.xpose.msra.mxu0 0.0
    %2031 = vmatpush.xpose.msra.mxu0 0.0
    %2032 = vmatpush.xpose.msra.mxu0 0.0
    %2033 = vmatpush.xpose.msra.mxu0 0.0
    %2034 = vmatpush.xpose.msra.mxu0 0.0
    %2035 = vmatpush.xpose.msra.mxu0 0.0
    %2036 = vmatpush.xpose.msra.mxu0 0.0
    %2037 = vmatpush.xpose.msra.mxu0 %v2020
    %2038 = vmatmul.f32.gmra.mxu0 %v2018
    %v2039 = vpop.f32.mrf.mxu0
    %v2040 = vadd.f32 0.0, %v2039
    %2041 = vdwg.mxu0
    %2042 = vrot.lane.b32.xlu0 %v246, 104
    %v2043 = vpop.permute.xlu0 %2042
    %2044 = vrot.lane.b32.xlu0 %v295, 104
    %v2045 = vpop.permute.xlu0 %2044
    %v2046 = vsel %vm385, %v2043, 0
    %v2048 = vsel %vm385, %v2045, 0
    %2050 = vmatpush.xpose.msra.mxu0 0.0
    %2051 = vmatpush.xpose.msra.mxu0 0.0
    %2052 = vmatpush.xpose.msra.mxu0 0.0
    %2053 = vmatpush.xpose.msra.mxu0 0.0
    %2054 = vmatpush.xpose.msra.mxu0 0.0
    %2055 = vmatpush.xpose.msra.mxu0 0.0
    %2056 = vmatpush.xpose.msra.mxu0 0.0
    %2057 = vmatpush.xpose.msra.mxu0 0.0
    %2058 = vmatpush.xpose.msra.mxu0 0.0
    %2059 = vmatpush.xpose.msra.mxu0 0.0
    %2060 = vmatpush.xpose.msra.mxu0 0.0
    %2061 = vmatpush.xpose.msra.mxu0 0.0
    %2062 = vmatpush.xpose.msra.mxu0 0.0
    %2063 = vmatpush.xpose.msra.mxu0 0.0
    %2064 = vmatpush.xpose.msra.mxu0 0.0
    %2065 = vmatpush.xpose.msra.mxu0 %v2048
    %2066 = vmatmul.f32.gmra.mxu0 %v2046
    %v2067 = vpop.f32.mrf.mxu0
    %v2068 = vadd.f32 0.0, %v2067
    %2069 = vdwg.mxu0
    %2070 = vrot.lane.b32.xlu0 %v249, 104
    %v2071 = vpop.permute.xlu0 %2070
    %2072 = vrot.lane.b32.xlu0 %v298, 104
    %v2073 = vpop.permute.xlu0 %2072
    %v2074 = vsel %vm385, %v2071, 0
    %v2076 = vsel %vm385, %v2073, 0
    %2078 = vmatpush.xpose.msra.mxu0 0.0
    %2079 = vmatpush.xpose.msra.mxu0 0.0
    %2080 = vmatpush.xpose.msra.mxu0 0.0
    %2081 = vmatpush.xpose.msra.mxu0 0.0
    %2082 = vmatpush.xpose.msra.mxu0 0.0
    %2083 = vmatpush.xpose.msra.mxu0 0.0
    %2084 = vmatpush.xpose.msra.mxu0 0.0
    %2085 = vmatpush.xpose.msra.mxu0 0.0
    %2086 = vmatpush.xpose.msra.mxu0 0.0
    %2087 = vmatpush.xpose.msra.mxu0 0.0
    %2088 = vmatpush.xpose.msra.mxu0 0.0
    %2089 = vmatpush.xpose.msra.mxu0 0.0
    %2090 = vmatpush.xpose.msra.mxu0 0.0
    %2091 = vmatpush.xpose.msra.mxu0 0.0
    %2092 = vmatpush.xpose.msra.mxu0 0.0
    %2093 = vmatpush.xpose.msra.mxu0 %v2076
    %2094 = vmatmul.f32.gmra.mxu0 %v2074
    %v2095 = vpop.f32.mrf.mxu0
    %v2096 = vadd.f32 0.0, %v2095
    %2097 = vdwg.mxu0
    %2098 = vrot.lane.b32.xlu0 %v252, 104
    %v2099 = vpop.permute.xlu0 %2098
    %2100 = vrot.lane.b32.xlu0 %v301, 104
    %v2101 = vpop.permute.xlu0 %2100
    %v2102 = vsel %vm385, %v2099, 0
    %v2104 = vsel %vm385, %v2101, 0
    %2106 = vmatpush.xpose.msra.mxu0 0.0
    %2107 = vmatpush.xpose.msra.mxu0 0.0
    %2108 = vmatpush.xpose.msra.mxu0 0.0
    %2109 = vmatpush.xpose.msra.mxu0 0.0
    %2110 = vmatpush.xpose.msra.mxu0 0.0
    %2111 = vmatpush.xpose.msra.mxu0 0.0
    %2112 = vmatpush.xpose.msra.mxu0 0.0
    %2113 = vmatpush.xpose.msra.mxu0 0.0
    %2114 = vmatpush.xpose.msra.mxu0 0.0
    %2115 = vmatpush.xpose.msra.mxu0 0.0
    %2116 = vmatpush.xpose.msra.mxu0 0.0
    %2117 = vmatpush.xpose.msra.mxu0 0.0
    %2118 = vmatpush.xpose.msra.mxu0 0.0
    %2119 = vmatpush.xpose.msra.mxu0 0.0
    %2120 = vmatpush.xpose.msra.mxu0 0.0
    %2121 = vmatpush.xpose.msra.mxu0 %v2104
    %2122 = vmatmul.f32.gmra.mxu0 %v2102
    %v2123 = vpop.f32.mrf.mxu0
    %v2124 = vadd.f32 0.0, %v2123
    %2125 = vdwg.mxu0
    %2126 = vrot.lane.b32.xlu0 %v255, 104
    %v2127 = vpop.permute.xlu0 %2126
    %2128 = vrot.lane.b32.xlu0 %v304, 104
    %v2129 = vpop.permute.xlu0 %2128
    %v2130 = vsel %vm385, %v2127, 0
    %v2132 = vsel %vm385, %v2129, 0
    %2134 = vmatpush.xpose.msra.mxu0 0.0
    %2135 = vmatpush.xpose.msra.mxu0 0.0
    %2136 = vmatpush.xpose.msra.mxu0 0.0
    %2137 = vmatpush.xpose.msra.mxu0 0.0
    %2138 = vmatpush.xpose.msra.mxu0 0.0
    %2139 = vmatpush.xpose.msra.mxu0 0.0
    %2140 = vmatpush.xpose.msra.mxu0 0.0
    %2141 = vmatpush.xpose.msra.mxu0 0.0
    %2142 = vmatpush.xpose.msra.mxu0 0.0
    %2143 = vmatpush.xpose.msra.mxu0 0.0
    %2144 = vmatpush.xpose.msra.mxu0 0.0
    %2145 = vmatpush.xpose.msra.mxu0 0.0
    %2146 = vmatpush.xpose.msra.mxu0 0.0
    %2147 = vmatpush.xpose.msra.mxu0 0.0
    %2148 = vmatpush.xpose.msra.mxu0 0.0
    %2149 = vmatpush.xpose.msra.mxu0 %v2132
    %2150 = vmatmul.f32.gmra.mxu0 %v2130
    %v2151 = vpop.f32.mrf.mxu0
    %v2152 = vadd.f32 0.0, %v2151
    %2153 = vdwg.mxu0
    %2154 = vrot.lane.b32.xlu0 %v258, 104
    %v2155 = vpop.permute.xlu0 %2154
    %2156 = vrot.lane.b32.xlu0 %v307, 104
    %v2157 = vpop.permute.xlu0 %2156
    %v2158 = vsel %vm385, %v2155, 0
    %v2160 = vsel %vm385, %v2157, 0
    %2162 = vmatpush.xpose.msra.mxu0 0.0
    %2163 = vmatpush.xpose.msra.mxu0 0.0
    %2164 = vmatpush.xpose.msra.mxu0 0.0
    %2165 = vmatpush.xpose.msra.mxu0 0.0
    %2166 = vmatpush.xpose.msra.mxu0 0.0
    %2167 = vmatpush.xpose.msra.mxu0 0.0
    %2168 = vmatpush.xpose.msra.mxu0 0.0
    %2169 = vmatpush.xpose.msra.mxu0 0.0
    %2170 = vmatpush.xpose.msra.mxu0 0.0
    %2171 = vmatpush.xpose.msra.mxu0 0.0
    %2172 = vmatpush.xpose.msra.mxu0 0.0
    %2173 = vmatpush.xpose.msra.mxu0 0.0
    %2174 = vmatpush.xpose.msra.mxu0 0.0
    %2175 = vmatpush.xpose.msra.mxu0 0.0
    %2176 = vmatpush.xpose.msra.mxu0 0.0
    %2177 = vmatpush.xpose.msra.mxu0 %v2160
    %2178 = vmatmul.f32.gmra.mxu0 %v2158
    %v2179 = vpop.f32.mrf.mxu0
    %v2180 = vadd.f32 0.0, %v2179
    %2181 = vdwg.mxu0
    %2182 = vrot.lane.b32.xlu0 %v261, 104
    %v2183 = vpop.permute.xlu0 %2182
    %2184 = vrot.lane.b32.xlu0 %v310, 104
    %v2185 = vpop.permute.xlu0 %2184
    %v2186 = vsel %vm385, %v2183, 0
    %v2188 = vsel %vm385, %v2185, 0
    %2190 = vmatpush.xpose.msra.mxu0 0.0
    %2191 = vmatpush.xpose.msra.mxu0 0.0
    %2192 = vmatpush.xpose.msra.mxu0 0.0
    %2193 = vmatpush.xpose.msra.mxu0 0.0
    %2194 = vmatpush.xpose.msra.mxu0 0.0
    %2195 = vmatpush.xpose.msra.mxu0 0.0
    %2196 = vmatpush.xpose.msra.mxu0 0.0
    %2197 = vmatpush.xpose.msra.mxu0 0.0
    %2198 = vmatpush.xpose.msra.mxu0 0.0
    %2199 = vmatpush.xpose.msra.mxu0 0.0
    %2200 = vmatpush.xpose.msra.mxu0 0.0
    %2201 = vmatpush.xpose.msra.mxu0 0.0
    %2202 = vmatpush.xpose.msra.mxu0 0.0
    %2203 = vmatpush.xpose.msra.mxu0 0.0
    %2204 = vmatpush.xpose.msra.mxu0 0.0
    %2205 = vmatpush.xpose.msra.mxu0 %v2188
    %2206 = vmatmul.f32.gmra.mxu0 %v2186
    %v2207 = vpop.f32.mrf.mxu0
    %v2208 = vadd.f32 0.0, %v2207
    %2209 = vdwg.mxu0
    %v2210 = vmul.f32 %v2012, 0.35355338
    %v2211 = vmul.f32 %v2040, 0.35355338
    %v2212 = vmul.f32 %v2068, 0.35355338
    %v2213 = vmul.f32 %v2096, 0.35355338
    %v2214 = vmul.f32 %v2124, 0.35355338
    %v2215 = vmul.f32 %v2152, 0.35355338
    %v2216 = vmul.f32 %v2180, 0.35355338
    %v2217 = vmul.f32 %v2208, 0.35355338
    %v2218 = vadd.f32 %v2210, %v610
    %v2219 = vadd.f32 %v2211, %v611
    %v2220 = vadd.f32 %v2212, %v612
    %v2221 = vadd.f32 %v2213, %v613
    %v2222 = vadd.f32 %v2214, %v614
    %v2223 = vadd.f32 %v2215, %v615
    %v2224 = vadd.f32 %v2216, %v616
    %v2225 = vadd.f32 %v2217, %v617
    %v2226 = vsel %vm385, %v2218, -inf
    %2227 = vmax.xlane.f32.xlu0 %v2226
    %v2228 = vpop.xlane.xlu0 %2227
    %v2229 = vsel %vm385, %v2219, -inf
    %2230 = vmax.xlane.f32.xlu0 %v2229
    %v2231 = vpop.xlane.xlu0 %2230
    %v2232 = vsel %vm385, %v2220, -inf
    %2233 = vmax.xlane.f32.xlu0 %v2232
    %v2234 = vpop.xlane.xlu0 %2233
    %v2235 = vsel %vm385, %v2221, -inf
    %2236 = vmax.xlane.f32.xlu0 %v2235
    %v2237 = vpop.xlane.xlu0 %2236
    %v2238 = vsel %vm385, %v2222, -inf
    %2239 = vmax.xlane.f32.xlu0 %v2238
    %v2240 = vpop.xlane.xlu0 %2239
    %v2241 = vsel %vm385, %v2223, -inf
    %2242 = vmax.xlane.f32.xlu0 %v2241
    %v2243 = vpop.xlane.xlu0 %2242
    %v2244 = vsel %vm385, %v2224, -inf
    %2245 = vmax.xlane.f32.xlu0 %v2244
    %v2246 = vpop.xlane.xlu0 %2245
    %v2247 = vsel %vm385, %v2225, -inf
    %2248 = vmax.xlane.f32.xlu0 %v2247
    %v2249 = vpop.xlane.xlu0 %2248
    %v2250 = vsub.f32 %v2218, %v2228
    %v2251 = vsub.f32 %v2219, %v2231
    %v2252 = vsub.f32 %v2220, %v2234
    %v2253 = vsub.f32 %v2221, %v2237
    %v2254 = vsub.f32 %v2222, %v2240
    %v2255 = vsub.f32 %v2223, %v2243
    %v2256 = vsub.f32 %v2224, %v2246
    %v2257 = vsub.f32 %v2225, %v2249
    %v2258 = vmul.f32 %v2250, 1.442695
    %v2259 = vpow.pop %v2258
    %v2260 = vmul.f32 %v2251, 1.442695
    %v2261 = vpow.pop %v2260
    %v2262 = vmul.f32 %v2252, 1.442695
    %v2263 = vpow.pop %v2262
    %v2264 = vmul.f32 %v2253, 1.442695
    %v2265 = vpow.pop %v2264
    %v2266 = vmul.f32 %v2254, 1.442695
    %v2267 = vpow.pop %v2266
    %v2268 = vmul.f32 %v2255, 1.442695
    %v2269 = vpow.pop %v2268
    %v2270 = vmul.f32 %v2256, 1.442695
    %v2271 = vpow.pop %v2270
    %v2272 = vmul.f32 %v2257, 1.442695
    %v2273 = vpow.pop %v2272
    %v2274 = vsel %vm385, %v2259, 0.0
    %2275 = vadd.xlane.f32.xlu0 %v2274
    %v2276 = vpop.xlane.xlu0 %2275
    %v2277 = vsel %vm385, %v2261, 0.0
    %2278 = vadd.xlane.f32.xlu0 %v2277
    %v2279 = vpop.xlane.xlu0 %2278
    %v2280 = vsel %vm385, %v2263, 0.0
    %2281 = vadd.xlane.f32.xlu0 %v2280
    %v2282 = vpop.xlane.xlu0 %2281
    %v2283 = vsel %vm385, %v2265, 0.0
    %2284 = vadd.xlane.f32.xlu0 %v2283
    %v2285 = vpop.xlane.xlu0 %2284
    %v2286 = vsel %vm385, %v2267, 0.0
    %2287 = vadd.xlane.f32.xlu0 %v2286
    %v2288 = vpop.xlane.xlu0 %2287
    %v2289 = vsel %vm385, %v2269, 0.0
    %2290 = vadd.xlane.f32.xlu0 %v2289
    %v2291 = vpop.xlane.xlu0 %2290
    %v2292 = vsel %vm385, %v2271, 0.0
    %2293 = vadd.xlane.f32.xlu0 %v2292
    %v2294 = vpop.xlane.xlu0 %2293
    %v2295 = vsel %vm385, %v2273, 0.0
    %2296 = vadd.xlane.f32.xlu0 %v2295
    %v2297 = vpop.xlane.xlu0 %2296
    %v2298 = vrcp.pop %v2276
    %v2299 = vrcp.pop %v2279
    %v2300 = vrcp.pop %v2282
    %v2301 = vrcp.pop %v2285
    %v2302 = vrcp.pop %v2288
    %v2303 = vrcp.pop %v2291
    %v2304 = vrcp.pop %v2294
    %v2305 = vrcp.pop %v2297
    %v2306 = vmul.f32 %v2259, %v2298
    %v2307 = vmul.f32 %v2261, %v2299
    %v2308 = vmul.f32 %v2263, %v2300
    %v2309 = vmul.f32 %v2265, %v2301
    %v2310 = vmul.f32 %v2267, %v2302
    %v2311 = vmul.f32 %v2269, %v2303
    %v2312 = vmul.f32 %v2271, %v2304
    %v2313 = vmul.f32 %v2273, %v2305
    %2314 = vrot.lane.b32.xlu0 %v338, 104
    %v2315 = vpop.permute.xlu0 %2314
    %v2318 = vsel %vm385, %v2306, 0
    %2320 = vmatpush.msra.mxu0 0.0
    %2321 = vmatpush.msra.mxu0 0.0
    %2322 = vmatpush.msra.mxu0 0.0
    %2323 = vmatpush.msra.mxu0 0.0
    %2324 = vmatpush.msra.mxu0 0.0
    %2325 = vmatpush.msra.mxu0 0.0
    %2326 = vmatpush.msra.mxu0 0.0
    %2327 = vmatpush.msra.mxu0 0.0
    %2328 = vmatpush.msra.mxu0 0.0
    %2329 = vmatpush.msra.mxu0 0.0
    %2330 = vmatpush.msra.mxu0 0.0
    %2331 = vmatpush.msra.mxu0 0.0
    %2332 = vmatpush.msra.mxu0 0.0
    %2333 = vmatpush.msra.mxu0 0.0
    %2334 = vmatpush.msra.mxu0 0.0
    %2335 = vmatpush.msra.mxu0 %v2315
    %2336 = vmatmul.f32.gmra.mxu0 %v2318
    %v2337 = vpop.f32.mrf.mxu0
    %v2338 = vadd.f32 0.0, %v2337
    %2339 = vdwg.mxu0
    %2340 = vrot.lane.b32.xlu0 %v341, 104
    %v2341 = vpop.permute.xlu0 %2340
    %v2344 = vsel %vm385, %v2307, 0
    %2346 = vmatpush.msra.mxu0 0.0
    %2347 = vmatpush.msra.mxu0 0.0
    %2348 = vmatpush.msra.mxu0 0.0
    %2349 = vmatpush.msra.mxu0 0.0
    %2350 = vmatpush.msra.mxu0 0.0
    %2351 = vmatpush.msra.mxu0 0.0
    %2352 = vmatpush.msra.mxu0 0.0
    %2353 = vmatpush.msra.mxu0 0.0
    %2354 = vmatpush.msra.mxu0 0.0
    %2355 = vmatpush.msra.mxu0 0.0
    %2356 = vmatpush.msra.mxu0 0.0
    %2357 = vmatpush.msra.mxu0 0.0
    %2358 = vmatpush.msra.mxu0 0.0
    %2359 = vmatpush.msra.mxu0 0.0
    %2360 = vmatpush.msra.mxu0 0.0
    %2361 = vmatpush.msra.mxu0 %v2341
    %2362 = vmatmul.f32.gmra.mxu0 %v2344
    %v2363 = vpop.f32.mrf.mxu0
    %v2364 = vadd.f32 0.0, %v2363
    %2365 = vdwg.mxu0
    %2366 = vrot.lane.b32.xlu0 %v344, 104
    %v2367 = vpop.permute.xlu0 %2366
    %v2370 = vsel %vm385, %v2308, 0
    %2372 = vmatpush.msra.mxu0 0.0
    %2373 = vmatpush.msra.mxu0 0.0
    %2374 = vmatpush.msra.mxu0 0.0
    %2375 = vmatpush.msra.mxu0 0.0
    %2376 = vmatpush.msra.mxu0 0.0
    %2377 = vmatpush.msra.mxu0 0.0
    %2378 = vmatpush.msra.mxu0 0.0
    %2379 = vmatpush.msra.mxu0 0.0
    %2380 = vmatpush.msra.mxu0 0.0
    %2381 = vmatpush.msra.mxu0 0.0
    %2382 = vmatpush.msra.mxu0 0.0
    %2383 = vmatpush.msra.mxu0 0.0
    %2384 = vmatpush.msra.mxu0 0.0
    %2385 = vmatpush.msra.mxu0 0.0
    %2386 = vmatpush.msra.mxu0 0.0
    %2387 = vmatpush.msra.mxu0 %v2367
    %2388 = vmatmul.f32.gmra.mxu0 %v2370
    %v2389 = vpop.f32.mrf.mxu0
    %v2390 = vadd.f32 0.0, %v2389
    %2391 = vdwg.mxu0
    %2392 = vrot.lane.b32.xlu0 %v347, 104
    %v2393 = vpop.permute.xlu0 %2392
    %v2396 = vsel %vm385, %v2309, 0
    %2398 = vmatpush.msra.mxu0 0.0
    %2399 = vmatpush.msra.mxu0 0.0
    %2400 = vmatpush.msra.mxu0 0.0
    %2401 = vmatpush.msra.mxu0 0.0
    %2402 = vmatpush.msra.mxu0 0.0
    %2403 = vmatpush.msra.mxu0 0.0
    %2404 = vmatpush.msra.mxu0 0.0
    %2405 = vmatpush.msra.mxu0 0.0
    %2406 = vmatpush.msra.mxu0 0.0
    %2407 = vmatpush.msra.mxu0 0.0
    %2408 = vmatpush.msra.mxu0 0.0
    %2409 = vmatpush.msra.mxu0 0.0
    %2410 = vmatpush.msra.mxu0 0.0
    %2411 = vmatpush.msra.mxu0 0.0
    %2412 = vmatpush.msra.mxu0 0.0
    %2413 = vmatpush.msra.mxu0 %v2393
    %2414 = vmatmul.f32.gmra.mxu0 %v2396
    %v2415 = vpop.f32.mrf.mxu0
    %v2416 = vadd.f32 0.0, %v2415
    %2417 = vdwg.mxu0
    %2418 = vrot.lane.b32.xlu0 %v350, 104
    %v2419 = vpop.permute.xlu0 %2418
    %v2422 = vsel %vm385, %v2310, 0
    %2424 = vmatpush.msra.mxu0 0.0
    %2425 = vmatpush.msra.mxu0 0.0
    %2426 = vmatpush.msra.mxu0 0.0
    %2427 = vmatpush.msra.mxu0 0.0
    %2428 = vmatpush.msra.mxu0 0.0
    %2429 = vmatpush.msra.mxu0 0.0
    %2430 = vmatpush.msra.mxu0 0.0
    %2431 = vmatpush.msra.mxu0 0.0
    %2432 = vmatpush.msra.mxu0 0.0
    %2433 = vmatpush.msra.mxu0 0.0
    %2434 = vmatpush.msra.mxu0 0.0
    %2435 = vmatpush.msra.mxu0 0.0
    %2436 = vmatpush.msra.mxu0 0.0
    %2437 = vmatpush.msra.mxu0 0.0
    %2438 = vmatpush.msra.mxu0 0.0
    %2439 = vmatpush.msra.mxu0 %v2419
    %2440 = vmatmul.f32.gmra.mxu0 %v2422
    %v2441 = vpop.f32.mrf.mxu0
    %v2442 = vadd.f32 0.0, %v2441
    %2443 = vdwg.mxu0
    %2444 = vrot.lane.b32.xlu0 %v353, 104
    %v2445 = vpop.permute.xlu0 %2444
    %v2448 = vsel %vm385, %v2311, 0
    %2450 = vmatpush.msra.mxu0 0.0
    %2451 = vmatpush.msra.mxu0 0.0
    %2452 = vmatpush.msra.mxu0 0.0
    %2453 = vmatpush.msra.mxu0 0.0
    %2454 = vmatpush.msra.mxu0 0.0
    %2455 = vmatpush.msra.mxu0 0.0
    %2456 = vmatpush.msra.mxu0 0.0
    %2457 = vmatpush.msra.mxu0 0.0
    %2458 = vmatpush.msra.mxu0 0.0
    %2459 = vmatpush.msra.mxu0 0.0
    %2460 = vmatpush.msra.mxu0 0.0
    %2461 = vmatpush.msra.mxu0 0.0
    %2462 = vmatpush.msra.mxu0 0.0
    %2463 = vmatpush.msra.mxu0 0.0
    %2464 = vmatpush.msra.mxu0 0.0
    %2465 = vmatpush.msra.mxu0 %v2445
    %2466 = vmatmul.f32.gmra.mxu0 %v2448
    %v2467 = vpop.f32.mrf.mxu0
    %v2468 = vadd.f32 0.0, %v2467
    %2469 = vdwg.mxu0
    %2470 = vrot.lane.b32.xlu0 %v356, 104
    %v2471 = vpop.permute.xlu0 %2470
    %v2474 = vsel %vm385, %v2312, 0
    %2476 = vmatpush.msra.mxu0 0.0
    %2477 = vmatpush.msra.mxu0 0.0
    %2478 = vmatpush.msra.mxu0 0.0
    %2479 = vmatpush.msra.mxu0 0.0
    %2480 = vmatpush.msra.mxu0 0.0
    %2481 = vmatpush.msra.mxu0 0.0
    %2482 = vmatpush.msra.mxu0 0.0
    %2483 = vmatpush.msra.mxu0 0.0
    %2484 = vmatpush.msra.mxu0 0.0
    %2485 = vmatpush.msra.mxu0 0.0
    %2486 = vmatpush.msra.mxu0 0.0
    %2487 = vmatpush.msra.mxu0 0.0
    %2488 = vmatpush.msra.mxu0 0.0
    %2489 = vmatpush.msra.mxu0 0.0
    %2490 = vmatpush.msra.mxu0 0.0
    %2491 = vmatpush.msra.mxu0 %v2471
    %2492 = vmatmul.f32.gmra.mxu0 %v2474
    %v2493 = vpop.f32.mrf.mxu0
    %v2494 = vadd.f32 0.0, %v2493
    %2495 = vdwg.mxu0
    %2496 = vrot.lane.b32.xlu0 %v359, 104
    %v2497 = vpop.permute.xlu0 %2496
    %v2500 = vsel %vm385, %v2313, 0
    %2502 = vmatpush.msra.mxu0 0.0
    %2503 = vmatpush.msra.mxu0 0.0
    %2504 = vmatpush.msra.mxu0 0.0
    %2505 = vmatpush.msra.mxu0 0.0
    %2506 = vmatpush.msra.mxu0 0.0
    %2507 = vmatpush.msra.mxu0 0.0
    %2508 = vmatpush.msra.mxu0 0.0
    %2509 = vmatpush.msra.mxu0 0.0
    %2510 = vmatpush.msra.mxu0 0.0
    %2511 = vmatpush.msra.mxu0 0.0
    %2512 = vmatpush.msra.mxu0 0.0
    %2513 = vmatpush.msra.mxu0 0.0
    %2514 = vmatpush.msra.mxu0 0.0
    %2515 = vmatpush.msra.mxu0 0.0
    %2516 = vmatpush.msra.mxu0 0.0
    %2517 = vmatpush.msra.mxu0 %v2497
    %2518 = vmatmul.f32.gmra.mxu0 %v2500
    %v2519 = vpop.f32.mrf.mxu0
    %v2520 = vadd.f32 0.0, %v2519
    %2521 = vdwg.mxu0
    %2530 = vrot.lane.b32.xlu0 %v1259, 8
    %v2531 = vpop.permute.xlu0 %2530
    %2532 = vrot.lane.b32.xlu0 %v1286, 8
    %v2533 = vpop.permute.xlu0 %2532
    %2534 = vrot.lane.b32.xlu0 %v1313, 8
    %v2535 = vpop.permute.xlu0 %2534
    %2536 = vrot.lane.b32.xlu0 %v1340, 8
    %v2537 = vpop.permute.xlu0 %2536
    %2538 = vrot.lane.b32.xlu0 %v1367, 8
    %v2539 = vpop.permute.xlu0 %2538
    %2540 = vrot.lane.b32.xlu0 %v1394, 8
    %v2541 = vpop.permute.xlu0 %2540
    %2542 = vrot.lane.b32.xlu0 %v1421, 8
    %v2543 = vpop.permute.xlu0 %2542
    %2544 = vrot.lane.b32.xlu0 %v1448, 8
    %v2545 = vpop.permute.xlu0 %2544
    %2562 = vrot.lane.b32.xlu0 %v1802, 16
    %v2563 = vpop.permute.xlu0 %2562
    %2564 = vrot.lane.b32.xlu0 %v1828, 16
    %v2565 = vpop.permute.xlu0 %2564
    %2566 = vrot.lane.b32.xlu0 %v1854, 16
    %v2567 = vpop.permute.xlu0 %2566
    %2568 = vrot.lane.b32.xlu0 %v1880, 16
    %v2569 = vpop.permute.xlu0 %2568
    %2570 = vrot.lane.b32.xlu0 %v1906, 16
    %v2571 = vpop.permute.xlu0 %2570
    %2572 = vrot.lane.b32.xlu0 %v1932, 16
    %v2573 = vpop.permute.xlu0 %2572
    %2574 = vrot.lane.b32.xlu0 %v1958, 16
    %v2575 = vpop.permute.xlu0 %2574
    %2576 = vrot.lane.b32.xlu0 %v1984, 16
    %v2577 = vpop.permute.xlu0 %2576
    %2594 = vrot.lane.b32.xlu0 %v2338, 24
    %v2595 = vpop.permute.xlu0 %2594
    %2596 = vrot.lane.b32.xlu0 %v2364, 24
    %v2597 = vpop.permute.xlu0 %2596
    %2598 = vrot.lane.b32.xlu0 %v2390, 24
    %v2599 = vpop.permute.xlu0 %2598
    %2600 = vrot.lane.b32.xlu0 %v2416, 24
    %v2601 = vpop.permute.xlu0 %2600
    %2602 = vrot.lane.b32.xlu0 %v2442, 24
    %v2603 = vpop.permute.xlu0 %2602
    %2604 = vrot.lane.b32.xlu0 %v2468, 24
    %v2605 = vpop.permute.xlu0 %2604
    %2606 = vrot.lane.b32.xlu0 %v2494, 24
    %v2607 = vpop.permute.xlu0 %2606
    %2608 = vrot.lane.b32.xlu0 %v2520, 24
    %v2609 = vpop.permute.xlu0 %2608
    %v2618 = vsel %vm385, %v743, %v2531
    %v2619 = vsel %vm385, %v766, %v2533
    %v2620 = vsel %vm385, %v789, %v2535
    %v2621 = vsel %vm385, %v812, %v2537
    %v2622 = vsel %vm385, %v835, %v2539
    %v2623 = vsel %vm385, %v858, %v2541
    %v2624 = vsel %vm385, %v881, %v2543
    %v2625 = vsel %vm385, %v904, %v2545
    %vm2626 = vcmask 130048
    %v2627 = vsel %vm2626, %v2618, %v2563
    %v2628 = vsel %vm2626, %v2619, %v2565
    %v2629 = vsel %vm2626, %v2620, %v2567
    %v2630 = vsel %vm2626, %v2621, %v2569
    %v2631 = vsel %vm2626, %v2622, %v2571
    %v2632 = vsel %vm2626, %v2623, %v2573
    %v2633 = vsel %vm2626, %v2624, %v2575
    %v2634 = vsel %vm2626, %v2625, %v2577
    %vm2635 = vcmask 195584
    %v2636 = vsel %vm2635, %v2627, %v2595
    %v2637 = vsel %vm2635, %v2628, %v2597
    %v2638 = vsel %vm2635, %v2629, %v2599
    %v2639 = vsel %vm2635, %v2630, %v2601
    %v2640 = vsel %vm2635, %v2631, %v2603
    %v2641 = vsel %vm2635, %v2632, %v2605
    %v2642 = vsel %vm2635, %v2633, %v2607
    %v2643 = vsel %vm2635, %v2634, %v2609
    %v2644 = vld [vmem:[%s12] sm:$0xff]
    %v2645 = vld [vmem:[%s12 + $0x8] sm:$0xff]
    %v2646 = vld [vmem:[%s12 + $0x10] sm:$0xff]
    %v2647 = vld [vmem:[%s12 + $0x18] sm:$0xff]
    %v2648 = vld [vmem:[%s13] sm:$0x1]
    %v2650 = vperm.slane %v2648, 0
    %v2653 = vsel %vm197, %v2636, 0
    %v2656 = vsel %vm197, %v2637, 0
    %v2659 = vsel %vm197, %v2638, 0
    %v2662 = vsel %vm197, %v2639, 0
    %v2665 = vsel %vm197, %v2640, 0
    %v2668 = vsel %vm197, %v2641, 0
    %v2671 = vsel %vm197, %v2642, 0
    %v2674 = vsel %vm197, %v2643, 0
    %2676 = vmatpush.msra.mxu0 0.0
    %2677 = vmatpush.msra.mxu0 0.0
    %2678 = vmatpush.msra.mxu0 0.0
    %2679 = vmatpush.msra.mxu0 0.0
    %2680 = vmatpush.msra.mxu0 0.0
    %2681 = vmatpush.msra.mxu0 0.0
    %2682 = vmatpush.msra.mxu0 0.0
    %2683 = vmatpush.msra.mxu0 0.0
    %2684 = vmatpush.msra.mxu0 0.0
    %2685 = vmatpush.msra.mxu0 0.0
    %2686 = vmatpush.msra.mxu0 0.0
    %2687 = vmatpush.msra.mxu0 0.0
    %2688 = vmatpush.msra.mxu0 %v2647
    %2689 = vmatpush.msra.mxu0 %v2646
    %2690 = vmatpush.msra.mxu0 %v2645
    %2691 = vmatpush.msra.mxu0 %v2644
    %2692 = vmatmul.f32.gmra.mxu0 %v2653
    %v2693 = vpop.f32.mrf.mxu0
    %v2694 = vadd.f32 %v2650, %v2693
    %2695 = vmatmul.f32.gmra.mxu0 %v2656
    %v2696 = vpop.f32.mrf.mxu0
    %v2697 = vadd.f32 %v2650, %v2696
    %2698 = vmatmul.f32.gmra.mxu0 %v2659
    %v2699 = vpop.f32.mrf.mxu0
    %v2700 = vadd.f32 %v2650, %v2699
    %2701 = vmatmul.f32.gmra.mxu0 %v2662
    %v2702 = vpop.f32.mrf.mxu0
    %v2703 = vadd.f32 %v2650, %v2702
    %2704 = vmatmul.f32.gmra.mxu0 %v2665
    %v2705 = vpop.f32.mrf.mxu0
    %v2706 = vadd.f32 %v2650, %v2705
    %2707 = vmatmul.f32.gmra.mxu0 %v2668
    %v2708 = vpop.f32.mrf.mxu0
    %v2709 = vadd.f32 %v2650, %v2708
    %2710 = vmatmul.f32.gmra.mxu0 %v2671
    %v2711 = vpop.f32.mrf.mxu0
    %v2712 = vadd.f32 %v2650, %v2711
    %2713 = vmatmul.f32.gmra.mxu0 %v2674
    %v2714 = vpop.f32.mrf.mxu0
    %v2715 = vadd.f32 %v2650, %v2714
    %2716 = vdwg.mxu0
    %v2717 = vadd.f32 %v181, %v2694
    %v2718 = vadd.f32 %v182, %v2697
    %v2719 = vadd.f32 %v183, %v2700
    %v2720 = vadd.f32 %v184, %v2703
    %v2721 = vadd.f32 %v185, %v2706
    %v2722 = vadd.f32 %v186, %v2709
    %v2723 = vadd.f32 %v187, %v2712
    %v2724 = vadd.f32 %v188, %v2715
    %v2725 = vsel %vm197, %v2717, 0.0
    %2726 = vadd.xlane.f32.xlu0 %v2725
    %v2727 = vpop.xlane.xlu0 %2726
    %v2728 = vsel %vm197, %v2718, 0.0
    %2729 = vadd.xlane.f32.xlu0 %v2728
    %v2730 = vpop.xlane.xlu0 %2729
    %v2731 = vsel %vm197, %v2719, 0.0
    %2732 = vadd.xlane.f32.xlu0 %v2731
    %v2733 = vpop.xlane.xlu0 %2732
    %v2734 = vsel %vm197, %v2720, 0.0
    %2735 = vadd.xlane.f32.xlu0 %v2734
    %v2736 = vpop.xlane.xlu0 %2735
    %v2737 = vsel %vm197, %v2721, 0.0
    %2738 = vadd.xlane.f32.xlu0 %v2737
    %v2739 = vpop.xlane.xlu0 %2738
    %v2740 = vsel %vm197, %v2722, 0.0
    %2741 = vadd.xlane.f32.xlu0 %v2740
    %v2742 = vpop.xlane.xlu0 %2741
    %v2743 = vsel %vm197, %v2723, 0.0
    %2744 = vadd.xlane.f32.xlu0 %v2743
    %v2745 = vpop.xlane.xlu0 %2744
    %v2746 = vsel %vm197, %v2724, 0.0
    %2747 = vadd.xlane.f32.xlu0 %v2746
    %v2748 = vpop.xlane.xlu0 %2747
    %v2749 = vrcp.pop 32.0
    %v2750 = vmul.f32 32.0, %v2749
    %v2751 = vsub.f32 1.0, %v2750
    %v2752 = vmul.f32 %v2749, %v2751
    %v2753 = vadd.f32 %v2749, %v2752
    %vm2754 = vweird.f32 %v2749
    %v2755 = vsel %vm2754, %v2749, %v2753
    %v2756 = vmul.f32 %v2727, %v2755
    %v2757 = vmul.f32 %v2730, %v2755
    %v2758 = vmul.f32 %v2733, %v2755
    %v2759 = vmul.f32 %v2736, %v2755
    %v2760 = vmul.f32 %v2739, %v2755
    %v2761 = vmul.f32 %v2742, %v2755
    %v2762 = vmul.f32 %v2745, %v2755
    %v2763 = vmul.f32 %v2748, %v2755
    %v2764 = vsub.f32 %v2717, %v2756
    %v2765 = vsub.f32 %v2718, %v2757
    %v2766 = vsub.f32 %v2719, %v2758
    %v2767 = vsub.f32 %v2720, %v2759
    %v2768 = vsub.f32 %v2721, %v2760
    %v2769 = vsub.f32 %v2722, %v2761
    %v2770 = vsub.f32 %v2723, %v2762
    %v2771 = vsub.f32 %v2724, %v2763
    %v2772 = vmul.f32 %v2764, %v2764
    %v2773 = vmul.f32 %v2765, %v2765
    %v2774 = vmul.f32 %v2766, %v2766
    %v2775 = vmul.f32 %v2767, %v2767
    %v2776 = vmul.f32 %v2768, %v2768
    %v2777 = vmul.f32 %v2769, %v2769
    %v2778 = vmul.f32 %v2770, %v2770
    %v2779 = vmul.f32 %v2771, %v2771
    %v2780 = vsel %vm197, %v2772, 0.0
    %2781 = vadd.xlane.f32.xlu0 %v2780
    %v2782 = vpop.xlane.xlu0 %2781
    %v2783 = vsel %vm197, %v2773, 0.0
    %2784 = vadd.xlane.f32.xlu0 %v2783
    %v2785 = vpop.xlane.xlu0 %2784
    %v2786 = vsel %vm197, %v2774, 0.0
    %2787 = vadd.xlane.f32.xlu0 %v2786
    %v2788 = vpop.xlane.xlu0 %2787
    %v2789 = vsel %vm197, %v2775, 0.0
    %2790 = vadd.xlane.f32.xlu0 %v2789
    %v2791 = vpop.xlane.xlu0 %2790
    %v2792 = vsel %vm197, %v2776, 0.0
    %2793 = vadd.xlane.f32.xlu0 %v2792
    %v2794 = vpop.xlane.xlu0 %2793
    %v2795 = vsel %vm197, %v2777, 0.0
    %2796 = vadd.xlane.f32.xlu0 %v2795
    %v2797 = vpop.xlane.xlu0 %2796
    %v2798 = vsel %vm197, %v2778, 0.0
    %2799 = vadd.xlane.f32.xlu0 %v2798
    %v2800 = vpop.xlane.xlu0 %2799
    %v2801 = vsel %vm197, %v2779, 0.0
    %2802 = vadd.xlane.f32.xlu0 %v2801
    %v2803 = vpop.xlane.xlu0 %2802
    %v2804 = vmul.f32 %v2782, %v2755
    %v2805 = vmul.f32 %v2785, %v2755
    %v2806 = vmul.f32 %v2788, %v2755
    %v2807 = vmul.f32 %v2791, %v2755
    %v2808 = vmul.f32 %v2794, %v2755
    %v2809 = vmul.f32 %v2797, %v2755
    %v2810 = vmul.f32 %v2800, %v2755
    %v2811 = vmul.f32 %v2803, %v2755
    %v2812 = vadd.f32 %v2804, 1e-05
    %v2813 = vadd.f32 %v2805, 1e-05
    %v2814 = vadd.f32 %v2806, 1e-05
    %v2815 = vadd.f32 %v2807, 1e-05
    %v2816 = vadd.f32 %v2808, 1e-05
    %v2817 = vadd.f32 %v2809, 1e-05
    %v2818 = vadd.f32 %v2810, 1e-05
    %v2819 = vadd.f32 %v2811, 1e-05
    %v2820 = vrsqrt.pop %v2812
    %v2821 = vmul.f32 %v2820, %v2812
    %v2822 = vmul.f32 %v2821, %v2820
    %v2823 = vmul.f32 0.5, %v2822
    %v2824 = vsub.f32 1.5, %v2823
    %v2825 = vmul.f32 %v2820, %v2824
    %vm2826 = vweird.f32 %v2812
    %vm2827 = vweird.f32 %v2820
    %vm2828 = vmor %vm2826, %vm2827
    %v2829 = vsel %vm2828, %v2820, %v2825
    %v2830 = vrsqrt.pop %v2813
    %v2831 = vmul.f32 %v2830, %v2813
    %v2832 = vmul.f32 %v2831, %v2830
    %v2833 = vmul.f32 0.5, %v2832
    %v2834 = vsub.f32 1.5, %v2833
    %v2835 = vmul.f32 %v2830, %v2834
    %vm2836 = vweird.f32 %v2813
    %vm2837 = vweird.f32 %v2830
    %vm2838 = vmor %vm2836, %vm2837
    %v2839 = vsel %vm2838, %v2830, %v2835
    %v2840 = vrsqrt.pop %v2814
    %v2841 = vmul.f32 %v2840, %v2814
    %v2842 = vmul.f32 %v2841, %v2840
    %v2843 = vmul.f32 0.5, %v2842
    %v2844 = vsub.f32 1.5, %v2843
    %v2845 = vmul.f32 %v2840, %v2844
    %vm2846 = vweird.f32 %v2814
    %vm2847 = vweird.f32 %v2840
    %vm2848 = vmor %vm2846, %vm2847
    %v2849 = vsel %vm2848, %v2840, %v2845
    %v2850 = vrsqrt.pop %v2815
    %v2851 = vmul.f32 %v2850, %v2815
    %v2852 = vmul.f32 %v2851, %v2850
    %v2853 = vmul.f32 0.5, %v2852
    %v2854 = vsub.f32 1.5, %v2853
    %v2855 = vmul.f32 %v2850, %v2854
    %vm2856 = vweird.f32 %v2815
    %vm2857 = vweird.f32 %v2850
    %vm2858 = vmor %vm2856, %vm2857
    %v2859 = vsel %vm2858, %v2850, %v2855
    %v2860 = vrsqrt.pop %v2816
    %v2861 = vmul.f32 %v2860, %v2816
    %v2862 = vmul.f32 %v2861, %v2860
    %v2863 = vmul.f32 0.5, %v2862
    %v2864 = vsub.f32 1.5, %v2863
    %v2865 = vmul.f32 %v2860, %v2864
    %vm2866 = vweird.f32 %v2816
    %vm2867 = vweird.f32 %v2860
    %vm2868 = vmor %vm2866, %vm2867
    %v2869 = vsel %vm2868, %v2860, %v2865
    %v2870 = vrsqrt.pop %v2817
    %v2871 = vmul.f32 %v2870, %v2817
    %v2872 = vmul.f32 %v2871, %v2870
    %v2873 = vmul.f32 0.5, %v2872
    %v2874 = vsub.f32 1.5, %v2873
    %v2875 = vmul.f32 %v2870, %v2874
    %vm2876 = vweird.f32 %v2817
    %vm2877 = vweird.f32 %v2870
    %vm2878 = vmor %vm2876, %vm2877
    %v2879 = vsel %vm2878, %v2870, %v2875
    %v2880 = vrsqrt.pop %v2818
    %v2881 = vmul.f32 %v2880, %v2818
    %v2882 = vmul.f32 %v2881, %v2880
    %v2883 = vmul.f32 0.5, %v2882
    %v2884 = vsub.f32 1.5, %v2883
    %v2885 = vmul.f32 %v2880, %v2884
    %vm2886 = vweird.f32 %v2818
    %vm2887 = vweird.f32 %v2880
    %vm2888 = vmor %vm2886, %vm2887
    %v2889 = vsel %vm2888, %v2880, %v2885
    %v2890 = vrsqrt.pop %v2819
    %v2891 = vmul.f32 %v2890, %v2819
    %v2892 = vmul.f32 %v2891, %v2890
    %v2893 = vmul.f32 0.5, %v2892
    %v2894 = vsub.f32 1.5, %v2893
    %v2895 = vmul.f32 %v2890, %v2894
    %vm2896 = vweird.f32 %v2819
    %vm2897 = vweird.f32 %v2890
    %vm2898 = vmor %vm2896, %vm2897
    %v2899 = vsel %vm2898, %v2890, %v2895
    %v2900 = vmul.f32 %v2764, %v2829
    %v2901 = vmul.f32 %v2765, %v2839
    %v2902 = vmul.f32 %v2766, %v2849
    %v2903 = vmul.f32 %v2767, %v2859
    %v2904 = vmul.f32 %v2768, %v2869
    %v2905 = vmul.f32 %v2769, %v2879
    %v2906 = vmul.f32 %v2770, %v2889
    %v2907 = vmul.f32 %v2771, %v2899
    %v2908 = vld [vmem:[%s18] sm:$0x1]
    %v2910 = vperm.slane %v2908, 0
    %v2912 = vmul.f32 %v2900, %v2910
    %v2913 = vmul.f32 %v2901, %v2910
    %v2914 = vmul.f32 %v2902, %v2910
    %v2915 = vmul.f32 %v2903, %v2910
    %v2916 = vmul.f32 %v2904, %v2910
    %v2917 = vmul.f32 %v2905, %v2910
    %v2918 = vmul.f32 %v2906, %v2910
    %v2919 = vmul.f32 %v2907, %v2910
    %v2920 = vld [vmem:[%s19] sm:$0x1]
    %v2922 = vperm.slane %v2920, 0
    %v2924 = vadd.f32 %v2912, %v2922
    %v2925 = vadd.f32 %v2913, %v2922
    %v2926 = vadd.f32 %v2914, %v2922
    %v2927 = vadd.f32 %v2915, %v2922
    %v2928 = vadd.f32 %v2916, %v2922
    %v2929 = vadd.f32 %v2917, %v2922
    %v2930 = vadd.f32 %v2918, %v2922
    %v2931 = vadd.f32 %v2919, %v2922
    %v2932 = vld [vmem:[%s14] sm:$0xff]
    %v2933 = vld [vmem:[%s14 + $0x8] sm:$0xff]
    %v2934 = vld [vmem:[%s14 + $0x10] sm:$0xff]
    %v2935 = vld [vmem:[%s14 + $0x18] sm:$0xff]
    %v2936 = vld [vmem:[%s15] sm:$0x1]
    %v2938 = vperm.slane %v2936, 0
    %v2941 = vsel %vm197, %v2924, 0
    %v2944 = vsel %vm197, %v2925, 0
    %v2947 = vsel %vm197, %v2926, 0
    %v2950 = vsel %vm197, %v2927, 0
    %v2953 = vsel %vm197, %v2928, 0
    %v2956 = vsel %vm197, %v2929, 0
    %v2959 = vsel %vm197, %v2930, 0
    %v2962 = vsel %vm197, %v2931, 0
    %2964 = vmatpush.msra.mxu0 0.0
    %2965 = vmatpush.msra.mxu0 0.0
    %2966 = vmatpush.msra.mxu0 0.0
    %2967 = vmatpush.msra.mxu0 0.0
    %2968 = vmatpush.msra.mxu0 0.0
    %2969 = vmatpush.msra.mxu0 0.0
    %2970 = vmatpush.msra.mxu0 0.0
    %2971 = vmatpush.msra.mxu0 0.0
    %2972 = vmatpush.msra.mxu0 0.0
    %2973 = vmatpush.msra.mxu0 0.0
    %2974 = vmatpush.msra.mxu0 0.0
    %2975 = vmatpush.msra.mxu0 0.0
    %2976 = vmatpush.msra.mxu0 %v2935
    %2977 = vmatpush.msra.mxu0 %v2934
    %2978 = vmatpush.msra.mxu0 %v2933
    %2979 = vmatpush.msra.mxu0 %v2932
    %2980 = vmatmul.f32.gmra.mxu0 %v2941
    %v2981 = vpop.f32.mrf.mxu0
    %v2982 = vadd.f32 %v2938, %v2981
    %2983 = vmatmul.f32.gmra.mxu0 %v2944
    %v2984 = vpop.f32.mrf.mxu0
    %v2985 = vadd.f32 %v2938, %v2984
    %2986 = vmatmul.f32.gmra.mxu0 %v2947
    %v2987 = vpop.f32.mrf.mxu0
    %v2988 = vadd.f32 %v2938, %v2987
    %2989 = vmatmul.f32.gmra.mxu0 %v2950
    %v2990 = vpop.f32.mrf.mxu0
    %v2991 = vadd.f32 %v2938, %v2990
    %2992 = vmatmul.f32.gmra.mxu0 %v2953
    %v2993 = vpop.f32.mrf.mxu0
    %v2994 = vadd.f32 %v2938, %v2993
    %2995 = vmatmul.f32.gmra.mxu0 %v2956
    %v2996 = vpop.f32.mrf.mxu0
    %v2997 = vadd.f32 %v2938, %v2996
    %2998 = vmatmul.f32.gmra.mxu0 %v2959
    %v2999 = vpop.f32.mrf.mxu0
    %v3000 = vadd.f32 %v2938, %v2999
    %3001 = vmatmul.f32.gmra.mxu0 %v2962
    %v3002 = vpop.f32.mrf.mxu0
    %v3003 = vadd.f32 %v2938, %v3002
    %3004 = vdwg.mxu0
    %v3005 = vmul.f32 %v2982, %v2982
    %v3006 = vmul.f32 %v2985, %v2985
    %v3007 = vmul.f32 %v2988, %v2988
    %v3008 = vmul.f32 %v2991, %v2991
    %v3009 = vmul.f32 %v2994, %v2994
    %v3010 = vmul.f32 %v2997, %v2997
    %v3011 = vmul.f32 %v3000, %v3000
    %v3012 = vmul.f32 %v3003, %v3003
    %v3013 = vmul.f32 %v2982, %v3005
    %v3014 = vmul.f32 %v2985, %v3006
    %v3015 = vmul.f32 %v2988, %v3007
    %v3016 = vmul.f32 %v2991, %v3008
    %v3017 = vmul.f32 %v2994, %v3009
    %v3018 = vmul.f32 %v2997, %v3010
    %v3019 = vmul.f32 %v3000, %v3011
    %v3020 = vmul.f32 %v3003, %v3012
    %v3021 = vmul.f32 %v3013, 0.044715
    %v3022 = vmul.f32 %v3014, 0.044715
    %v3023 = vmul.f32 %v3015, 0.044715
    %v3024 = vmul.f32 %v3016, 0.044715
    %v3025 = vmul.f32 %v3017, 0.044715
    %v3026 = vmul.f32 %v3018, 0.044715
    %v3027 = vmul.f32 %v3019, 0.044715
    %v3028 = vmul.f32 %v3020, 0.044715
    %v3029 = vadd.f32 %v2982, %v3021
    %v3030 = vadd.f32 %v2985, %v3022
    %v3031 = vadd.f32 %v2988, %v3023
    %v3032 = vadd.f32 %v2991, %v3024
    %v3033 = vadd.f32 %v2994, %v3025
    %v3034 = vadd.f32 %v2997, %v3026
    %v3035 = vadd.f32 %v3000, %v3027
    %v3036 = vadd.f32 %v3003, %v3028
    %v3037 = vmul.f32 %v3029, 0.7978846
    %v3038 = vmul.f32 %v3030, 0.7978846
    %v3039 = vmul.f32 %v3031, 0.7978846
    %v3040 = vmul.f32 %v3032, 0.7978846
    %v3041 = vmul.f32 %v3033, 0.7978846
    %v3042 = vmul.f32 %v3034, 0.7978846
    %v3043 = vmul.f32 %v3035, 0.7978846
    %v3044 = vmul.f32 %v3036, 0.7978846
    %v3045 = vtanh.pop %v3037
    %v3046 = vtanh.pop %v3038
    %v3047 = vtanh.pop %v3039
    %v3048 = vtanh.pop %v3040
    %v3049 = vtanh.pop %v3041
    %v3050 = vtanh.pop %v3042
    %v3051 = vtanh.pop %v3043
    %v3052 = vtanh.pop %v3044
    %v3053 = vadd.f32 %v3045, 1.0
    %v3054 = vadd.f32 %v3046, 1.0
    %v3055 = vadd.f32 %v3047, 1.0
    %v3056 = vadd.f32 %v3048, 1.0
    %v3057 = vadd.f32 %v3049, 1.0
    %v3058 = vadd.f32 %v3050, 1.0
    %v3059 = vadd.f32 %v3051, 1.0
    %v3060 = vadd.f32 %v3052, 1.0
    %v3061 = vmul.f32 %v3053, 0.5
    %v3062 = vmul.f32 %v3054, 0.5
    %v3063 = vmul.f32 %v3055, 0.5
    %v3064 = vmul.f32 %v3056, 0.5
    %v3065 = vmul.f32 %v3057, 0.5
    %v3066 = vmul.f32 %v3058, 0.5
    %v3067 = vmul.f32 %v3059, 0.5
    %v3068 = vmul.f32 %v3060, 0.5
    %v3069 = vmul.f32 %v2982, %v3061
    %v3070 = vmul.f32 %v2985, %v3062
    %v3071 = vmul.f32 %v2988, %v3063
    %v3072 = vmul.f32 %v2991, %v3064
    %v3073 = vmul.f32 %v2994, %v3065
    %v3074 = vmul.f32 %v2997, %v3066
    %v3075 = vmul.f32 %v3000, %v3067
    %v3076 = vmul.f32 %v3003, %v3068
    %v3077 = vld [vmem:[%s16] sm:$0xff]
    %v3078 = vld [vmem:[%s16 + $0x8] sm:$0xff]
    %v3079 = vld [vmem:[%s16 + $0x10] sm:$0xff]
    %v3080 = vld [vmem:[%s16 + $0x18] sm:$0xff]
    %v3081 = vld [vmem:[%s16 + $0x20] sm:$0xff]
    %v3082 = vld [vmem:[%s16 + $0x28] sm:$0xff]
    %v3083 = vld [vmem:[%s16 + $0x30] sm:$0xff]
    %v3084 = vld [vmem:[%s16 + $0x38] sm:$0xff]
    %v3085 = vld [vmem:[%s16 + $0x40] sm:$0xff]
    %v3086 = vld [vmem:[%s16 + $0x48] sm:$0xff]
    %v3087 = vld [vmem:[%s16 + $0x50] sm:$0xff]
    %v3088 = vld [vmem:[%s16 + $0x58] sm:$0xff]
    %v3089 = vld [vmem:[%s16 + $0x60] sm:$0xff]
    %v3090 = vld [vmem:[%s16 + $0x68] sm:$0xff]
    %v3091 = vld [vmem:[%s16 + $0x70] sm:$0xff]
    %v3092 = vld [vmem:[%s16 + $0x78] sm:$0xff]
    %v3093 = vld [vmem:[%s17] sm:$0x1]
    %v3095 = vperm.slane %v3093, 0
    %3097 = vmatpush.msra.mxu0 %v3092
    %3098 = vmatpush.msra.mxu0 %v3091
    %3099 = vmatpush.msra.mxu0 %v3090
    %3100 = vmatpush.msra.mxu0 %v3089
    %3101 = vmatpush.msra.mxu0 %v3088
    %3102 = vmatpush.msra.mxu0 %v3087
    %3103 = vmatpush.msra.mxu0 %v3086
    %3104 = vmatpush.msra.mxu0 %v3085
    %3105 = vmatpush.msra.mxu0 %v3084
    %3106 = vmatpush.msra.mxu0 %v3083
    %3107 = vmatpush.msra.mxu0 %v3082
    %3108 = vmatpush.msra.mxu0 %v3081
    %3109 = vmatpush.msra.mxu0 %v3080
    %3110 = vmatpush.msra.mxu0 %v3079
    %3111 = vmatpush.msra.mxu0 %v3078
    %3112 = vmatpush.msra.mxu0 %v3077
    %3113 = vmatmul.f32.gmra.mxu0 %v3069
    %v3114 = vpop.f32.mrf.mxu0
    %v3115 = vadd.f32 %v3095, %v3114
    %3116 = vmatmul.f32.gmra.mxu0 %v3070
    %v3117 = vpop.f32.mrf.mxu0
    %v3118 = vadd.f32 %v3095, %v3117
    %3119 = vmatmul.f32.gmra.mxu0 %v3071
    %v3120 = vpop.f32.mrf.mxu0
    %v3121 = vadd.f32 %v3095, %v3120
    %3122 = vmatmul.f32.gmra.mxu0 %v3072
    %v3123 = vpop.f32.mrf.mxu0
    %v3124 = vadd.f32 %v3095, %v3123
    %3125 = vmatmul.f32.gmra.mxu0 %v3073
    %v3126 = vpop.f32.mrf.mxu0
    %v3127 = vadd.f32 %v3095, %v3126
    %3128 = vmatmul.f32.gmra.mxu0 %v3074
    %v3129 = vpop.f32.mrf.mxu0
    %v3130 = vadd.f32 %v3095, %v3129
    %3131 = vmatmul.f32.gmra.mxu0 %v3075
    %v3132 = vpop.f32.mrf.mxu0
    %v3133 = vadd.f32 %v3095, %v3132
    %3134 = vmatmul.f32.gmra.mxu0 %v3076
    %v3135 = vpop.f32.mrf.mxu0
    %v3136 = vadd.f32 %v3095, %v3135
    %3137 = vdwg.mxu0
    %v3138 = vadd.f32 %v2924, %v3115
    %v3139 = vadd.f32 %v2925, %v3118
    %v3140 = vadd.f32 %v2926, %v3121
    %v3141 = vadd.f32 %v2927, %v3124
    %v3142 = vadd.f32 %v2928, %v3127
    %v3143 = vadd.f32 %v2929, %v3130
    %v3144 = vadd.f32 %v2930, %v3133
    %v3145 = vadd.f32 %v2931, %v3136
    %v3146 = vsel %vm197, %v3138, 0.0
    %3147 = vadd.xlane.f32.xlu0 %v3146
    %v3148 = vpop.xlane.xlu0 %3147
    %v3149 = vsel %vm197, %v3139, 0.0
    %3150 = vadd.xlane.f32.xlu0 %v3149
    %v3151 = vpop.xlane.xlu0 %3150
    %v3152 = vsel %vm197, %v3140, 0.0
    %3153 = vadd.xlane.f32.xlu0 %v3152
    %v3154 = vpop.xlane.xlu0 %3153
    %v3155 = vsel %vm197, %v3141, 0.0
    %3156 = vadd.xlane.f32.xlu0 %v3155
    %v3157 = vpop.xlane.xlu0 %3156
    %v3158 = vsel %vm197, %v3142, 0.0
    %3159 = vadd.xlane.f32.xlu0 %v3158
    %v3160 = vpop.xlane.xlu0 %3159
    %v3161 = vsel %vm197, %v3143, 0.0
    %3162 = vadd.xlane.f32.xlu0 %v3161
    %v3163 = vpop.xlane.xlu0 %3162
    %v3164 = vsel %vm197, %v3144, 0.0
    %3165 = vadd.xlane.f32.xlu0 %v3164
    %v3166 = vpop.xlane.xlu0 %3165
    %v3167 = vsel %vm197, %v3145, 0.0
    %3168 = vadd.xlane.f32.xlu0 %v3167
    %v3169 = vpop.xlane.xlu0 %3168
    %v3170 = vmul.f32 %v3148, %v2755
    %v3171 = vmul.f32 %v3151, %v2755
    %v3172 = vmul.f32 %v3154, %v2755
    %v3173 = vmul.f32 %v3157, %v2755
    %v3174 = vmul.f32 %v3160, %v2755
    %v3175 = vmul.f32 %v3163, %v2755
    %v3176 = vmul.f32 %v3166, %v2755
    %v3177 = vmul.f32 %v3169, %v2755
    %v3178 = vsub.f32 %v3138, %v3170
    %v3179 = vsub.f32 %v3139, %v3171
    %v3180 = vsub.f32 %v3140, %v3172
    %v3181 = vsub.f32 %v3141, %v3173
    %v3182 = vsub.f32 %v3142, %v3174
    %v3183 = vsub.f32 %v3143, %v3175
    %v3184 = vsub.f32 %v3144, %v3176
    %v3185 = vsub.f32 %v3145, %v3177
    %v3186 = vmul.f32 %v3178, %v3178
    %v3187 = vmul.f32 %v3179, %v3179
    %v3188 = vmul.f32 %v3180, %v3180
    %v3189 = vmul.f32 %v3181, %v3181
    %v3190 = vmul.f32 %v3182, %v3182
    %v3191 = vmul.f32 %v3183, %v3183
    %v3192 = vmul.f32 %v3184, %v3184
    %v3193 = vmul.f32 %v3185, %v3185
    %v3194 = vsel %vm197, %v3186, 0.0
    %3195 = vadd.xlane.f32.xlu0 %v3194
    %v3196 = vpop.xlane.xlu0 %3195
    %v3197 = vsel %vm197, %v3187, 0.0
    %3198 = vadd.xlane.f32.xlu0 %v3197
    %v3199 = vpop.xlane.xlu0 %3198
    %v3200 = vsel %vm197, %v3188, 0.0
    %3201 = vadd.xlane.f32.xlu0 %v3200
    %v3202 = vpop.xlane.xlu0 %3201
    %v3203 = vsel %vm197, %v3189, 0.0
    %3204 = vadd.xlane.f32.xlu0 %v3203
    %v3205 = vpop.xlane.xlu0 %3204
    %v3206 = vsel %vm197, %v3190, 0.0
    %3207 = vadd.xlane.f32.xlu0 %v3206
    %v3208 = vpop.xlane.xlu0 %3207
    %v3209 = vsel %vm197, %v3191, 0.0
    %3210 = vadd.xlane.f32.xlu0 %v3209
    %v3211 = vpop.xlane.xlu0 %3210
    %v3212 = vsel %vm197, %v3192, 0.0
    %3213 = vadd.xlane.f32.xlu0 %v3212
    %v3214 = vpop.xlane.xlu0 %3213
    %v3215 = vsel %vm197, %v3193, 0.0
    %3216 = vadd.xlane.f32.xlu0 %v3215
    %v3217 = vpop.xlane.xlu0 %3216
    %v3218 = vmul.f32 %v3196, %v2755
    %v3219 = vmul.f32 %v3199, %v2755
    %v3220 = vmul.f32 %v3202, %v2755
    %v3221 = vmul.f32 %v3205, %v2755
    %v3222 = vmul.f32 %v3208, %v2755
    %v3223 = vmul.f32 %v3211, %v2755
    %v3224 = vmul.f32 %v3214, %v2755
    %v3225 = vmul.f32 %v3217, %v2755
    %v3226 = vadd.f32 %v3218, 1e-05
    %v3227 = vadd.f32 %v3219, 1e-05
    %v3228 = vadd.f32 %v3220, 1e-05
    %v3229 = vadd.f32 %v3221, 1e-05
    %v3230 = vadd.f32 %v3222, 1e-05
    %v3231 = vadd.f32 %v3223, 1e-05
    %v3232 = vadd.f32 %v3224, 1e-05
    %v3233 = vadd.f32 %v3225, 1e-05
    %v3234 = vrsqrt.pop %v3226
    %v3235 = vmul.f32 %v3234, %v3226
    %v3236 = vmul.f32 %v3235, %v3234
    %v3237 = vmul.f32 0.5, %v3236
    %v3238 = vsub.f32 1.5, %v3237
    %v3239 = vmul.f32 %v3234, %v3238
    %vm3240 = vweird.f32 %v3226
    %vm3241 = vweird.f32 %v3234
    %vm3242 = vmor %vm3240, %vm3241
    %v3243 = vsel %vm3242, %v3234, %v3239
    %v3244 = vrsqrt.pop %v3227
    %v3245 = vmul.f32 %v3244, %v3227
    %v3246 = vmul.f32 %v3245, %v3244
    %v3247 = vmul.f32 0.5, %v3246
    %v3248 = vsub.f32 1.5, %v3247
    %v3249 = vmul.f32 %v3244, %v3248
    %vm3250 = vweird.f32 %v3227
    %vm3251 = vweird.f32 %v3244
    %vm3252 = vmor %vm3250, %vm3251
    %v3253 = vsel %vm3252, %v3244, %v3249
    %v3254 = vrsqrt.pop %v3228
    %v3255 = vmul.f32 %v3254, %v3228
    %v3256 = vmul.f32 %v3255, %v3254
    %v3257 = vmul.f32 0.5, %v3256
    %v3258 = vsub.f32 1.5, %v3257
    %v3259 = vmul.f32 %v3254, %v3258
    %vm3260 = vweird.f32 %v3228
    %vm3261 = vweird.f32 %v3254
    %vm3262 = vmor %vm3260, %vm3261
    %v3263 = vsel %vm3262, %v3254, %v3259
    %v3264 = vrsqrt.pop %v3229
    %v3265 = vmul.f32 %v3264, %v3229
    %v3266 = vmul.f32 %v3265, %v3264
    %v3267 = vmul.f32 0.5, %v3266
    %v3268 = vsub.f32 1.5, %v3267
    %v3269 = vmul.f32 %v3264, %v3268
    %vm3270 = vweird.f32 %v3229
    %vm3271 = vweird.f32 %v3264
    %vm3272 = vmor %vm3270, %vm3271
    %v3273 = vsel %vm3272, %v3264, %v3269
    %v3274 = vrsqrt.pop %v3230
    %v3275 = vmul.f32 %v3274, %v3230
    %v3276 = vmul.f32 %v3275, %v3274
    %v3277 = vmul.f32 0.5, %v3276
    %v3278 = vsub.f32 1.5, %v3277
    %v3279 = vmul.f32 %v3274, %v3278
    %vm3280 = vweird.f32 %v3230
    %vm3281 = vweird.f32 %v3274
    %vm3282 = vmor %vm3280, %vm3281
    %v3283 = vsel %vm3282, %v3274, %v3279
    %v3284 = vrsqrt.pop %v3231
    %v3285 = vmul.f32 %v3284, %v3231
    %v3286 = vmul.f32 %v3285, %v3284
    %v3287 = vmul.f32 0.5, %v3286
    %v3288 = vsub.f32 1.5, %v3287
    %v3289 = vmul.f32 %v3284, %v3288
    %vm3290 = vweird.f32 %v3231
    %vm3291 = vweird.f32 %v3284
    %vm3292 = vmor %vm3290, %vm3291
    %v3293 = vsel %vm3292, %v3284, %v3289
    %v3294 = vrsqrt.pop %v3232
    %v3295 = vmul.f32 %v3294, %v3232
    %v3296 = vmul.f32 %v3295, %v3294
    %v3297 = vmul.f32 0.5, %v3296
    %v3298 = vsub.f32 1.5, %v3297
    %v3299 = vmul.f32 %v3294, %v3298
    %vm3300 = vweird.f32 %v3232
    %vm3301 = vweird.f32 %v3294
    %vm3302 = vmor %vm3300, %vm3301
    %v3303 = vsel %vm3302, %v3294, %v3299
    %v3304 = vrsqrt.pop %v3233
    %v3305 = vmul.f32 %v3304, %v3233
    %v3306 = vmul.f32 %v3305, %v3304
    %v3307 = vmul.f32 0.5, %v3306
    %v3308 = vsub.f32 1.5, %v3307
    %v3309 = vmul.f32 %v3304, %v3308
    %vm3310 = vweird.f32 %v3233
    %vm3311 = vweird.f32 %v3304
    %vm3312 = vmor %vm3310, %vm3311
    %v3313 = vsel %vm3312, %v3304, %v3309
    %v3314 = vmul.f32 %v3178, %v3243
    %v3315 = vmul.f32 %v3179, %v3253
    %v3316 = vmul.f32 %v3180, %v3263
    %v3317 = vmul.f32 %v3181, %v3273
    %v3318 = vmul.f32 %v3182, %v3283
    %v3319 = vmul.f32 %v3183, %v3293
    %v3320 = vmul.f32 %v3184, %v3303
    %v3321 = vmul.f32 %v3185, %v3313
    %v3322 = vld [vmem:[%s20] sm:$0x1]
    %v3324 = vperm.slane %v3322, 0
    %v3326 = vmul.f32 %v3314, %v3324
    %v3327 = vmul.f32 %v3315, %v3324
    %v3328 = vmul.f32 %v3316, %v3324
    %v3329 = vmul.f32 %v3317, %v3324
    %v3330 = vmul.f32 %v3318, %v3324
    %v3331 = vmul.f32 %v3319, %v3324
    %v3332 = vmul.f32 %v3320, %v3324
    %v3333 = vmul.f32 %v3321, %v3324
    %v3334 = vld [vmem:[%s21] sm:$0x1]
    %v3336 = vperm.slane %v3334, 0
    %v3338 = vadd.f32 %v3326, %v3336
    %v3339 = vadd.f32 %v3327, %v3336
    %v3340 = vadd.f32 %v3328, %v3336
    %v3341 = vadd.f32 %v3329, %v3336
    %v3342 = vadd.f32 %v3330, %v3336
    %v3343 = vadd.f32 %v3331, %v3336
    %v3344 = vadd.f32 %v3332, %v3336
    %v3345 = vadd.f32 %v3333, %v3336
    %3347 = vrot.lane.b32.xlu0 %v3339, 32
    %v3348 = vpop.permute.xlu0 %3347
    %3351 = vrot.lane.b32.xlu0 %v3340, 64
    %v3352 = vpop.permute.xlu0 %3351
    %3355 = vrot.lane.b32.xlu0 %v3341, 96
    %v3356 = vpop.permute.xlu0 %3355
    %v3358 = vsel %vm197, %v3338, %v3348
    %vm3359 = vcmask 523264
    %v3360 = vsel %vm3359, %v3358, %v3352
    %vm3361 = vcmask 785408
    %v3362 = vsel %vm3361, %v3360, %v3356
    %3364 = vrot.lane.b32.xlu0 %v3343, 32
    %v3365 = vpop.permute.xlu0 %3364
    %3368 = vrot.lane.b32.xlu0 %v3344, 64
    %v3369 = vpop.permute.xlu0 %3368
    %3372 = vrot.lane.b32.xlu0 %v3345, 96
    %v3373 = vpop.permute.xlu0 %3372
    %v3375 = vsel %vm197, %v3342, %v3365
    %v3376 = vsel %vm3359, %v3375, %v3369
    %v3377 = vsel %vm3361, %v3376, %v3373
    %v3378 = vld [vmem:[#allocation7] sm:$0xff]
    %v3379 = vadd.f32 %v3362, %v3378
    %v3380 = vadd.f32 %v3377, %v3378
    %v3381 = vld [vmem:[#allocation5] sm:$0xff]
    %v3382 = vld [vmem:[#allocation5 + $0x8] sm:$0xff]
    %v3383 = vadd.f32 %v3379, %v3381
    %v3384 = vadd.f32 %v3380, %v3382
    %3385 = vst [vmem:[#allocation8] sm:$0xff] %v3383
    %3386 = vst [vmem:[#allocation8 + $0x8] sm:$0xff] %v3384
    // Predicated region
    $region102: #{tpu_custom_call.1} parent=1 // pred_check
      _
    $region103: #{tpu_custom_call.1} parent=1 // pred_check_branch
      %3388 = sbr.rel (0) target = $region105
    $region104: #{tpu_custom_call.1} parent=1 // pred_region
      %3390 = vsyncadd [#allocation4], 0
      %s3391 = sshll.u32 [#allocation8], 4
      %s3392 = int_to_ptr.vmem [resolvable:$true] %s3391
      %s3393 = sshll.u32 %s22, 4
      %s3394 = int_to_ptr.hbm [resolvable:$true] %s3393
      %3399 = dma.vmem_to_hbm [thread:$0]  %s3392, 256, %s3394, [#allocation4], 128, 128, 8
    $region105: #{tpu_custom_call.1} parent=1 // pred_fallthru
      _
    // Predicated region
    $region106: #{tpu_custom_call.1} parent=1 // pred_check
      _
    $region107: #{tpu_custom_call.1} parent=1 // pred_check_branch
      %3401 = sbr.rel (0) target = $region109
    $region108: #{tpu_custom_call.1} parent=1 // pred_region
      %3403 = dma.done [#allocation4], 256
    $region109: #{tpu_custom_call.1} parent=1 // pred_fallthru
      _
    %3404 = vsyncpa [#allocation3], 1
    %3405 = vsyncpa [#allocation6], 1
    %3406 = vsyncpa [#allocation4], 1

</llo_original>
